<compile_context>
chip_gen: v7x
topology: tpu7x:2x2x1
jax: 0.10.0
libtpu: 0.0.40
codegen_flags: <defaults>
</compile_context>

<pallas_src>
import math

import jax
import jax.numpy as jnp
from jax import lax
from jax.experimental import pallas as pl
from jax.experimental.pallas import tpu as pltpu


# --------------------------- fused transformer stack ------------------------


def make_stack_kernel(Bb, S, D, H, F, *, approx=True):
    """All TransformerBlocks fused; one (batch block, layer) pair per grid step."""
    assert D % H == 0
    hd = D // H
    scale = hd ** -0.5
    NEG = -1e30          # finite additive mask (no NaN risk)
    M = Bb * S           # batch rows folded into the matmul M dimension

    def layernorm(x, gamma, beta):
        mu = jnp.mean(x, axis=-1, keepdims=True)
        var = jnp.mean(jnp.square(x - mu), axis=-1, keepdims=True)
        return (x - mu) * lax.rsqrt(var + 1e-5) * gamma + beta

    def softmax_rows(s):
        s = s - jnp.max(s, axis=-1, keepdims=True)
        p = jnp.exp(s)
        denom = jnp.sum(p, axis=-1, keepdims=True)
        if approx:
            return p * pl.reciprocal(denom, approx=True)   # EUP slot
        return p / denom

    def kernel(x_ref, wqkv_ref, bqkv_ref, wo_ref, bo_ref,
               g1_ref, be1_ref, w1_ref, b1_ref, w2_ref, b2_ref,
               g2_ref, be2_ref, o_ref, acc_ref):
        l = pl.program_id(1)
        last = pl.num_programs(1) - 1

        # Seed the resident f32 activation (VMEM scratch, persists across the
        # whole "layers" grid axis).  The x input block index is constant in
        # l, so the embeddings are DMA'd only once per batch block.
        @pl.when(l == 0)
        def _():
            acc_ref[...] = x_ref[...].reshape(M, D)

        x = acc_ref[...]                                   # (M, D) f32
        xb = x.astype(jnp.bfloat16)

        # ---- fused QKV projection (bf16 in, f32 accumulation), M = Bb*S -----
        qkv = jnp.dot(xb, wqkv_ref[0],
                      preferred_element_type=jnp.float32) + bqkv_ref[0]
        qkv_b = qkv.astype(jnp.bfloat16)                   # cast ONCE, slice bf16

        # additive causal mask (0 / NEG), computed once per grid step
        row = lax.broadcasted_iota(jnp.int32, (S, S), 0)
        col = lax.broadcasted_iota(jnp.int32, (S, S), 1)
        mask = jnp.where(col <= row, 0.0, NEG).astype(jnp.float32)

        # ---- attention: per (batch row, head) scores/softmax, contexts are
        # concatenated so the output projection is one K=D matmul ------------
        # TODO(synk): for large H / Bb switch the static unroll to
        # lax.fori_loop(..., unroll=2) to bound code size / vreg pressure.
        ctx_rows = []
        for b in range(Bb):
            r0 = b * S
            head_ctx = []
            for h in range(H):
                c0 = h * hd
                qh = qkv_b[r0:r0 + S, c0:c0 + hd]
                kh = qkv_b[r0:r0 + S, D + c0:D + c0 + hd]
                vh = qkv_b[r0:r0 + S, 2 * D + c0:2 * D + c0 + hd]
                # q @ k^T via dot_general (contract last dims; no transpose op)
                s = lax.dot_general(qh, kh, (((1,), (1,)), ((), ())),
                                    preferred_element_type=jnp.float32)
                p = softmax_rows(s * scale + mask)
                head_ctx.append(jnp.dot(p.astype(jnp.bfloat16), vh,
                                        preferred_element_type=jnp.float32))
            ctx_rows.append(jnp.concatenate(head_ctx, axis=-1))     # (S, D)
        ctx = jnp.concatenate(ctx_rows, axis=0).astype(jnp.bfloat16)  # (M, D)

        # single full-width output projection (K = D instead of H x K = hd)
        attn_out = jnp.dot(ctx, wo_ref[0],
                           preferred_element_type=jnp.float32) + bo_ref[0]

        # ---- residual + LayerNorm 1 (f32) -----------------------------------
        x1 = layernorm(x + attn_out, g1_ref[0], be1_ref[0])

        # ---- feed-forward: Linear -> GELU -> Linear --------------------------
        h1 = jnp.dot(x1.astype(jnp.bfloat16), w1_ref[0],
                     preferred_element_type=jnp.float32) + b1_ref[0]
        h1 = jax.nn.gelu(h1, approximate=approx)           # tanh GELU -> EUP
        ff = jnp.dot(h1.astype(jnp.bfloat16), w2_ref[0],
                     preferred_element_type=jnp.float32) + b2_ref[0]

        # ---- residual + LayerNorm 2; update the resident activation ----------
        x2 = layernorm(x1 + ff, g2_ref[0], be2_ref[0])
        acc_ref[...] = x2

        # bf16 HBM writeback only once per batch block (last layer)
        @pl.when(l == last)
        def _():
            o_ref[...] = x2.reshape(Bb, S, D).astype(o_ref.dtype)

    return kernel


def transformer_stack(x, p, nhead, *, num_batch_blocks=None, approx=True):
    B, S, D = x.shape
    L, _, F = p["w1"].shape
    if num_batch_blocks is None:
        # >= 2 parallel blocks keeps both v7x TensorCores busy; the batch rows
        # inside each block are folded into the matmul M dimension.
        num_batch_blocks = 2 if (B % 2 == 0 and B >= 2) else 1
    assert B % num_batch_blocks == 0, "num_batch_blocks must divide batch"
    Bb = B // num_batch_blocks

    kernel = make_stack_kernel(Bb, S, D, nhead, F, approx=approx)

    def layer_spec(shape):
        # one layer's weights per grid step along the "arbitrary" layer axis
        return pl.BlockSpec((1,) + shape, lambda bb, l: (l, 0, 0))

    # ---- explicit VMEM budget (double-buffered blocks + resident scratch) ----
    bs = lambda shp, dt: math.prod(shp) * jnp.dtype(dt).itemsize
    block_bytes = (
        bs((Bb, S, D), jnp.float32) +                       # embeddings in
        bs((D, 3 * D), p["wqkv"].dtype) + bs((1, 3 * D), jnp.float32) +
        bs((D, D), p["wo"].dtype) + 5 * bs((1, D), jnp.float32) +
        bs((D, F), p["w1"].dtype) + bs((1, F), jnp.float32) +
        bs((F, D), p["w2"].dtype) + 2 * bs((1, D), jnp.float32) +
        bs((Bb, S, D), jnp.bfloat16)                        # activations out
    )
    needed = 2 * block_bytes + bs((Bb * S, D), jnp.float32)
    vmem_limit = int(min(2 * needed + (8 << 20), 64 << 20))

    # NOTE / TODO(synk): at scaled-up D/F (v7x 64 MiB VMEM) the w1/w2/wqkv
    # weights should get an extra K/F-tiling grid axis; not needed at these sizes.
    return pl.pallas_call(
        kernel,
        out_shape=jax.ShapeDtypeStruct((B, S, D), jnp.bfloat16),
        grid_spec=pltpu.PrefetchScalarGridSpec(
            num_scalar_prefetch=0,
            grid=(num_batch_blocks, L),     # batch blocks: parallel, layers: arbitrary
            in_specs=[
                pl.BlockSpec((Bb, S, D), lambda bb, l: (bb, 0, 0)),   # embeddings
                layer_spec((D, 3 * D)), layer_spec((1, 3 * D)),       # qkv_proj
                layer_spec((D, D)), layer_spec((1, D)),               # out_proj
                layer_spec((1, D)), layer_spec((1, D)),               # norm1 g/b
                layer_spec((D, F)), layer_spec((1, F)),               # linear1
                layer_spec((F, D)), layer_spec((1, D)),               # linear2
                layer_spec((1, D)), layer_spec((1, D)),               # norm2 g/b
            ],
            out_specs=pl.BlockSpec((Bb, S, D), lambda bb, l: (bb, 0, 0)),
            scratch_shapes=[pltpu.VMEM((Bb * S, D), jnp.float32)],    # resident acts
        ),
        compiler_params=pltpu.CompilerParams(
            dimension_semantics=("parallel", "arbitrary"),
            vmem_limit_bytes=vmem_limit),
    )(x, p["wqkv"], p["bqkv"], p["wo"], p["bo"],
      p["g1"], p["be1"], p["w1"], p["b1"], p["w2"], p["b2"],
      p["g2"], p["be2"])


# ------------------------- V-tiled vocab projection --------------------------


def _vocab_proj_kernel(x_ref, w_ref, b_ref, o_ref):
    # x/w are already bf16 (no in-kernel cast); f32 accumulation + f32 bias.
    o_ref[...] = jnp.dot(x_ref[...], w_ref[...],
                         preferred_element_type=jnp.float32) + b_ref[...]


def vocab_projection(x, w, b, *, tv=None):
    B, S, D = x.shape
    V = w.shape[1]
    if tv is None:
        # largest lane-dense tile (multiple of 128, <= 2048) that DIVIDES V;
        # fall back to a single full-width tile (no silent column dropping).
        tv = V
        for cand in (2048, 1024, 512, 256, 128):
            if V % cand == 0:
                tv = cand
                break
    assert V % tv == 0, "tv must divide the vocab size"
    M = B * S
    x2 = x.reshape(M, D)   # flatten rows -> one big M tile for the MXU
    # TODO(synk): add an M grid axis (256-512 row blocks) when B*S grows large.

    bs = lambda shp, dt: math.prod(shp) * jnp.dtype(dt).itemsize
    needed = 2 * (bs((M, D), x.dtype) + bs((D, tv), w.dtype)
                  + bs((1, tv), b.dtype) + bs((M, tv), jnp.float32))
    vmem_limit = int(min(2 * needed + (8 << 20), 64 << 20))

    out = pl.pallas_call(
        _vocab_proj_kernel,
        out_shape=jax.ShapeDtypeStruct((M, V), jnp.float32),
        grid_spec=pltpu.PrefetchScalarGridSpec(
            num_scalar_prefetch=0,
            grid=(V // tv,),
            in_specs=[
                pl.BlockSpec((M, D), lambda j: (0, 0)),
                pl.BlockSpec((D, tv), lambda j: (0, j)),
                pl.BlockSpec((1, tv), lambda j: (0, j)),
            ],
            out_specs=pl.BlockSpec((M, tv), lambda j: (0, j)),
        ),
        compiler_params=pltpu.CompilerParams(
            dimension_semantics=("parallel",),
            vmem_limit_bytes=vmem_limit),
    )(x2, w, b)
    return out.reshape(B, S, V)


# ------------------------------- model glue ----------------------------------


def init_params(key, vocab_size, d_model, nhead, num_layers, dim_ff, max_pos):
    D, F, L, V = d_model, dim_ff, num_layers, vocab_size
    ks = jax.random.split(key, 12)

    def n(k, shape, scale=0.02):
        return jax.random.normal(k, shape, jnp.float32) * scale

    return {
        "emb": n(ks[0], (V, D)),
        "pos": n(ks[1], (max_pos, D)),
        # per-layer weights stacked on a leading L axis; matmul weights bf16,
        # biases / LayerNorm params f32 (added to f32 accumulators).
        "wqkv": n(ks[2], (L, D, 3 * D)).astype(jnp.bfloat16),
        "bqkv": n(ks[3], (L, 1, 3 * D)),
        "wo":   n(ks[4], (L, D, D)).astype(jnp.bfloat16),
        "bo":   n(ks[5], (L, 1, D)),
        "g1":   jnp.ones((L, 1, D), jnp.float32),
        "be1":  jnp.zeros((L, 1, D), jnp.float32),
        "w1":   n(ks[6], (L, D, F)).astype(jnp.bfloat16),
        "b1":   n(ks[7], (L, 1, F)),
        "w2":   n(ks[8], (L, F, D)).astype(jnp.bfloat16),
        "b2":   n(ks[9], (L, 1, D)),
        "g2":   jnp.ones((L, 1, D), jnp.float32),
        "be2":  jnp.zeros((L, 1, D), jnp.float32),
        "w_out": n(ks[10], (D, V)).astype(jnp.bfloat16),
        "b_out": n(ks[11], (1, V)),
    }


def forward_pallas(tokens, params, nhead, *, approx=True):
    B, S = tokens.shape
    tok_emb = params["emb"][tokens]                 # (B, S, D) gather (glue)
    pos_emb = params["pos"][:S][None, :, :]         # (1, S, D)
    x = (tok_emb + pos_emb).astype(jnp.float32)
    # TODO(synk): dropout layers are identity (eval-mode semantics).
    x = transformer_stack(x, params, nhead, approx=approx)      # bf16 (B,S,D)
    return vocab_projection(x, params["w_out"], params["b_out"])


def forward_reference(tokens, params, nhead):
    """Pure-JAX f32 reference mirroring the PyTorch forward (eval mode)."""
    B, S = tokens.shape
    D = params["emb"].shape[1]
    hd = D // nhead
    L = params["wqkv"].shape[0]
    f32 = lambda a: a.astype(jnp.float32)
    x = params["emb"][tokens] + params["pos"][:S][None, :, :]
    causal = jnp.tril(jnp.ones((S, S), bool))
    for l in range(L):
        qkv = x @ f32(params["wqkv"][l]) + params["bqkv"][l, 0]
        q, k, v = jnp.split(qkv, 3, axis=-1)
        q = q.reshape(B, S, nhead, hd).transpose(0, 2, 1, 3)
        k = k.reshape(B, S, nhead, hd).transpose(0, 2, 1, 3)
        v = v.reshape(B, S, nhead, hd).transpose(0, 2, 1, 3)
        s = jnp.einsum("bhqd,bhkd->bhqk", q, k) * (hd ** -0.5)
        s = jnp.where(causal[None, None], s, -jnp.inf)
        a = jax.nn.softmax(s, axis=-1)
        o = jnp.einsum("bhqk,bhkd->bhqd", a, v).transpose(0, 2, 1, 3).reshape(B, S, D)
        x = x + (o @ f32(params["wo"][l]) + params["bo"][l, 0])
        mu = x.mean(-1, keepdims=True)
        var = ((x - mu) ** 2).mean(-1, keepdims=True)
        x = (x - mu) * lax.rsqrt(var + 1e-5) * params["g1"][l, 0] + params["be1"][l, 0]
        h = jax.nn.gelu(x @ f32(params["w1"][l]) + params["b1"][l, 0],
                        approximate=False)
        x = x + (h @ f32(params["w2"][l]) + params["b2"][l, 0])
        mu = x.mean(-1, keepdims=True)
        var = ((x - mu) ** 2).mean(-1, keepdims=True)
        x = (x - mu) * lax.rsqrt(var + 1e-5) * params["g2"][l, 0] + params["be2"][l, 0]
    return x @ f32(params["w_out"]) + params["b_out"][0]


# ----------------------------------- main ------------------------------------

if __name__ == "__main__":
    # Small, TPU-friendly shapes consistent with the module's forward.
    VOCAB = 512
    D_MODEL = 128
    NHEAD = 4
    NUM_LAYERS = 2
    DIM_FF = 256
    MAX_POS = 64
    B, S = 4, 32

    key = jax.random.PRNGKey(0)
    pkey, tkey = jax.random.split(key)
    params = init_params(pkey, VOCAB, D_MODEL, NHEAD, NUM_LAYERS, DIM_FF, MAX_POS)
    tokens = jax.random.randint(tkey, (B, S), 0, VOCAB, dtype=jnp.int32)

    logits = jax.block_until_ready(forward_pallas(tokens, params, NHEAD))
    assert logits.shape == (B, S, VOCAB)

    with jax.default_matmul_precision("highest"):
        ref = jax.block_until_ready(forward_reference(tokens, params, NHEAD))
    max_err = float(jnp.max(jnp.abs(logits - ref)))
    # bf16 matmuls + tanh GELU + approx reciprocal vs f32/erf reference.
    assert jnp.allclose(logits, ref, atol=3e-2, rtol=3e-2), max_err

    print("KERNEL_OK")
</pallas_src>

<mosaic_0001>
module attributes {stable_mosaic.version = 11 : i64} {
  func.func @kernel(%arg0: i32, %arg1: i32, %arg2: memref<2x32x128xf32, #tpu.memory_space<vmem>>, %arg3: memref<1x128x384xbf16, #tpu.memory_space<vmem>>, %arg4: memref<1x1x384xf32, #tpu.memory_space<vmem>>, %arg5: memref<1x128x128xbf16, #tpu.memory_space<vmem>>, %arg6: memref<1x1x128xf32, #tpu.memory_space<vmem>>, %arg7: memref<1x1x128xf32, #tpu.memory_space<vmem>>, %arg8: memref<1x1x128xf32, #tpu.memory_space<vmem>>, %arg9: memref<1x128x256xbf16, #tpu.memory_space<vmem>>, %arg10: memref<1x1x256xf32, #tpu.memory_space<vmem>>, %arg11: memref<1x256x128xbf16, #tpu.memory_space<vmem>>, %arg12: memref<1x1x128xf32, #tpu.memory_space<vmem>>, %arg13: memref<1x1x128xf32, #tpu.memory_space<vmem>>, %arg14: memref<1x1x128xf32, #tpu.memory_space<vmem>>, %arg15: memref<2x32x128xbf16, #tpu.memory_space<vmem>>, %arg16: memref<64x128xf32, #tpu.memory_space<vmem>>) attributes {dimension_semantics = [#tpu.dimension_semantics<parallel>, #tpu.dimension_semantics<arbitrary>], iteration_bounds = array<i64: 2, 2>, scalar_prefetch = 0 : i64, scratch_operands = 1 : i64, tpu.core_type = #tpu.core_type<tc>, window_params = [{transform_indices = @transform_0, window_bounds = array<i64: 2, 32, 128>}, {transform_indices = @transform_1, window_bounds = array<i64: 1, 128, 384>}, {transform_indices = @transform_2, window_bounds = array<i64: 1, 1, 384>}, {transform_indices = @transform_3, window_bounds = array<i64: 1, 128, 128>}, {transform_indices = @transform_4, window_bounds = array<i64: 1, 1, 128>}, {transform_indices = @transform_5, window_bounds = array<i64: 1, 1, 128>}, {transform_indices = @transform_6, window_bounds = array<i64: 1, 1, 128>}, {transform_indices = @transform_7, window_bounds = array<i64: 1, 128, 256>}, {transform_indices = @transform_8, window_bounds = array<i64: 1, 1, 256>}, {transform_indices = @transform_9, window_bounds = array<i64: 1, 256, 128>}, {transform_indices = @transform_10, window_bounds = array<i64: 1, 1, 128>}, {transform_indices = @transform_11, window_bounds = array<i64: 1, 1, 128>}, {transform_indices = @transform_12, window_bounds = array<i64: 1, 1, 128>}, {transform_indices = @transform_13, window_bounds = array<i64: 2, 32, 128>}]} {
    %c0_i32 = arith.constant 0 : i32
    %0 = arith.cmpi eq, %arg1, %c0_i32 : i32
    %1 = arith.extui %0 : i1 to i32
    %c0_i32_0 = arith.constant 0 : i32
    %2 = arith.cmpi ne, %1, %c0_i32_0 : i32
    scf.if %2 {
      %c0_100 = arith.constant 0 : index
      %c0_101 = arith.constant 0 : index
      %c0_102 = arith.constant 0 : index
      %269 = vector.load %arg2[%c0_100, %c0_101, %c0_102] : memref<2x32x128xf32, #tpu.memory_space<vmem>>, vector<2x32x128xf32>
      %270 = vector.shape_cast %269 : vector<2x32x128xf32> to vector<64x128xf32>
      %c0_103 = arith.constant 0 : index
      %c0_104 = arith.constant 0 : index
      %271 = vector.load %arg16[%c0_103, %c0_104] : memref<64x128xf32, #tpu.memory_space<vmem>>, vector<64x128xf32>
      tpu.vector_store %arg16[%c0_103, %c0_104], %270 {strides = array<i32>} : memref<64x128xf32, #tpu.memory_space<vmem>>, vector<64x128xf32>,
    } else {
    }
    %c0 = arith.constant 0 : index
    %c0_1 = arith.constant 0 : index
    %3 = vector.load %arg16[%c0, %c0_1] : memref<64x128xf32, #tpu.memory_space<vmem>>, vector<64x128xf32>
    %4 = arith.truncf %3 : vector<64x128xf32> to vector<64x128xbf16>
    %c0_2 = arith.constant 0 : index
    %c0_3 = arith.constant 0 : index
    %c0_4 = arith.constant 0 : index
    %5 = vector.load %arg3[%c0_2, %c0_3, %c0_4] : memref<1x128x384xbf16, #tpu.memory_space<vmem>>, vector<1x128x384xbf16>
    %6 = vector.shape_cast %5 : vector<1x128x384xbf16> to vector<128x384xbf16>
    %cst = arith.constant dense<0.000000e+00> : vector<64x384xf32>
    %7 = tpu.matmul %4, %6, %cst {dimension_numbers = #tpu.dot_dimension_numbers<[1], [0], [0], [1], [0, 0, 1, 1], [], []>} : vector<64x128xbf16>, vector<128x384xbf16>, vector<64x384xf32> -> vector<64x384xf32>
    %c0_5 = arith.constant 0 : index
    %c0_6 = arith.constant 0 : index
    %c0_7 = arith.constant 0 : index
    %8 = vector.load %arg4[%c0_5, %c0_6, %c0_7] : memref<1x1x384xf32, #tpu.memory_space<vmem>>, vector<1x1x384xf32>
    %9 = vector.shape_cast %8 : vector<1x1x384xf32> to vector<1x384xf32>
    %10 = vector.broadcast %9 : vector<1x384xf32> to vector<64x384xf32>
    %11 = arith.addf %7, %10 : vector<64x384xf32>
    %12 = arith.truncf %11 : vector<64x384xf32> to vector<64x384xbf16>
    %13 = tpu.iota {dimensions = array<i32: 0>} : vector<32x32xi32>
    %14 = tpu.iota {dimensions = array<i32: 1>} : vector<32x32xi32>
    %15 = arith.cmpi sle, %14, %13 : vector<32x32xi32>
    %cst_8 = arith.constant 0.000000e+00 : f32
    %cst_9 = arith.constant -1.000000e+30 : f32
    %16 = vector.broadcast %cst_8 : f32 to vector<32x32xf32>
    %17 = vector.broadcast %cst_9 : f32 to vector<32x32xf32>
    %18 = arith.select %15, %16, %17 : vector<32x32xi1>, vector<32x32xf32>
    %19 = vector.extract_strided_slice %12 {offsets = [0, 0], sizes = [32, 32], strides = [1, 1]} : vector<64x384xbf16> to vector<32x32xbf16>
    %20 = vector.extract_strided_slice %12 {offsets = [0, 128], sizes = [32, 32], strides = [1, 1]} : vector<64x384xbf16> to vector<32x32xbf16>
    %21 = vector.extract_strided_slice %12 {offsets = [0, 256], sizes = [32, 32], strides = [1, 1]} : vector<64x384xbf16> to vector<32x32xbf16>
    %cst_10 = arith.constant dense<0.000000e+00> : vector<32x32xf32>
    %22 = tpu.matmul %19, %20, %cst_10 {dimension_numbers = #tpu.dot_dimension_numbers<[1], [1], [0], [0], [0, 0, 1, 0], [], []>} : vector<32x32xbf16>, vector<32x32xbf16>, vector<32x32xf32> -> vector<32x32xf32>
    %cst_11 = arith.constant 0.176776692 : f32
    %23 = vector.broadcast %cst_11 : f32 to vector<32x32xf32>
    %24 = arith.mulf %22, %23 : vector<32x32xf32>
    %25 = arith.addf %24, %18 : vector<32x32xf32>
    %cst_12 = arith.constant dense<0xFF800000> : vector<32xf32>
    %26 = vector.multi_reduction <maximumf>, %25, %cst_12 [1] : vector<32x32xf32> to vector<32xf32>
    %27 = vector.shape_cast %26 : vector<32xf32> to vector<32x1xf32>
    %28 = vector.broadcast %27 : vector<32x1xf32> to vector<32x32xf32>
    %29 = arith.subf %25, %28 : vector<32x32xf32>
    %30 = math.exp %29 : vector<32x32xf32>
    %cst_13 = arith.constant dense<0.000000e+00> : vector<32xf32>
    %31 = vector.multi_reduction <add>, %30, %cst_13 [1] : vector<32x32xf32> to vector<32xf32>
    %32 = vector.shape_cast %31 : vector<32xf32> to vector<32x1xf32>
    %33 = tpu.reciprocal %32 {approx = true} : vector<32x1xf32> -> vector<32x1xf32>
    %34 = vector.broadcast %33 : vector<32x1xf32> to vector<32x32xf32>
    %35 = arith.mulf %30, %34 : vector<32x32xf32>
    %36 = arith.truncf %35 : vector<32x32xf32> to vector<32x32xbf16>
    %cst_14 = arith.constant dense<0.000000e+00> : vector<32x32xf32>
    %37 = tpu.matmul %36, %21, %cst_14 {dimension_numbers = #tpu.dot_dimension_numbers<[1], [0], [0], [1], [0, 0, 1, 1], [], []>} : vector<32x32xbf16>, vector<32x32xbf16>, vector<32x32xf32> -> vector<32x32xf32>
    %38 = vector.extract_strided_slice %12 {offsets = [0, 32], sizes = [32, 32], strides = [1, 1]} : vector<64x384xbf16> to vector<32x32xbf16>
    %39 = vector.extract_strided_slice %12 {offsets = [0, 160], sizes = [32, 32], strides = [1, 1]} : vector<64x384xbf16> to vector<32x32xbf16>
    %40 = vector.extract_strided_slice %12 {offsets = [0, 288], sizes = [32, 32], strides = [1, 1]} : vector<64x384xbf16> to vector<32x32xbf16>
    %cst_15 = arith.constant dense<0.000000e+00> : vector<32x32xf32>
    %41 = tpu.matmul %38, %39, %cst_15 {dimension_numbers = #tpu.dot_dimension_numbers<[1], [1], [0], [0], [0, 0, 1, 0], [], []>} : vector<32x32xbf16>, vector<32x32xbf16>, vector<32x32xf32> -> vector<32x32xf32>
    %cst_16 = arith.constant 0.176776692 : f32
    %42 = vector.broadcast %cst_16 : f32 to vector<32x32xf32>
    %43 = arith.mulf %41, %42 : vector<32x32xf32>
    %44 = arith.addf %43, %18 : vector<32x32xf32>
    %cst_17 = arith.constant dense<0xFF800000> : vector<32xf32>
    %45 = vector.multi_reduction <maximumf>, %44, %cst_17 [1] : vector<32x32xf32> to vector<32xf32>
    %46 = vector.shape_cast %45 : vector<32xf32> to vector<32x1xf32>
    %47 = vector.broadcast %46 : vector<32x1xf32> to vector<32x32xf32>
    %48 = arith.subf %44, %47 : vector<32x32xf32>
    %49 = math.exp %48 : vector<32x32xf32>
    %cst_18 = arith.constant dense<0.000000e+00> : vector<32xf32>
    %50 = vector.multi_reduction <add>, %49, %cst_18 [1] : vector<32x32xf32> to vector<32xf32>
    %51 = vector.shape_cast %50 : vector<32xf32> to vector<32x1xf32>
    %52 = tpu.reciprocal %51 {approx = true} : vector<32x1xf32> -> vector<32x1xf32>
    %53 = vector.broadcast %52 : vector<32x1xf32> to vector<32x32xf32>
    %54 = arith.mulf %49, %53 : vector<32x32xf32>
    %55 = arith.truncf %54 : vector<32x32xf32> to vector<32x32xbf16>
    %cst_19 = arith.constant dense<0.000000e+00> : vector<32x32xf32>
    %56 = tpu.matmul %55, %40, %cst_19 {dimension_numbers = #tpu.dot_dimension_numbers<[1], [0], [0], [1], [0, 0, 1, 1], [], []>} : vector<32x32xbf16>, vector<32x32xbf16>, vector<32x32xf32> -> vector<32x32xf32>
    %57 = vector.extract_strided_slice %12 {offsets = [0, 64], sizes = [32, 32], strides = [1, 1]} : vector<64x384xbf16> to vector<32x32xbf16>
    %58 = vector.extract_strided_slice %12 {offsets = [0, 192], sizes = [32, 32], strides = [1, 1]} : vector<64x384xbf16> to vector<32x32xbf16>
    %59 = vector.extract_strided_slice %12 {offsets = [0, 320], sizes = [32, 32], strides = [1, 1]} : vector<64x384xbf16> to vector<32x32xbf16>
    %cst_20 = arith.constant dense<0.000000e+00> : vector<32x32xf32>
    %60 = tpu.matmul %57, %58, %cst_20 {dimension_numbers = #tpu.dot_dimension_numbers<[1], [1], [0], [0], [0, 0, 1, 0], [], []>} : vector<32x32xbf16>, vector<32x32xbf16>, vector<32x32xf32> -> vector<32x32xf32>
    %cst_21 = arith.constant 0.176776692 : f32
    %61 = vector.broadcast %cst_21 : f32 to vector<32x32xf32>
    %62 = arith.mulf %60, %61 : vector<32x32xf32>
    %63 = arith.addf %62, %18 : vector<32x32xf32>
    %cst_22 = arith.constant dense<0xFF800000> : vector<32xf32>
    %64 = vector.multi_reduction <maximumf>, %63, %cst_22 [1] : vector<32x32xf32> to vector<32xf32>
    %65 = vector.shape_cast %64 : vector<32xf32> to vector<32x1xf32>
    %66 = vector.broadcast %65 : vector<32x1xf32> to vector<32x32xf32>
    %67 = arith.subf %63, %66 : vector<32x32xf32>
    %68 = math.exp %67 : vector<32x32xf32>
    %cst_23 = arith.constant dense<0.000000e+00> : vector<32xf32>
    %69 = vector.multi_reduction <add>, %68, %cst_23 [1] : vector<32x32xf32> to vector<32xf32>
    %70 = vector.shape_cast %69 : vector<32xf32> to vector<32x1xf32>
    %71 = tpu.reciprocal %70 {approx = true} : vector<32x1xf32> -> vector<32x1xf32>
    %72 = vector.broadcast %71 : vector<32x1xf32> to vector<32x32xf32>
    %73 = arith.mulf %68, %72 : vector<32x32xf32>
    %74 = arith.truncf %73 : vector<32x32xf32> to vector<32x32xbf16>
    %cst_24 = arith.constant dense<0.000000e+00> : vector<32x32xf32>
    %75 = tpu.matmul %74, %59, %cst_24 {dimension_numbers = #tpu.dot_dimension_numbers<[1], [0], [0], [1], [0, 0, 1, 1], [], []>} : vector<32x32xbf16>, vector<32x32xbf16>, vector<32x32xf32> -> vector<32x32xf32>
    %76 = vector.extract_strided_slice %12 {offsets = [0, 96], sizes = [32, 32], strides = [1, 1]} : vector<64x384xbf16> to vector<32x32xbf16>
    %77 = vector.extract_strided_slice %12 {offsets = [0, 224], sizes = [32, 32], strides = [1, 1]} : vector<64x384xbf16> to vector<32x32xbf16>
    %78 = vector.extract_strided_slice %12 {offsets = [0, 352], sizes = [32, 32], strides = [1, 1]} : vector<64x384xbf16> to vector<32x32xbf16>
    %cst_25 = arith.constant dense<0.000000e+00> : vector<32x32xf32>
    %79 = tpu.matmul %76, %77, %cst_25 {dimension_numbers = #tpu.dot_dimension_numbers<[1], [1], [0], [0], [0, 0, 1, 0], [], []>} : vector<32x32xbf16>, vector<32x32xbf16>, vector<32x32xf32> -> vector<32x32xf32>
    %cst_26 = arith.constant 0.176776692 : f32
    %80 = vector.broadcast %cst_26 : f32 to vector<32x32xf32>
    %81 = arith.mulf %79, %80 : vector<32x32xf32>
    %82 = arith.addf %81, %18 : vector<32x32xf32>
    %cst_27 = arith.constant dense<0xFF800000> : vector<32xf32>
    %83 = vector.multi_reduction <maximumf>, %82, %cst_27 [1] : vector<32x32xf32> to vector<32xf32>
    %84 = vector.shape_cast %83 : vector<32xf32> to vector<32x1xf32>
    %85 = vector.broadcast %84 : vector<32x1xf32> to vector<32x32xf32>
    %86 = arith.subf %82, %85 : vector<32x32xf32>
    %87 = math.exp %86 : vector<32x32xf32>
    %cst_28 = arith.constant dense<0.000000e+00> : vector<32xf32>
    %88 = vector.multi_reduction <add>, %87, %cst_28 [1] : vector<32x32xf32> to vector<32xf32>
    %89 = vector.shape_cast %88 : vector<32xf32> to vector<32x1xf32>
    %90 = tpu.reciprocal %89 {approx = true} : vector<32x1xf32> -> vector<32x1xf32>
    %91 = vector.broadcast %90 : vector<32x1xf32> to vector<32x32xf32>
    %92 = arith.mulf %87, %91 : vector<32x32xf32>
    %93 = arith.truncf %92 : vector<32x32xf32> to vector<32x32xbf16>
    %cst_29 = arith.constant dense<0.000000e+00> : vector<32x32xf32>
    %94 = tpu.matmul %93, %78, %cst_29 {dimension_numbers = #tpu.dot_dimension_numbers<[1], [0], [0], [1], [0, 0, 1, 1], [], []>} : vector<32x32xbf16>, vector<32x32xbf16>, vector<32x32xf32> -> vector<32x32xf32>
    %95 = tpu.concatenate %37, %56, %75, %94 in 1 : vector<32x32xf32>, vector<32x32xf32>, vector<32x32xf32>, vector<32x32xf32> -> vector<32x128xf32>
    %96 = vector.extract_strided_slice %12 {offsets = [32, 0], sizes = [32, 32], strides = [1, 1]} : vector<64x384xbf16> to vector<32x32xbf16>
    %97 = vector.extract_strided_slice %12 {offsets = [32, 128], sizes = [32, 32], strides = [1, 1]} : vector<64x384xbf16> to vector<32x32xbf16>
    %98 = vector.extract_strided_slice %12 {offsets = [32, 256], sizes = [32, 32], strides = [1, 1]} : vector<64x384xbf16> to vector<32x32xbf16>
    %cst_30 = arith.constant dense<0.000000e+00> : vector<32x32xf32>
    %99 = tpu.matmul %96, %97, %cst_30 {dimension_numbers = #tpu.dot_dimension_numbers<[1], [1], [0], [0], [0, 0, 1, 0], [], []>} : vector<32x32xbf16>, vector<32x32xbf16>, vector<32x32xf32> -> vector<32x32xf32>
    %cst_31 = arith.constant 0.176776692 : f32
    %100 = vector.broadcast %cst_31 : f32 to vector<32x32xf32>
    %101 = arith.mulf %99, %100 : vector<32x32xf32>
    %102 = arith.addf %101, %18 : vector<32x32xf32>
    %cst_32 = arith.constant dense<0xFF800000> : vector<32xf32>
    %103 = vector.multi_reduction <maximumf>, %102, %cst_32 [1] : vector<32x32xf32> to vector<32xf32>
    %104 = vector.shape_cast %103 : vector<32xf32> to vector<32x1xf32>
    %105 = vector.broadcast %104 : vector<32x1xf32> to vector<32x32xf32>
    %106 = arith.subf %102, %105 : vector<32x32xf32>
    %107 = math.exp %106 : vector<32x32xf32>
    %cst_33 = arith.constant dense<0.000000e+00> : vector<32xf32>
    %108 = vector.multi_reduction <add>, %107, %cst_33 [1] : vector<32x32xf32> to vector<32xf32>
    %109 = vector.shape_cast %108 : vector<32xf32> to vector<32x1xf32>
    %110 = tpu.reciprocal %109 {approx = true} : vector<32x1xf32> -> vector<32x1xf32>
    %111 = vector.broadcast %110 : vector<32x1xf32> to vector<32x32xf32>
    %112 = arith.mulf %107, %111 : vector<32x32xf32>
    %113 = arith.truncf %112 : vector<32x32xf32> to vector<32x32xbf16>
    %cst_34 = arith.constant dense<0.000000e+00> : vector<32x32xf32>
    %114 = tpu.matmul %113, %98, %cst_34 {dimension_numbers = #tpu.dot_dimension_numbers<[1], [0], [0], [1], [0, 0, 1, 1], [], []>} : vector<32x32xbf16>, vector<32x32xbf16>, vector<32x32xf32> -> vector<32x32xf32>
    %115 = vector.extract_strided_slice %12 {offsets = [32, 32], sizes = [32, 32], strides = [1, 1]} : vector<64x384xbf16> to vector<32x32xbf16>
    %116 = vector.extract_strided_slice %12 {offsets = [32, 160], sizes = [32, 32], strides = [1, 1]} : vector<64x384xbf16> to vector<32x32xbf16>
    %117 = vector.extract_strided_slice %12 {offsets = [32, 288], sizes = [32, 32], strides = [1, 1]} : vector<64x384xbf16> to vector<32x32xbf16>
    %cst_35 = arith.constant dense<0.000000e+00> : vector<32x32xf32>
    %118 = tpu.matmul %115, %116, %cst_35 {dimension_numbers = #tpu.dot_dimension_numbers<[1], [1], [0], [0], [0, 0, 1, 0], [], []>} : vector<32x32xbf16>, vector<32x32xbf16>, vector<32x32xf32> -> vector<32x32xf32>
    %cst_36 = arith.constant 0.176776692 : f32
    %119 = vector.broadcast %cst_36 : f32 to vector<32x32xf32>
    %120 = arith.mulf %118, %119 : vector<32x32xf32>
    %121 = arith.addf %120, %18 : vector<32x32xf32>
    %cst_37 = arith.constant dense<0xFF800000> : vector<32xf32>
    %122 = vector.multi_reduction <maximumf>, %121, %cst_37 [1] : vector<32x32xf32> to vector<32xf32>
    %123 = vector.shape_cast %122 : vector<32xf32> to vector<32x1xf32>
    %124 = vector.broadcast %123 : vector<32x1xf32> to vector<32x32xf32>
    %125 = arith.subf %121, %124 : vector<32x32xf32>
    %126 = math.exp %125 : vector<32x32xf32>
    %cst_38 = arith.constant dense<0.000000e+00> : vector<32xf32>
    %127 = vector.multi_reduction <add>, %126, %cst_38 [1] : vector<32x32xf32> to vector<32xf32>
    %128 = vector.shape_cast %127 : vector<32xf32> to vector<32x1xf32>
    %129 = tpu.reciprocal %128 {approx = true} : vector<32x1xf32> -> vector<32x1xf32>
    %130 = vector.broadcast %129 : vector<32x1xf32> to vector<32x32xf32>
    %131 = arith.mulf %126, %130 : vector<32x32xf32>
    %132 = arith.truncf %131 : vector<32x32xf32> to vector<32x32xbf16>
    %cst_39 = arith.constant dense<0.000000e+00> : vector<32x32xf32>
    %133 = tpu.matmul %132, %117, %cst_39 {dimension_numbers = #tpu.dot_dimension_numbers<[1], [0], [0], [1], [0, 0, 1, 1], [], []>} : vector<32x32xbf16>, vector<32x32xbf16>, vector<32x32xf32> -> vector<32x32xf32>
    %134 = vector.extract_strided_slice %12 {offsets = [32, 64], sizes = [32, 32], strides = [1, 1]} : vector<64x384xbf16> to vector<32x32xbf16>
    %135 = vector.extract_strided_slice %12 {offsets = [32, 192], sizes = [32, 32], strides = [1, 1]} : vector<64x384xbf16> to vector<32x32xbf16>
    %136 = vector.extract_strided_slice %12 {offsets = [32, 320], sizes = [32, 32], strides = [1, 1]} : vector<64x384xbf16> to vector<32x32xbf16>
    %cst_40 = arith.constant dense<0.000000e+00> : vector<32x32xf32>
    %137 = tpu.matmul %134, %135, %cst_40 {dimension_numbers = #tpu.dot_dimension_numbers<[1], [1], [0], [0], [0, 0, 1, 0], [], []>} : vector<32x32xbf16>, vector<32x32xbf16>, vector<32x32xf32> -> vector<32x32xf32>
    %cst_41 = arith.constant 0.176776692 : f32
    %138 = vector.broadcast %cst_41 : f32 to vector<32x32xf32>
    %139 = arith.mulf %137, %138 : vector<32x32xf32>
    %140 = arith.addf %139, %18 : vector<32x32xf32>
    %cst_42 = arith.constant dense<0xFF800000> : vector<32xf32>
    %141 = vector.multi_reduction <maximumf>, %140, %cst_42 [1] : vector<32x32xf32> to vector<32xf32>
    %142 = vector.shape_cast %141 : vector<32xf32> to vector<32x1xf32>
    %143 = vector.broadcast %142 : vector<32x1xf32> to vector<32x32xf32>
    %144 = arith.subf %140, %143 : vector<32x32xf32>
    %145 = math.exp %144 : vector<32x32xf32>
    %cst_43 = arith.constant dense<0.000000e+00> : vector<32xf32>
    %146 = vector.multi_reduction <add>, %145, %cst_43 [1] : vector<32x32xf32> to vector<32xf32>
    %147 = vector.shape_cast %146 : vector<32xf32> to vector<32x1xf32>
    %148 = tpu.reciprocal %147 {approx = true} : vector<32x1xf32> -> vector<32x1xf32>
    %149 = vector.broadcast %148 : vector<32x1xf32> to vector<32x32xf32>
    %150 = arith.mulf %145, %149 : vector<32x32xf32>
    %151 = arith.truncf %150 : vector<32x32xf32> to vector<32x32xbf16>
    %cst_44 = arith.constant dense<0.000000e+00> : vector<32x32xf32>
    %152 = tpu.matmul %151, %136, %cst_44 {dimension_numbers = #tpu.dot_dimension_numbers<[1], [0], [0], [1], [0, 0, 1, 1], [], []>} : vector<32x32xbf16>, vector<32x32xbf16>, vector<32x32xf32> -> vector<32x32xf32>
    %153 = vector.extract_strided_slice %12 {offsets = [32, 96], sizes = [32, 32], strides = [1, 1]} : vector<64x384xbf16> to vector<32x32xbf16>
    %154 = vector.extract_strided_slice %12 {offsets = [32, 224], sizes = [32, 32], strides = [1, 1]} : vector<64x384xbf16> to vector<32x32xbf16>
    %155 = vector.extract_strided_slice %12 {offsets = [32, 352], sizes = [32, 32], strides = [1, 1]} : vector<64x384xbf16> to vector<32x32xbf16>
    %cst_45 = arith.constant dense<0.000000e+00> : vector<32x32xf32>
    %156 = tpu.matmul %153, %154, %cst_45 {dimension_numbers = #tpu.dot_dimension_numbers<[1], [1], [0], [0], [0, 0, 1, 0], [], []>} : vector<32x32xbf16>, vector<32x32xbf16>, vector<32x32xf32> -> vector<32x32xf32>
    %cst_46 = arith.constant 0.176776692 : f32
    %157 = vector.broadcast %cst_46 : f32 to vector<32x32xf32>
    %158 = arith.mulf %156, %157 : vector<32x32xf32>
    %159 = arith.addf %158, %18 : vector<32x32xf32>
    %cst_47 = arith.constant dense<0xFF800000> : vector<32xf32>
    %160 = vector.multi_reduction <maximumf>, %159, %cst_47 [1] : vector<32x32xf32> to vector<32xf32>
    %161 = vector.shape_cast %160 : vector<32xf32> to vector<32x1xf32>
    %162 = vector.broadcast %161 : vector<32x1xf32> to vector<32x32xf32>
    %163 = arith.subf %159, %162 : vector<32x32xf32>
    %164 = math.exp %163 : vector<32x32xf32>
    %cst_48 = arith.constant dense<0.000000e+00> : vector<32xf32>
    %165 = vector.multi_reduction <add>, %164, %cst_48 [1] : vector<32x32xf32> to vector<32xf32>
    %166 = vector.shape_cast %165 : vector<32xf32> to vector<32x1xf32>
    %167 = tpu.reciprocal %166 {approx = true} : vector<32x1xf32> -> vector<32x1xf32>
    %168 = vector.broadcast %167 : vector<32x1xf32> to vector<32x32xf32>
    %169 = arith.mulf %164, %168 : vector<32x32xf32>
    %170 = arith.truncf %169 : vector<32x32xf32> to vector<32x32xbf16>
    %cst_49 = arith.constant dense<0.000000e+00> : vector<32x32xf32>
    %171 = tpu.matmul %170, %155, %cst_49 {dimension_numbers = #tpu.dot_dimension_numbers<[1], [0], [0], [1], [0, 0, 1, 1], [], []>} : vector<32x32xbf16>, vector<32x32xbf16>, vector<32x32xf32> -> vector<32x32xf32>
    %172 = tpu.concatenate %114, %133, %152, %171 in 1 : vector<32x32xf32>, vector<32x32xf32>, vector<32x32xf32>, vector<32x32xf32> -> vector<32x128xf32>
    %173 = tpu.concatenate %95, %172 in 0 : vector<32x128xf32>, vector<32x128xf32> -> vector<64x128xf32>
    %174 = arith.truncf %173 : vector<64x128xf32> to vector<64x128xbf16>
    %c0_50 = arith.constant 0 : index
    %c0_51 = arith.constant 0 : index
    %c0_52 = arith.constant 0 : index
    %175 = vector.load %arg5[%c0_50, %c0_51, %c0_52] : memref<1x128x128xbf16, #tpu.memory_space<vmem>>, vector<1x128x128xbf16>
    %176 = vector.shape_cast %175 : vector<1x128x128xbf16> to vector<128x128xbf16>
    %cst_53 = arith.constant dense<0.000000e+00> : vector<64x128xf32>
    %177 = tpu.matmul %174, %176, %cst_53 {dimension_numbers = #tpu.dot_dimension_numbers<[1], [0], [0], [1], [0, 0, 1, 1], [], []>} : vector<64x128xbf16>, vector<128x128xbf16>, vector<64x128xf32> -> vector<64x128xf32>
    %c0_54 = arith.constant 0 : index
    %c0_55 = arith.constant 0 : index
    %c0_56 = arith.constant 0 : index
    %178 = vector.load %arg6[%c0_54, %c0_55, %c0_56] : memref<1x1x128xf32, #tpu.memory_space<vmem>>, vector<1x1x128xf32>
    %179 = vector.shape_cast %178 : vector<1x1x128xf32> to vector<1x128xf32>
    %180 = vector.broadcast %179 : vector<1x128xf32> to vector<64x128xf32>
    %181 = arith.addf %177, %180 : vector<64x128xf32>
    %182 = arith.addf %3, %181 : vector<64x128xf32>
    %c0_57 = arith.constant 0 : index
    %c0_58 = arith.constant 0 : index
    %c0_59 = arith.constant 0 : index
    %183 = vector.load %arg7[%c0_57, %c0_58, %c0_59] : memref<1x1x128xf32, #tpu.memory_space<vmem>>, vector<1x1x128xf32>
    %184 = vector.shape_cast %183 : vector<1x1x128xf32> to vector<1x128xf32>
    %c0_60 = arith.constant 0 : index
    %c0_61 = arith.constant 0 : index
    %c0_62 = arith.constant 0 : index
    %185 = vector.load %arg8[%c0_60, %c0_61, %c0_62] : memref<1x1x128xf32, #tpu.memory_space<vmem>>, vector<1x1x128xf32>
    %186 = vector.shape_cast %185 : vector<1x1x128xf32> to vector<1x128xf32>
    %cst_63 = arith.constant dense<0.000000e+00> : vector<64xf32>
    %187 = vector.multi_reduction <add>, %182, %cst_63 [1] : vector<64x128xf32> to vector<64xf32>
    %188 = vector.shape_cast %187 : vector<64xf32> to vector<64x1xf32>
    %cst_64 = arith.constant 1.280000e+02 : f32
    %189 = vector.broadcast %cst_64 : f32 to vector<64x1xf32>
    %190 = arith.divf %188, %189 : vector<64x1xf32>
    %191 = vector.broadcast %190 : vector<64x1xf32> to vector<64x128xf32>
    %192 = arith.subf %182, %191 : vector<64x128xf32>
    %193 = arith.mulf %192, %192 : vector<64x128xf32>
    %cst_65 = arith.constant dense<0.000000e+00> : vector<64xf32>
    %194 = vector.multi_reduction <add>, %193, %cst_65 [1] : vector<64x128xf32> to vector<64xf32>
    %195 = vector.shape_cast %194 : vector<64xf32> to vector<64x1xf32>
    %cst_66 = arith.constant 1.280000e+02 : f32
    %196 = vector.broadcast %cst_66 : f32 to vector<64x1xf32>
    %197 = arith.divf %195, %196 : vector<64x1xf32>
    %198 = vector.broadcast %190 : vector<64x1xf32> to vector<64x128xf32>
    %199 = arith.subf %182, %198 : vector<64x128xf32>
    %cst_67 = arith.constant 9.99999974E-6 : f32
    %200 = vector.broadcast %cst_67 : f32 to vector<64x1xf32>
    %201 = arith.addf %197, %200 : vector<64x1xf32>
    %202 = math.rsqrt %201 : vector<64x1xf32>
    %203 = vector.broadcast %202 : vector<64x1xf32> to vector<64x128xf32>
    %204 = arith.mulf %199, %203 : vector<64x128xf32>
    %205 = vector.broadcast %184 : vector<1x128xf32> to vector<64x128xf32>
    %206 = arith.mulf %204, %205 : vector<64x128xf32>
    %207 = vector.broadcast %186 : vector<1x128xf32> to vector<64x128xf32>
    %208 = arith.addf %206, %207 : vector<64x128xf32>
    %209 = arith.truncf %208 : vector<64x128xf32> to vector<64x128xbf16>
    %c0_68 = arith.constant 0 : index
    %c0_69 = arith.constant 0 : index
    %c0_70 = arith.constant 0 : index
    %210 = vector.load %arg9[%c0_68, %c0_69, %c0_70] : memref<1x128x256xbf16, #tpu.memory_space<vmem>>, vector<1x128x256xbf16>
    %211 = vector.shape_cast %210 : vector<1x128x256xbf16> to vector<128x256xbf16>
    %cst_71 = arith.constant dense<0.000000e+00> : vector<64x256xf32>
    %212 = tpu.matmul %209, %211, %cst_71 {dimension_numbers = #tpu.dot_dimension_numbers<[1], [0], [0], [1], [0, 0, 1, 1], [], []>} : vector<64x128xbf16>, vector<128x256xbf16>, vector<64x256xf32> -> vector<64x256xf32>
    %c0_72 = arith.constant 0 : index
    %c0_73 = arith.constant 0 : index
    %c0_74 = arith.constant 0 : index
    %213 = vector.load %arg10[%c0_72, %c0_73, %c0_74] : memref<1x1x256xf32, #tpu.memory_space<vmem>>, vector<1x1x256xf32>
    %214 = vector.shape_cast %213 : vector<1x1x256xf32> to vector<1x256xf32>
    %215 = vector.broadcast %214 : vector<1x256xf32> to vector<64x256xf32>
    %216 = arith.addf %212, %215 : vector<64x256xf32>
    %217 = arith.mulf %216, %216 : vector<64x256xf32>
    %218 = arith.mulf %216, %217 : vector<64x256xf32>
    %cst_75 = arith.constant 4.471500e-02 : f32
    %219 = vector.broadcast %cst_75 : f32 to vector<64x256xf32>
    %220 = arith.mulf %219, %218 : vector<64x256xf32>
    %221 = arith.addf %216, %220 : vector<64x256xf32>
    %cst_76 = arith.constant 0.797884583 : f32
    %222 = vector.broadcast %cst_76 : f32 to vector<64x256xf32>
    %223 = arith.mulf %222, %221 : vector<64x256xf32>
    %224 = math.tanh %223 : vector<64x256xf32>
    %cst_77 = arith.constant 1.000000e+00 : f32
    %225 = vector.broadcast %cst_77 : f32 to vector<64x256xf32>
    %226 = arith.addf %225, %224 : vector<64x256xf32>
    %cst_78 = arith.constant 5.000000e-01 : f32
    %227 = vector.broadcast %cst_78 : f32 to vector<64x256xf32>
    %228 = arith.mulf %227, %226 : vector<64x256xf32>
    %229 = arith.mulf %216, %228 : vector<64x256xf32>
    %230 = arith.truncf %229 : vector<64x256xf32> to vector<64x256xbf16>
    %c0_79 = arith.constant 0 : index
    %c0_80 = arith.constant 0 : index
    %c0_81 = arith.constant 0 : index
    %231 = vector.load %arg11[%c0_79, %c0_80, %c0_81] : memref<1x256x128xbf16, #tpu.memory_space<vmem>>, vector<1x256x128xbf16>
    %232 = vector.shape_cast %231 : vector<1x256x128xbf16> to vector<256x128xbf16>
    %cst_82 = arith.constant dense<0.000000e+00> : vector<64x128xf32>
    %233 = tpu.matmul %230, %232, %cst_82 {dimension_numbers = #tpu.dot_dimension_numbers<[1], [0], [0], [1], [0, 0, 1, 1], [], []>} : vector<64x256xbf16>, vector<256x128xbf16>, vector<64x128xf32> -> vector<64x128xf32>
    %c0_83 = arith.constant 0 : index
    %c0_84 = arith.constant 0 : index
    %c0_85 = arith.constant 0 : index
    %234 = vector.load %arg12[%c0_83, %c0_84, %c0_85] : memref<1x1x128xf32, #tpu.memory_space<vmem>>, vector<1x1x128xf32>
    %235 = vector.shape_cast %234 : vector<1x1x128xf32> to vector<1x128xf32>
    %236 = vector.broadcast %235 : vector<1x128xf32> to vector<64x128xf32>
    %237 = arith.addf %233, %236 : vector<64x128xf32>
    %238 = arith.addf %208, %237 : vector<64x128xf32>
    %c0_86 = arith.constant 0 : index
    %c0_87 = arith.constant 0 : index
    %c0_88 = arith.constant 0 : index
    %239 = vector.load %arg13[%c0_86, %c0_87, %c0_88] : memref<1x1x128xf32, #tpu.memory_space<vmem>>, vector<1x1x128xf32>
    %240 = vector.shape_cast %239 : vector<1x1x128xf32> to vector<1x128xf32>
    %c0_89 = arith.constant 0 : index
    %c0_90 = arith.constant 0 : index
    %c0_91 = arith.constant 0 : index
    %241 = vector.load %arg14[%c0_89, %c0_90, %c0_91] : memref<1x1x128xf32, #tpu.memory_space<vmem>>, vector<1x1x128xf32>
    %242 = vector.shape_cast %241 : vector<1x1x128xf32> to vector<1x128xf32>
    %cst_92 = arith.constant dense<0.000000e+00> : vector<64xf32>
    %243 = vector.multi_reduction <add>, %238, %cst_92 [1] : vector<64x128xf32> to vector<64xf32>
    %244 = vector.shape_cast %243 : vector<64xf32> to vector<64x1xf32>
    %cst_93 = arith.constant 1.280000e+02 : f32
    %245 = vector.broadcast %cst_93 : f32 to vector<64x1xf32>
    %246 = arith.divf %244, %245 : vector<64x1xf32>
    %247 = vector.broadcast %246 : vector<64x1xf32> to vector<64x128xf32>
    %248 = arith.subf %238, %247 : vector<64x128xf32>
    %249 = arith.mulf %248, %248 : vector<64x128xf32>
    %cst_94 = arith.constant dense<0.000000e+00> : vector<64xf32>
    %250 = vector.multi_reduction <add>, %249, %cst_94 [1] : vector<64x128xf32> to vector<64xf32>
    %251 = vector.shape_cast %250 : vector<64xf32> to vector<64x1xf32>
    %cst_95 = arith.constant 1.280000e+02 : f32
    %252 = vector.broadcast %cst_95 : f32 to vector<64x1xf32>
    %253 = arith.divf %251, %252 : vector<64x1xf32>
    %254 = vector.broadcast %246 : vector<64x1xf32> to vector<64x128xf32>
    %255 = arith.subf %238, %254 : vector<64x128xf32>
    %cst_96 = arith.constant 9.99999974E-6 : f32
    %256 = vector.broadcast %cst_96 : f32 to vector<64x1xf32>
    %257 = arith.addf %253, %256 : vector<64x1xf32>
    %258 = math.rsqrt %257 : vector<64x1xf32>
    %259 = vector.broadcast %258 : vector<64x1xf32> to vector<64x128xf32>
    %260 = arith.mulf %255, %259 : vector<64x128xf32>
    %261 = vector.broadcast %240 : vector<1x128xf32> to vector<64x128xf32>
    %262 = arith.mulf %260, %261 : vector<64x128xf32>
    %263 = vector.broadcast %242 : vector<1x128xf32> to vector<64x128xf32>
    %264 = arith.addf %262, %263 : vector<64x128xf32>
    %c0_97 = arith.constant 0 : index
    %c0_98 = arith.constant 0 : index
    %265 = vector.load %arg16[%c0_97, %c0_98] : memref<64x128xf32, #tpu.memory_space<vmem>>, vector<64x128xf32>
    tpu.vector_store %arg16[%c0_97, %c0_98], %264 {strides = array<i32>} : memref<64x128xf32, #tpu.memory_space<vmem>>, vector<64x128xf32>,
    %c1_i32 = arith.constant 1 : i32
    %266 = arith.cmpi eq, %arg1, %c1_i32 : i32
    %267 = arith.extui %266 : i1 to i32
    %c0_i32_99 = arith.constant 0 : i32
    %268 = arith.cmpi ne, %267, %c0_i32_99 : i32
    scf.if %268 {
      %269 = vector.shape_cast %264 : vector<64x128xf32> to vector<2x32x128xf32>
      %270 = arith.truncf %269 : vector<2x32x128xf32> to vector<2x32x128xbf16>
      %c0_100 = arith.constant 0 : index
      %c0_101 = arith.constant 0 : index
      %c0_102 = arith.constant 0 : index
      %271 = vector.load %arg15[%c0_100, %c0_101, %c0_102] : memref<2x32x128xbf16, #tpu.memory_space<vmem>>, vector<2x32x128xbf16>
      tpu.vector_store %arg15[%c0_100, %c0_101, %c0_102], %270 {strides = array<i32>} : memref<2x32x128xbf16, #tpu.memory_space<vmem>>, vector<2x32x128xbf16>,
    } else {
    }
    return
  }
  func.func @transform_0(%arg0: i32, %arg1: i32) -> (i32, i32, i32) {
    %c0_i32 = arith.constant 0 : i32
    %c0_i32_0 = arith.constant 0 : i32
    %c0_i32_1 = arith.constant 0 : i32
    return %arg0, %c0_i32, %c0_i32_0 : i32, i32, i32
  }
  func.func @transform_1(%arg0: i32, %arg1: i32) -> (i32, i32, i32) {
    %c0_i32 = arith.constant 0 : i32
    %c0_i32_0 = arith.constant 0 : i32
    %c0_i32_1 = arith.constant 0 : i32
    return %arg1, %c0_i32, %c0_i32_0 : i32, i32, i32
  }
  func.func @transform_2(%arg0: i32, %arg1: i32) -> (i32, i32, i32) {
    %c0_i32 = arith.constant 0 : i32
    %c0_i32_0 = arith.constant 0 : i32
    %c0_i32_1 = arith.constant 0 : i32
    return %arg1, %c0_i32, %c0_i32_0 : i32, i32, i32
  }
  func.func @transform_3(%arg0: i32, %arg1: i32) -> (i32, i32, i32) {
    %c0_i32 = arith.constant 0 : i32
    %c0_i32_0 = arith.constant 0 : i32
    %c0_i32_1 = arith.constant 0 : i32
    return %arg1, %c0_i32, %c0_i32_0 : i32, i32, i32
  }
  func.func @transform_4(%arg0: i32, %arg1: i32) -> (i32, i32, i32) {
    %c0_i32 = arith.constant 0 : i32
    %c0_i32_0 = arith.constant 0 : i32
    %c0_i32_1 = arith.constant 0 : i32
    return %arg1, %c0_i32, %c0_i32_0 : i32, i32, i32
  }
  func.func @transform_5(%arg0: i32, %arg1: i32) -> (i32, i32, i32) {
    %c0_i32 = arith.constant 0 : i32
    %c0_i32_0 = arith.constant 0 : i32
    %c0_i32_1 = arith.constant 0 : i32
    return %arg1, %c0_i32, %c0_i32_0 : i32, i32, i32
  }
  func.func @transform_6(%arg0: i32, %arg1: i32) -> (i32, i32, i32) {
    %c0_i32 = arith.constant 0 : i32
    %c0_i32_0 = arith.constant 0 : i32
    %c0_i32_1 = arith.constant 0 : i32
    return %arg1, %c0_i32, %c0_i32_0 : i32, i32, i32
  }
  func.func @transform_7(%arg0: i32, %arg1: i32) -> (i32, i32, i32) {
    %c0_i32 = arith.constant 0 : i32
    %c0_i32_0 = arith.constant 0 : i32
    %c0_i32_1 = arith.constant 0 : i32
    return %arg1, %c0_i32, %c0_i32_0 : i32, i32, i32
  }
  func.func @transform_8(%arg0: i32, %arg1: i32) -> (i32, i32, i32) {
    %c0_i32 = arith.constant 0 : i32
    %c0_i32_0 = arith.constant 0 : i32
    %c0_i32_1 = arith.constant 0 : i32
    return %arg1, %c0_i32, %c0_i32_0 : i32, i32, i32
  }
  func.func @transform_9(%arg0: i32, %arg1: i32) -> (i32, i32, i32) {
    %c0_i32 = arith.constant 0 : i32
    %c0_i32_0 = arith.constant 0 : i32
    %c0_i32_1 = arith.constant 0 : i32
    return %arg1, %c0_i32, %c0_i32_0 : i32, i32, i32
  }
  func.func @transform_10(%arg0: i32, %arg1: i32) -> (i32, i32, i32) {
    %c0_i32 = arith.constant 0 : i32
    %c0_i32_0 = arith.constant 0 : i32
    %c0_i32_1 = arith.constant 0 : i32
    return %arg1, %c0_i32, %c0_i32_0 : i32, i32, i32
  }
  func.func @transform_11(%arg0: i32, %arg1: i32) -> (i32, i32, i32) {
    %c0_i32 = arith.constant 0 : i32
    %c0_i32_0 = arith.constant 0 : i32
    %c0_i32_1 = arith.constant 0 : i32
    return %arg1, %c0_i32, %c0_i32_0 : i32, i32, i32
  }
  func.func @transform_12(%arg0: i32, %arg1: i32) -> (i32, i32, i32) {
    %c0_i32 = arith.constant 0 : i32
    %c0_i32_0 = arith.constant 0 : i32
    %c0_i32_1 = arith.constant 0 : i32
    return %arg1, %c0_i32, %c0_i32_0 : i32, i32, i32
  }
  func.func @transform_13(%arg0: i32, %arg1: i32) -> (i32, i32, i32) {
    %c0_i32 = arith.constant 0 : i32
    %c0_i32_0 = arith.constant 0 : i32
    %c0_i32_1 = arith.constant 0 : i32
    return %arg0, %c0_i32, %c0_i32_0 : i32, i32, i32
  }
}

</mosaic_0001>

<llo_original>
// kernel: tpu_custom_call.1
$region0: #{tpu_custom_call.1}
  #allocation0 [shape = 'u32[]', space=smem, size = 0x4, offset = 0x4, fixed_abs, tag = 'smem constant byte address 0x4 - core index']
  #allocation1 [shape = 'u32[144,128]{1,0:T(1,128)}', space=vmem, size = 0x12000, scoped, tag = 'internal scratch']
  #allocation2 [shape = 'f32[64,128]{1,0:T(8,128)}', space=vmem, size = 0x8000, scoped, tag = 'scratch operand']
  %s0 = inlined_call_operand.hbm [shape: f32[4,32,128], index: 0, kind: input, shape index: {}]
  %s1 = inlined_call_operand.hbm [shape: bf16[2,128,384], index: 1, kind: input, shape index: {}]
  %s2 = inlined_call_operand.vmem [shape: f32[2,1,384], index: 2, kind: input, shape index: {}]
  %s3 = inlined_call_operand.hbm [shape: bf16[2,128,128], index: 3, kind: input, shape index: {}]
  %s4 = inlined_call_operand.vmem [shape: f32[2,1,128], index: 4, kind: input, shape index: {}]
  %s5 = inlined_call_operand.vmem [shape: f32[2,1,128], index: 5, kind: input, shape index: {}]
  %s6 = inlined_call_operand.vmem [shape: f32[2,1,128], index: 6, kind: input, shape index: {}]
  %s7 = inlined_call_operand.hbm [shape: bf16[2,128,256], index: 7, kind: input, shape index: {}]
  %s8 = inlined_call_operand.vmem [shape: f32[2,1,256], index: 8, kind: input, shape index: {}]
  %s9 = inlined_call_operand.hbm [shape: bf16[2,256,128], index: 9, kind: input, shape index: {}]
  %s10 = inlined_call_operand.vmem [shape: f32[2,1,128], index: 10, kind: input, shape index: {}]
  %s11 = inlined_call_operand.vmem [shape: f32[2,1,128], index: 11, kind: input, shape index: {}]
  %s12 = inlined_call_operand.vmem [shape: f32[2,1,128], index: 12, kind: input, shape index: {}]
  %s13 = inlined_call_operand.hbm [shape: bf16[4,32,128], index: 13, kind: output, shape index: {}]
  %s14 = sld [smem:[#allocation0]]
  $region113: #{tpu_custom_call.1} parent=0
    _
  %s16 = ssub.s32 1, %s14
  %s17 = scalar_select 0, %s16, %s14
  $region1: #{tpu_custom_call.1} parent=0
    #allocation3 [shape = 'u8[65536]{0}', space=vmem, size = 0x10000, scoped, tag = 'input window, operand 0']
    #allocation4 [shape = 's32[2]{0}', space=sflag, size = 0x8, scoped, tag = 'scoped memory for tpu_custom_call.1']
    #allocation5 [shape = 's32[2]{0}', space=sflag, size = 0x8, scoped, tag = 'scoped memory for tpu_custom_call.1']
    #allocation6 [shape = 'u8[196608]{0}', space=vmem, size = 0x30000, scoped, tag = 'input window, operand 1']
    #allocation7 [shape = 's32[2]{0}', space=sflag, size = 0x8, scoped, tag = 'scoped memory for tpu_custom_call.1']
    #allocation8 [shape = 'u8[65536]{0}', space=vmem, size = 0x10000, scoped, tag = 'input window, operand 3']
    #allocation9 [shape = 'u8[131072]{0}', space=vmem, size = 0x20000, scoped, tag = 'input window, operand 7']
    #allocation10 [shape = 's32[2]{0}', space=sflag, size = 0x8, scoped, tag = 'scoped memory for tpu_custom_call.1']
    #allocation11 [shape = 'u8[131072]{0}', space=vmem, size = 0x20000, scoped, tag = 'input window, operand 9']
    #allocation12 [shape = 'u8[32768]{0}', space=vmem, size = 0x8000, scoped, tag = 'output window, operand 0']
    %18 = vsyncpa [#allocation4], 0
    %s19 = scalar_lea.sflag [#allocation4], 1
    %20 = vsyncpa %s19, 0
    %21 = vsyncpa [#allocation7], 0
    %s22 = scalar_lea.sflag [#allocation7], 1
    %23 = vsyncpa %s22, 0
    %24 = vsyncpa [#allocation10], 0
    %s25 = scalar_lea.sflag [#allocation10], 1
    %26 = vsyncpa %s25, 0
    %27 = vsyncpa [#allocation5], 0
    %s28 = scalar_lea.sflag [#allocation5], 1
    %29 = vsyncpa %s28, 0
    loop: start=0, step=1, limit=6
    $region2: #{tpu_custom_call.1} parent=1 // loop_pre_header
      _
    $region3: #{tpu_custom_call.1} parent=1 // loop_header
      %s31 = sphi 0, %s35
      %p32 = scmp.ge.s32.totalorder %s31, 6
      %s38 = sphi 0, %s50
      %s39 = sphi 0, %s46
      %s40 = sphi 0, %s38
      %s41 = sphi 0, %s39
      %s42 = sphi 0, %s40
      %s43 = sphi 0, %s41
      %s53 = sphi 0, %s55
      %s56 = sphi 0, %s53
      %s57 = sphi 0, %s56
      %s73 = sphi 0, %s57
      %s79 = sphi 0, %s81
      %s82 = sphi 0, %s79
      %s83 = sphi 0, %s82
      %s99 = sphi 0, %s83
      %s105 = sphi 0, %s107
      %s108 = sphi 0, %s105
      %s109 = sphi 0, %s108
      %s125 = sphi 0, %s109
      %s131 = sphi 0, %s133
      %s134 = sphi 0, %s131
      %s135 = sphi 0, %s134
      %s151 = sphi 0, %s135
      %s157 = sphi 0, %s159
      %s160 = sphi 0, %s157
      %s161 = sphi 0, %s160
      %s177 = sphi 0, %s161
      %s183 = sphi 0, %s185
      %s186 = sphi 0, %s183
      %s187 = sphi 0, %s186
      %s203 = sphi 0, %s187
      %s209 = sphi 0, %s211
      %s212 = sphi 0, %s209
      %s213 = sphi 0, %s212
      %s229 = sphi 0, %s213
      %s235 = sphi 0, %s237
      %s238 = sphi 0, %s235
      %s239 = sphi 0, %s238
      %s255 = sphi 0, %s239
      %s261 = sphi 0, %s263
      %s264 = sphi 0, %s261
      %s265 = sphi 0, %s264
      %s281 = sphi 0, %s265
      %s287 = sphi 0, %s289
      %s290 = sphi 0, %s287
      %s291 = sphi 0, %s290
      %s307 = sphi 0, %s291
      %s313 = sphi 0, %s315
      %s316 = sphi 0, %s313
      %s317 = sphi 0, %s316
      %s333 = sphi 0, %s317
      %s339 = sphi 0, %s341
      %s342 = sphi 0, %s339
      %s343 = sphi 0, %s342
      %s359 = sphi 0, %s343
      %s365 = sphi 0, %s367
      %s368 = sphi 0, %s365
      %s369 = sphi 0, %s368
      %s385 = sphi 0, %s369
      %s391 = sphi 0, %s393
      %s394 = sphi 0, %s391
      %s395 = sphi 0, %s394
      %s411 = sphi 0, %s395
    $region4: #{tpu_custom_call.1} parent=1 // loop_header_branch
      %34 = sbr.rel (%p32) target = $region8
    $region5: #{tpu_custom_call.1} parent=1 // loop_body
      %s36 = ssub.s32 %s31, 1
      %s37 = ssub.s32 %s31, 2
      %s44 = sadd.s32 1, %s39
      %p45 = scmp.ge.s32.totalorder %s44, 2
      %s46 = scalar_select %p45, 0, %s44
      %s47 = sadd.s32 1, %s38
      %s48 = scalar_select %p45, %s47, %s38
      %p49 = scmp.ge.s32.totalorder %s48, 2
      %s50 = scalar_select %p49, 0, %s48
      %s51 = ssub.s32 %s38, %s50
      %p52 = scmp.eq.s32.totalorder %s51, 0
      %s54 = sadd.s32 %s53, 1
      %s55 = scalar_select %p52, %s53, %s54
      %p58 = pneg %p52
      %p59 = scmp.eq.s32.totalorder %s31, 3
      %p60 = por %p58, %p59
      %p61 = scmp.ne.s32.totalorder %s53, %s56
      %p62 = scmp.eq.s32.totalorder %s31, 0
      %p63 = por %p61, %p62
      %p64 = scmp.ne.s32.totalorder %s53, %s56
      %p65 = scmp.eq.s32.totalorder %s36, 3
      %p66 = por %p64, %p65
      %p67 = scmp.ne.s32.totalorder %s56, %s57
      %p68 = scmp.eq.s32.totalorder %s36, 0
      %p69 = por %p67, %p68
      %p70 = scmp.ne.s32.totalorder %s56, %s57
      %p71 = scmp.eq.s32.totalorder %s37, 3
      %p72 = por %p70, %p71
      %p74 = scmp.ne.s32.totalorder %s57, %s73
      %p75 = scmp.eq.s32.totalorder %s37, 0
      %p76 = por %p74, %p75
      %s77 = ssub.s32 %s39, %s46
      %p78 = scmp.eq.s32.totalorder %s77, 0
      %s80 = sadd.s32 %s79, 1
      %s81 = scalar_select %p78, %s79, %s80
      %p84 = pneg %p78
      %p85 = scmp.eq.s32.totalorder %s31, 3
      %p86 = por %p84, %p85
      %p87 = scmp.ne.s32.totalorder %s79, %s82
      %p88 = scmp.eq.s32.totalorder %s31, 0
      %p89 = por %p87, %p88
      %p90 = scmp.ne.s32.totalorder %s79, %s82
      %p91 = scmp.eq.s32.totalorder %s36, 3
      %p92 = por %p90, %p91
      %p93 = scmp.ne.s32.totalorder %s82, %s83
      %p94 = scmp.eq.s32.totalorder %s36, 0
      %p95 = por %p93, %p94
      %p96 = scmp.ne.s32.totalorder %s82, %s83
      %p97 = scmp.eq.s32.totalorder %s37, 3
      %p98 = por %p96, %p97
      %p100 = scmp.ne.s32.totalorder %s83, %s99
      %p101 = scmp.eq.s32.totalorder %s37, 0
      %p102 = por %p100, %p101
      %s103 = ssub.s32 %s39, %s46
      %p104 = scmp.eq.s32.totalorder %s103, 0
      %s106 = sadd.s32 %s105, 1
      %s107 = scalar_select %p104, %s105, %s106
      %p110 = pneg %p104
      %p111 = scmp.eq.s32.totalorder %s31, 3
      %p112 = por %p110, %p111
      %p113 = scmp.ne.s32.totalorder %s105, %s108
      %p114 = scmp.eq.s32.totalorder %s31, 0
      %p115 = por %p113, %p114
      %p116 = scmp.ne.s32.totalorder %s105, %s108
      %p117 = scmp.eq.s32.totalorder %s36, 3
      %p118 = por %p116, %p117
      %p119 = scmp.ne.s32.totalorder %s108, %s109
      %p120 = scmp.eq.s32.totalorder %s36, 0
      %p121 = por %p119, %p120
      %p122 = scmp.ne.s32.totalorder %s108, %s109
      %p123 = scmp.eq.s32.totalorder %s37, 3
      %p124 = por %p122, %p123
      %p126 = scmp.ne.s32.totalorder %s109, %s125
      %p127 = scmp.eq.s32.totalorder %s37, 0
      %p128 = por %p126, %p127
      %s129 = ssub.s32 %s39, %s46
      %p130 = scmp.eq.s32.totalorder %s129, 0
      %s132 = sadd.s32 %s131, 1
      %s133 = scalar_select %p130, %s131, %s132
      %p136 = pneg %p130
      %p137 = scmp.eq.s32.totalorder %s31, 3
      %p138 = por %p136, %p137
      %p139 = scmp.ne.s32.totalorder %s131, %s134
      %p140 = scmp.eq.s32.totalorder %s31, 0
      %p141 = por %p139, %p140
      %p142 = scmp.ne.s32.totalorder %s131, %s134
      %p143 = scmp.eq.s32.totalorder %s36, 3
      %p144 = por %p142, %p143
      %p145 = scmp.ne.s32.totalorder %s134, %s135
      %p146 = scmp.eq.s32.totalorder %s36, 0
      %p147 = por %p145, %p146
      %p148 = scmp.ne.s32.totalorder %s134, %s135
      %p149 = scmp.eq.s32.totalorder %s37, 3
      %p150 = por %p148, %p149
      %p152 = scmp.ne.s32.totalorder %s135, %s151
      %p153 = scmp.eq.s32.totalorder %s37, 0
      %p154 = por %p152, %p153
      %s155 = ssub.s32 %s39, %s46
      %p156 = scmp.eq.s32.totalorder %s155, 0
      %s158 = sadd.s32 %s157, 1
      %s159 = scalar_select %p156, %s157, %s158
      %p162 = pneg %p156
      %p163 = scmp.eq.s32.totalorder %s31, 3
      %p164 = por %p162, %p163
      %p165 = scmp.ne.s32.totalorder %s157, %s160
      %p166 = scmp.eq.s32.totalorder %s31, 0
      %p167 = por %p165, %p166
      %p168 = scmp.ne.s32.totalorder %s157, %s160
      %p169 = scmp.eq.s32.totalorder %s36, 3
      %p170 = por %p168, %p169
      %p171 = scmp.ne.s32.totalorder %s160, %s161
      %p172 = scmp.eq.s32.totalorder %s36, 0
      %p173 = por %p171, %p172
      %p174 = scmp.ne.s32.totalorder %s160, %s161
      %p175 = scmp.eq.s32.totalorder %s37, 3
      %p176 = por %p174, %p175
      %p178 = scmp.ne.s32.totalorder %s161, %s177
      %p179 = scmp.eq.s32.totalorder %s37, 0
      %p180 = por %p178, %p179
      %s181 = ssub.s32 %s39, %s46
      %p182 = scmp.eq.s32.totalorder %s181, 0
      %s184 = sadd.s32 %s183, 1
      %s185 = scalar_select %p182, %s183, %s184
      %p188 = pneg %p182
      %p189 = scmp.eq.s32.totalorder %s31, 3
      %p190 = por %p188, %p189
      %p191 = scmp.ne.s32.totalorder %s183, %s186
      %p192 = scmp.eq.s32.totalorder %s31, 0
      %p193 = por %p191, %p192
      %p194 = scmp.ne.s32.totalorder %s183, %s186
      %p195 = scmp.eq.s32.totalorder %s36, 3
      %p196 = por %p194, %p195
      %p197 = scmp.ne.s32.totalorder %s186, %s187
      %p198 = scmp.eq.s32.totalorder %s36, 0
      %p199 = por %p197, %p198
      %p200 = scmp.ne.s32.totalorder %s186, %s187
      %p201 = scmp.eq.s32.totalorder %s37, 3
      %p202 = por %p200, %p201
      %p204 = scmp.ne.s32.totalorder %s187, %s203
      %p205 = scmp.eq.s32.totalorder %s37, 0
      %p206 = por %p204, %p205
      %s207 = ssub.s32 %s39, %s46
      %p208 = scmp.eq.s32.totalorder %s207, 0
      %s210 = sadd.s32 %s209, 1
      %s211 = scalar_select %p208, %s209, %s210
      %p214 = pneg %p208
      %p215 = scmp.eq.s32.totalorder %s31, 3
      %p216 = por %p214, %p215
      %p217 = scmp.ne.s32.totalorder %s209, %s212
      %p218 = scmp.eq.s32.totalorder %s31, 0
      %p219 = por %p217, %p218
      %p220 = scmp.ne.s32.totalorder %s209, %s212
      %p221 = scmp.eq.s32.totalorder %s36, 3
      %p222 = por %p220, %p221
      %p223 = scmp.ne.s32.totalorder %s212, %s213
      %p224 = scmp.eq.s32.totalorder %s36, 0
      %p225 = por %p223, %p224
      %p226 = scmp.ne.s32.totalorder %s212, %s213
      %p227 = scmp.eq.s32.totalorder %s37, 3
      %p228 = por %p226, %p227
      %p230 = scmp.ne.s32.totalorder %s213, %s229
      %p231 = scmp.eq.s32.totalorder %s37, 0
      %p232 = por %p230, %p231
      %s233 = ssub.s32 %s39, %s46
      %p234 = scmp.eq.s32.totalorder %s233, 0
      %s236 = sadd.s32 %s235, 1
      %s237 = scalar_select %p234, %s235, %s236
      %p240 = pneg %p234
      %p241 = scmp.eq.s32.totalorder %s31, 3
      %p242 = por %p240, %p241
      %p243 = scmp.ne.s32.totalorder %s235, %s238
      %p244 = scmp.eq.s32.totalorder %s31, 0
      %p245 = por %p243, %p244
      %p246 = scmp.ne.s32.totalorder %s235, %s238
      %p247 = scmp.eq.s32.totalorder %s36, 3
      %p248 = por %p246, %p247
      %p249 = scmp.ne.s32.totalorder %s238, %s239
      %p250 = scmp.eq.s32.totalorder %s36, 0
      %p251 = por %p249, %p250
      %p252 = scmp.ne.s32.totalorder %s238, %s239
      %p253 = scmp.eq.s32.totalorder %s37, 3
      %p254 = por %p252, %p253
      %p256 = scmp.ne.s32.totalorder %s239, %s255
      %p257 = scmp.eq.s32.totalorder %s37, 0
      %p258 = por %p256, %p257
      %s259 = ssub.s32 %s39, %s46
      %p260 = scmp.eq.s32.totalorder %s259, 0
      %s262 = sadd.s32 %s261, 1
      %s263 = scalar_select %p260, %s261, %s262
      %p266 = pneg %p260
      %p267 = scmp.eq.s32.totalorder %s31, 3
      %p268 = por %p266, %p267
      %p269 = scmp.ne.s32.totalorder %s261, %s264
      %p270 = scmp.eq.s32.totalorder %s31, 0
      %p271 = por %p269, %p270
      %p272 = scmp.ne.s32.totalorder %s261, %s264
      %p273 = scmp.eq.s32.totalorder %s36, 3
      %p274 = por %p272, %p273
      %p275 = scmp.ne.s32.totalorder %s264, %s265
      %p276 = scmp.eq.s32.totalorder %s36, 0
      %p277 = por %p275, %p276
      %p278 = scmp.ne.s32.totalorder %s264, %s265
      %p279 = scmp.eq.s32.totalorder %s37, 3
      %p280 = por %p278, %p279
      %p282 = scmp.ne.s32.totalorder %s265, %s281
      %p283 = scmp.eq.s32.totalorder %s37, 0
      %p284 = por %p282, %p283
      %s285 = ssub.s32 %s39, %s46
      %p286 = scmp.eq.s32.totalorder %s285, 0
      %s288 = sadd.s32 %s287, 1
      %s289 = scalar_select %p286, %s287, %s288
      %p292 = pneg %p286
      %p293 = scmp.eq.s32.totalorder %s31, 3
      %p294 = por %p292, %p293
      %p295 = scmp.ne.s32.totalorder %s287, %s290
      %p296 = scmp.eq.s32.totalorder %s31, 0
      %p297 = por %p295, %p296
      %p298 = scmp.ne.s32.totalorder %s287, %s290
      %p299 = scmp.eq.s32.totalorder %s36, 3
      %p300 = por %p298, %p299
      %p301 = scmp.ne.s32.totalorder %s290, %s291
      %p302 = scmp.eq.s32.totalorder %s36, 0
      %p303 = por %p301, %p302
      %p304 = scmp.ne.s32.totalorder %s290, %s291
      %p305 = scmp.eq.s32.totalorder %s37, 3
      %p306 = por %p304, %p305
      %p308 = scmp.ne.s32.totalorder %s291, %s307
      %p309 = scmp.eq.s32.totalorder %s37, 0
      %p310 = por %p308, %p309
      %s311 = ssub.s32 %s39, %s46
      %p312 = scmp.eq.s32.totalorder %s311, 0
      %s314 = sadd.s32 %s313, 1
      %s315 = scalar_select %p312, %s313, %s314
      %p318 = pneg %p312
      %p319 = scmp.eq.s32.totalorder %s31, 3
      %p320 = por %p318, %p319
      %p321 = scmp.ne.s32.totalorder %s313, %s316
      %p322 = scmp.eq.s32.totalorder %s31, 0
      %p323 = por %p321, %p322
      %p324 = scmp.ne.s32.totalorder %s313, %s316
      %p325 = scmp.eq.s32.totalorder %s36, 3
      %p326 = por %p324, %p325
      %p327 = scmp.ne.s32.totalorder %s316, %s317
      %p328 = scmp.eq.s32.totalorder %s36, 0
      %p329 = por %p327, %p328
      %p330 = scmp.ne.s32.totalorder %s316, %s317
      %p331 = scmp.eq.s32.totalorder %s37, 3
      %p332 = por %p330, %p331
      %p334 = scmp.ne.s32.totalorder %s317, %s333
      %p335 = scmp.eq.s32.totalorder %s37, 0
      %p336 = por %p334, %p335
      %s337 = ssub.s32 %s39, %s46
      %p338 = scmp.eq.s32.totalorder %s337, 0
      %s340 = sadd.s32 %s339, 1
      %s341 = scalar_select %p338, %s339, %s340
      %p344 = pneg %p338
      %p345 = scmp.eq.s32.totalorder %s31, 3
      %p346 = por %p344, %p345
      %p347 = scmp.ne.s32.totalorder %s339, %s342
      %p348 = scmp.eq.s32.totalorder %s31, 0
      %p349 = por %p347, %p348
      %p350 = scmp.ne.s32.totalorder %s339, %s342
      %p351 = scmp.eq.s32.totalorder %s36, 3
      %p352 = por %p350, %p351
      %p353 = scmp.ne.s32.totalorder %s342, %s343
      %p354 = scmp.eq.s32.totalorder %s36, 0
      %p355 = por %p353, %p354
      %p356 = scmp.ne.s32.totalorder %s342, %s343
      %p357 = scmp.eq.s32.totalorder %s37, 3
      %p358 = por %p356, %p357
      %p360 = scmp.ne.s32.totalorder %s343, %s359
      %p361 = scmp.eq.s32.totalorder %s37, 0
      %p362 = por %p360, %p361
      %s363 = ssub.s32 %s39, %s46
      %p364 = scmp.eq.s32.totalorder %s363, 0
      %s366 = sadd.s32 %s365, 1
      %s367 = scalar_select %p364, %s365, %s366
      %p370 = pneg %p364
      %p371 = scmp.eq.s32.totalorder %s31, 3
      %p372 = por %p370, %p371
      %p373 = scmp.ne.s32.totalorder %s365, %s368
      %p374 = scmp.eq.s32.totalorder %s31, 0
      %p375 = por %p373, %p374
      %p376 = scmp.ne.s32.totalorder %s365, %s368
      %p377 = scmp.eq.s32.totalorder %s36, 3
      %p378 = por %p376, %p377
      %p379 = scmp.ne.s32.totalorder %s368, %s369
      %p380 = scmp.eq.s32.totalorder %s36, 0
      %p381 = por %p379, %p380
      %p382 = scmp.ne.s32.totalorder %s368, %s369
      %p383 = scmp.eq.s32.totalorder %s37, 3
      %p384 = por %p382, %p383
      %p386 = scmp.ne.s32.totalorder %s369, %s385
      %p387 = scmp.eq.s32.totalorder %s37, 0
      %p388 = por %p386, %p387
      %s389 = ssub.s32 %s38, %s50
      %p390 = scmp.eq.s32.totalorder %s389, 0
      %s392 = sadd.s32 %s391, 1
      %s393 = scalar_select %p390, %s391, %s392
      %p396 = pneg %p390
      %p397 = scmp.eq.s32.totalorder %s31, 3
      %p398 = por %p396, %p397
      %p399 = scmp.ne.s32.totalorder %s391, %s394
      %p400 = scmp.eq.s32.totalorder %s31, 0
      %p401 = por %p399, %p400
      %p402 = scmp.ne.s32.totalorder %s391, %s394
      %p403 = scmp.eq.s32.totalorder %s36, 3
      %p404 = por %p402, %p403
      %p405 = scmp.ne.s32.totalorder %s394, %s395
      %p406 = scmp.eq.s32.totalorder %s36, 0
      %p407 = por %p405, %p406
      %p408 = scmp.ne.s32.totalorder %s394, %s395
      %p409 = scmp.eq.s32.totalorder %s37, 3
      %p410 = por %p408, %p409
      %p412 = scmp.ne.s32.totalorder %s395, %s411
      %p413 = scmp.eq.s32.totalorder %s37, 0
      %p414 = por %p412, %p413
      %p415 = scmp.le.s32.totalorder 1, %s31
      %p416 = scmp.lt.s32.totalorder %s31, 5
      %p417 = pnand %p415, %p416
      %p418 = pneg %p417
      // Predicated region
      $region9: #{tpu_custom_call.1} parent=5 // pred_check
        _
      $region10: #{tpu_custom_call.1} parent=5 // pred_check_branch
        %420 = sbr.rel (%p417) target = $region12
      $region11: #{tpu_custom_call.1} parent=5 // pred_region
        %s421 = ssub.s32 %s31, 1
      $region12: #{tpu_custom_call.1} parent=5 // pred_fallthru
        _
      %p422 = scmp.lt.s32.totalorder %s31, 4
      // Predicated region
      $region13: #{tpu_custom_call.1} parent=5 // pred_check
        %p423 = pneg %p422
      $region14: #{tpu_custom_call.1} parent=5 // pred_check_branch
        %425 = sbr.rel (%p423) target = $region16
      $region15: #{tpu_custom_call.1} parent=5 // pred_region
        // Predicated region
        $region17: #{tpu_custom_call.1} parent=15 // pred_check
          %p426 = pneg %p63
        $region18: #{tpu_custom_call.1} parent=15 // pred_check_branch
          %428 = sbr.rel (%p426) target = $region20
        $region19: #{tpu_custom_call.1} parent=15 // pred_region
          %s429 = sand.u32 %s53, 1
          %s430 = scalar_lea.sflag [#allocation4], %s429
          %s431 = sand.u32 %s53, 1
          %s432 = smul.addr %s431, 64
          %s433 = scalar_lea.vmem [#allocation3], %s432
          %s434 = smul.u32 2, %s38
          %s436 = ssub.s32 1024, 1024
          %437 = vsyncadd %s430, %s436
          %s438 = smul.addr %s434, 4
          %s439 = smul.addr %s438, 128
          %s440 = scalar_lea.hbm %s0, %s439
          %s441 = sshll.u32 %s433, 4
          %s442 = int_to_ptr.vmem [resolvable:$true] %s441
          %447 = dma.hbm_to_vmem [thread:$0]  %s440, 1024, %s442, %s430, 128, 128, 8
        $region20: #{tpu_custom_call.1} parent=15 // pred_fallthru
          _
        // Predicated region
        $region21: #{tpu_custom_call.1} parent=15 // pred_check
          %p448 = pneg %p89
        $region22: #{tpu_custom_call.1} parent=15 // pred_check_branch
          %450 = sbr.rel (%p448) target = $region24
        $region23: #{tpu_custom_call.1} parent=15 // pred_region
          %s451 = sand.u32 %s31, 1
          %s452 = scalar_lea.sflag [#allocation7], %s451
          %s453 = sand.u32 %s79, 1
          %s454 = smul.addr %s453, 192
          %s455 = scalar_lea.vmem [#allocation6], %s454
          %s457 = ssub.s32 3072, 3072
          %458 = vsyncadd %s452, %s457
          %s459 = smul.addr %s39, 48
          %s460 = smul.addr %s459, 64
          %s461 = scalar_lea.hbm %s1, %s460
          %s462 = sshll.u32 %s455, 4
          %s463 = int_to_ptr.vmem [resolvable:$true] %s462
          %468 = dma.hbm_to_vmem [thread:$0]  %s461, 3072, %s463, %s452, 192, 192, 12
        $region24: #{tpu_custom_call.1} parent=15 // pred_fallthru
          _
        // Predicated region
        $region25: #{tpu_custom_call.1} parent=15 // pred_check
          %p469 = pneg %p115
        $region26: #{tpu_custom_call.1} parent=15 // pred_check_branch
          %471 = sbr.rel (%p469) target = $region28
        $region27: #{tpu_custom_call.1} parent=15 // pred_region
          %p472 = scmp.lt.s32.totalorder %s39, 1
          %s473 = scalar_select %p472, %s39, 1
          %s474 = smul.addr %s473, 3
          %s475 = scalar_lea.vmem %s2, %s474
        $region28: #{tpu_custom_call.1} parent=15 // pred_fallthru
          _
        // Predicated region
        $region29: #{tpu_custom_call.1} parent=15 // pred_check
          %p476 = pneg %p141
        $region30: #{tpu_custom_call.1} parent=15 // pred_check_branch
          %478 = sbr.rel (%p476) target = $region32
        $region31: #{tpu_custom_call.1} parent=15 // pred_region
          %s479 = sand.u32 %s31, 1
          %s480 = scalar_lea.sflag [#allocation7], %s479
          %s481 = sand.u32 %s131, 1
          %s482 = smul.addr %s481, 64
          %s483 = scalar_lea.vmem [#allocation8], %s482
          %s485 = ssub.s32 1024, 1024
          %486 = vsyncadd %s480, %s485
          %s487 = smul.addr %s39, 16
          %s488 = smul.addr %s487, 64
          %s489 = scalar_lea.hbm %s3, %s488
          %s490 = sshll.u32 %s483, 4
          %s491 = int_to_ptr.vmem [resolvable:$true] %s490
          %496 = dma.hbm_to_vmem [thread:$0]  %s489, 1024, %s491, %s480, 64, 64, 4
        $region32: #{tpu_custom_call.1} parent=15 // pred_fallthru
          _
        // Predicated region
        $region33: #{tpu_custom_call.1} parent=15 // pred_check
          %p497 = pneg %p167
        $region34: #{tpu_custom_call.1} parent=15 // pred_check_branch
          %499 = sbr.rel (%p497) target = $region36
        $region35: #{tpu_custom_call.1} parent=15 // pred_region
          %p500 = scmp.lt.s32.totalorder %s39, 1
          %s501 = scalar_select %p500, %s39, 1
          %s502 = scalar_lea.vmem %s4, %s501
        $region36: #{tpu_custom_call.1} parent=15 // pred_fallthru
          _
        // Predicated region
        $region37: #{tpu_custom_call.1} parent=15 // pred_check
          %p503 = pneg %p193
        $region38: #{tpu_custom_call.1} parent=15 // pred_check_branch
          %505 = sbr.rel (%p503) target = $region40
        $region39: #{tpu_custom_call.1} parent=15 // pred_region
          %p506 = scmp.lt.s32.totalorder %s39, 1
          %s507 = scalar_select %p506, %s39, 1
          %s508 = scalar_lea.vmem %s5, %s507
        $region40: #{tpu_custom_call.1} parent=15 // pred_fallthru
          _
        // Predicated region
        $region41: #{tpu_custom_call.1} parent=15 // pred_check
          %p509 = pneg %p219
        $region42: #{tpu_custom_call.1} parent=15 // pred_check_branch
          %511 = sbr.rel (%p509) target = $region44
        $region43: #{tpu_custom_call.1} parent=15 // pred_region
          %p512 = scmp.lt.s32.totalorder %s39, 1
          %s513 = scalar_select %p512, %s39, 1
          %s514 = scalar_lea.vmem %s6, %s513
        $region44: #{tpu_custom_call.1} parent=15 // pred_fallthru
          _
        // Predicated region
        $region45: #{tpu_custom_call.1} parent=15 // pred_check
          %p515 = pneg %p245
        $region46: #{tpu_custom_call.1} parent=15 // pred_check_branch
          %517 = sbr.rel (%p515) target = $region48
        $region47: #{tpu_custom_call.1} parent=15 // pred_region
          %s518 = sand.u32 %s31, 1
          %s519 = scalar_lea.sflag [#allocation10], %s518
          %s520 = sand.u32 %s235, 1
          %s521 = smul.addr %s520, 128
          %s522 = scalar_lea.vmem [#allocation9], %s521
          %s524 = ssub.s32 2048, 2048
          %525 = vsyncadd %s519, %s524
          %s526 = smul.addr %s39, 32
          %s527 = smul.addr %s526, 64
          %s528 = scalar_lea.hbm %s7, %s527
          %s529 = sshll.u32 %s522, 4
          %s530 = int_to_ptr.vmem [resolvable:$true] %s529
          %535 = dma.hbm_to_vmem [thread:$0]  %s528, 2048, %s530, %s519, 128, 128, 8
        $region48: #{tpu_custom_call.1} parent=15 // pred_fallthru
          _
        // Predicated region
        $region49: #{tpu_custom_call.1} parent=15 // pred_check
          %p536 = pneg %p271
        $region50: #{tpu_custom_call.1} parent=15 // pred_check_branch
          %538 = sbr.rel (%p536) target = $region52
        $region51: #{tpu_custom_call.1} parent=15 // pred_region
          %p539 = scmp.lt.s32.totalorder %s39, 1
          %s540 = scalar_select %p539, %s39, 1
          %s541 = smul.addr %s540, 2
          %s542 = scalar_lea.vmem %s8, %s541
        $region52: #{tpu_custom_call.1} parent=15 // pred_fallthru
          _
        // Predicated region
        $region53: #{tpu_custom_call.1} parent=15 // pred_check
          %p543 = pneg %p297
        $region54: #{tpu_custom_call.1} parent=15 // pred_check_branch
          %545 = sbr.rel (%p543) target = $region56
        $region55: #{tpu_custom_call.1} parent=15 // pred_region
          %s546 = sand.u32 %s31, 1
          %s547 = scalar_lea.sflag [#allocation10], %s546
          %s548 = sand.u32 %s287, 1
          %s549 = smul.addr %s548, 128
          %s550 = scalar_lea.vmem [#allocation11], %s549
          %s552 = ssub.s32 2048, 2048
          %553 = vsyncadd %s547, %s552
          %s554 = smul.addr %s39, 32
          %s555 = smul.addr %s554, 64
          %s556 = scalar_lea.hbm %s9, %s555
          %s557 = sshll.u32 %s550, 4
          %s558 = int_to_ptr.vmem [resolvable:$true] %s557
          %563 = dma.hbm_to_vmem [thread:$0]  %s556, 2048, %s558, %s547, 64, 64, 4
        $region56: #{tpu_custom_call.1} parent=15 // pred_fallthru
          _
        // Predicated region
        $region57: #{tpu_custom_call.1} parent=15 // pred_check
          %p564 = pneg %p323
        $region58: #{tpu_custom_call.1} parent=15 // pred_check_branch
          %566 = sbr.rel (%p564) target = $region60
        $region59: #{tpu_custom_call.1} parent=15 // pred_region
          %p567 = scmp.lt.s32.totalorder %s39, 1
          %s568 = scalar_select %p567, %s39, 1
          %s569 = scalar_lea.vmem %s10, %s568
        $region60: #{tpu_custom_call.1} parent=15 // pred_fallthru
          _
        // Predicated region
        $region61: #{tpu_custom_call.1} parent=15 // pred_check
          %p570 = pneg %p349
        $region62: #{tpu_custom_call.1} parent=15 // pred_check_branch
          %572 = sbr.rel (%p570) target = $region64
        $region63: #{tpu_custom_call.1} parent=15 // pred_region
          %p573 = scmp.lt.s32.totalorder %s39, 1
          %s574 = scalar_select %p573, %s39, 1
          %s575 = scalar_lea.vmem %s11, %s574
        $region64: #{tpu_custom_call.1} parent=15 // pred_fallthru
          _
        // Predicated region
        $region65: #{tpu_custom_call.1} parent=15 // pred_check
          %p576 = pneg %p375
        $region66: #{tpu_custom_call.1} parent=15 // pred_check_branch
          %578 = sbr.rel (%p576) target = $region68
        $region67: #{tpu_custom_call.1} parent=15 // pred_region
          %p579 = scmp.lt.s32.totalorder %s39, 1
          %s580 = scalar_select %p579, %s39, 1
          %s581 = scalar_lea.vmem %s12, %s580
        $region68: #{tpu_custom_call.1} parent=15 // pred_fallthru
          _
      $region16: #{tpu_custom_call.1} parent=5 // pred_fallthru
        _
      %p582 = scmp.le.s32.totalorder 1, %s31
      %p583 = scmp.lt.s32.totalorder %s31, 5
      %p584 = pnand %p582, %p583
      %p585 = pneg %p584
      // Predicated region
      $region69: #{tpu_custom_call.1} parent=5 // pred_check
        _
      $region70: #{tpu_custom_call.1} parent=5 // pred_check_branch
        %587 = sbr.rel (%p584) target = $region72
      $region71: #{tpu_custom_call.1} parent=5 // pred_region
        %s588 = ssub.s32 %s31, 1
        %s589 = sand.u32 %s56, 1
        %s590 = scalar_lea.sflag [#allocation4], %s589
        %s591 = sand.u32 %s56, 1
        %s592 = smul.addr %s591, 64
        %s593 = scalar_lea.vmem [#allocation3], %s592
        // Predicated region
        $region73: #{tpu_custom_call.1} parent=71 // pred_check
          %p594 = pneg %p69
        $region74: #{tpu_custom_call.1} parent=71 // pred_check_branch
          %596 = sbr.rel (%p594) target = $region76
        $region75: #{tpu_custom_call.1} parent=71 // pred_region
          %597 = dma.done %s590, 1024
        $region76: #{tpu_custom_call.1} parent=71 // pred_fallthru
          _
        %s598 = sand.u32 %s36, 1
        %s599 = scalar_lea.sflag [#allocation7], %s598
        %s600 = sand.u32 %s82, 1
        %s601 = smul.addr %s600, 192
        %s602 = scalar_lea.vmem [#allocation6], %s601
        // Predicated region
        $region77: #{tpu_custom_call.1} parent=71 // pred_check
          %p603 = pneg %p95
        $region78: #{tpu_custom_call.1} parent=71 // pred_check_branch
          %605 = sbr.rel (%p603) target = $region80
        $region79: #{tpu_custom_call.1} parent=71 // pred_region
          %606 = dma.done %s599, 3072
        $region80: #{tpu_custom_call.1} parent=71 // pred_fallthru
          _
        %s607 = sand.u32 %s36, 1
        %s608 = scalar_lea.sflag [#allocation7], %s607
        %s609 = sand.u32 %s134, 1
        %s610 = smul.addr %s609, 64
        %s611 = scalar_lea.vmem [#allocation8], %s610
        // Predicated region
        $region81: #{tpu_custom_call.1} parent=71 // pred_check
          %p612 = pneg %p147
        $region82: #{tpu_custom_call.1} parent=71 // pred_check_branch
          %614 = sbr.rel (%p612) target = $region84
        $region83: #{tpu_custom_call.1} parent=71 // pred_region
          %615 = dma.done %s608, 1024
        $region84: #{tpu_custom_call.1} parent=71 // pred_fallthru
          _
        %s616 = sand.u32 %s36, 1
        %s617 = scalar_lea.sflag [#allocation10], %s616
        %s618 = sand.u32 %s238, 1
        %s619 = smul.addr %s618, 128
        %s620 = scalar_lea.vmem [#allocation9], %s619
        // Predicated region
        $region85: #{tpu_custom_call.1} parent=71 // pred_check
          %p621 = pneg %p251
        $region86: #{tpu_custom_call.1} parent=71 // pred_check_branch
          %623 = sbr.rel (%p621) target = $region88
        $region87: #{tpu_custom_call.1} parent=71 // pred_region
          %624 = dma.done %s617, 2048
        $region88: #{tpu_custom_call.1} parent=71 // pred_fallthru
          _
        %s625 = sand.u32 %s36, 1
        %s626 = scalar_lea.sflag [#allocation10], %s625
        %s627 = sand.u32 %s290, 1
        %s628 = smul.addr %s627, 128
        %s629 = scalar_lea.vmem [#allocation11], %s628
        // Predicated region
        $region89: #{tpu_custom_call.1} parent=71 // pred_check
          %p630 = pneg %p303
        $region90: #{tpu_custom_call.1} parent=71 // pred_check_branch
          %632 = sbr.rel (%p630) target = $region92
        $region91: #{tpu_custom_call.1} parent=71 // pred_region
          %633 = dma.done %s626, 2048
        $region92: #{tpu_custom_call.1} parent=71 // pred_fallthru
          _
        %s634 = sand.u32 %s56, 1
        %s635 = scalar_lea.sflag [#allocation4], %s634
        %s636 = sand.u32 %s56, 1
        %s637 = smul.addr %s636, 64
        %s638 = scalar_lea.vmem [#allocation3], %s637
        %p639 = pneg %p69
        %p640 = pneg %p66
        %s641 = sand.u32 %s36, 1
        %s642 = scalar_lea.sflag [#allocation7], %s641
        %s643 = sand.u32 %s82, 1
        %s644 = smul.addr %s643, 192
        %s645 = scalar_lea.vmem [#allocation6], %s644
        %p646 = pneg %p95
        %p647 = pneg %p92
        %p648 = scmp.lt.s32.totalorder %s41, 1
        %s649 = scalar_select %p648, %s41, 1
        %s650 = smul.addr %s649, 3
        %s651 = scalar_lea.vmem %s2, %s650
        %p652 = pneg %p121
        %p653 = pneg %p118
        %s654 = sand.u32 %s36, 1
        %s655 = scalar_lea.sflag [#allocation7], %s654
        %s656 = sand.u32 %s134, 1
        %s657 = smul.addr %s656, 64
        %s658 = scalar_lea.vmem [#allocation8], %s657
        %p659 = pneg %p147
        %p660 = pneg %p144
        %p661 = scmp.lt.s32.totalorder %s41, 1
        %s662 = scalar_select %p661, %s41, 1
        %s663 = scalar_lea.vmem %s4, %s662
        %p664 = pneg %p173
        %p665 = pneg %p170
        %p666 = scmp.lt.s32.totalorder %s41, 1
        %s667 = scalar_select %p666, %s41, 1
        %s668 = scalar_lea.vmem %s5, %s667
        %p669 = pneg %p199
        %p670 = pneg %p196
        %p671 = scmp.lt.s32.totalorder %s41, 1
        %s672 = scalar_select %p671, %s41, 1
        %s673 = scalar_lea.vmem %s6, %s672
        %p674 = pneg %p225
        %p675 = pneg %p222
        %s676 = sand.u32 %s36, 1
        %s677 = scalar_lea.sflag [#allocation10], %s676
        %s678 = sand.u32 %s238, 1
        %s679 = smul.addr %s678, 128
        %s680 = scalar_lea.vmem [#allocation9], %s679
        %p681 = pneg %p251
        %p682 = pneg %p248
        %p683 = scmp.lt.s32.totalorder %s41, 1
        %s684 = scalar_select %p683, %s41, 1
        %s685 = smul.addr %s684, 2
        %s686 = scalar_lea.vmem %s8, %s685
        %p687 = pneg %p277
        %p688 = pneg %p274
        %s689 = sand.u32 %s36, 1
        %s690 = scalar_lea.sflag [#allocation10], %s689
        %s691 = sand.u32 %s290, 1
        %s692 = smul.addr %s691, 128
        %s693 = scalar_lea.vmem [#allocation11], %s692
        %p694 = pneg %p303
        %p695 = pneg %p300
        %p696 = scmp.lt.s32.totalorder %s41, 1
        %s697 = scalar_select %p696, %s41, 1
        %s698 = scalar_lea.vmem %s10, %s697
        %p699 = pneg %p329
        %p700 = pneg %p326
        %p701 = scmp.lt.s32.totalorder %s41, 1
        %s702 = scalar_select %p701, %s41, 1
        %s703 = scalar_lea.vmem %s11, %s702
        %p704 = pneg %p355
        %p705 = pneg %p352
        %p706 = scmp.lt.s32.totalorder %s41, 1
        %s707 = scalar_select %p706, %s41, 1
        %s708 = scalar_lea.vmem %s12, %s707
        %p709 = pneg %p381
        %p710 = pneg %p378
        %p711 = pneg %p407
        %p712 = pneg %p404
        %s713 = sand.u32 %s394, 1
        %s714 = scalar_lea.sflag [#allocation5], %s713
        %s715 = sand.u32 %s394, 1
        %s716 = smul.addr %s715, 32
        %s717 = scalar_lea.vmem [#allocation12], %s716
        %s718 = smul.u32 2, %s40
        %p719 = scmp.lt.s32.totalorder %s41, 1
        %s720 = scalar_select %p719, %s41, 1
        %s721 = smul.addr %s720, 3
        %s722 = scalar_lea.vmem %s2, %s721
        %p723 = scmp.lt.s32.totalorder %s41, 1
        %s724 = scalar_select %p723, %s41, 1
        %s725 = scalar_lea.vmem %s4, %s724
        %p726 = scmp.lt.s32.totalorder %s41, 1
        %s727 = scalar_select %p726, %s41, 1
        %s728 = scalar_lea.vmem %s5, %s727
        %p729 = scmp.lt.s32.totalorder %s41, 1
        %s730 = scalar_select %p729, %s41, 1
        %s731 = scalar_lea.vmem %s6, %s730
        %p732 = scmp.lt.s32.totalorder %s41, 1
        %s733 = scalar_select %p732, %s41, 1
        %s734 = smul.addr %s733, 2
        %s735 = scalar_lea.vmem %s8, %s734
        %p736 = scmp.lt.s32.totalorder %s41, 1
        %s737 = scalar_select %p736, %s41, 1
        %s738 = scalar_lea.vmem %s10, %s737
        %p739 = scmp.lt.s32.totalorder %s41, 1
        %s740 = scalar_select %p739, %s41, 1
        %s741 = scalar_lea.vmem %s11, %s740
        %p742 = scmp.lt.s32.totalorder %s41, 1
        %s743 = scalar_select %p742, %s41, 1
        %s744 = scalar_lea.vmem %s12, %s743
        %s745 = smul.u32 2, %s40
        %p747 = scmp.eq.s32.totalorder %s41, 0
        // Predicated region
        $region93: #{tpu_custom_call.1} parent=71 // pred_check
          %p748 = pneg %p747
        $region94: #{tpu_custom_call.1} parent=71 // pred_check_branch
          %750 = sbr.rel (%p748) target = $region96
        $region95: #{tpu_custom_call.1} parent=71 // pred_region
          %v751 = vld [vmem:[%s593] sm:$0xff]
          %v752 = vld [vmem:[%s593 + $0x8] sm:$0xff]
          %v753 = vld [vmem:[%s593 + $0x10] sm:$0xff]
          %v754 = vld [vmem:[%s593 + $0x18] sm:$0xff]
          %v755 = vld [vmem:[%s593 + $0x20] sm:$0xff]
          %v756 = vld [vmem:[%s593 + $0x28] sm:$0xff]
          %v757 = vld [vmem:[%s593 + $0x30] sm:$0xff]
          %v758 = vld [vmem:[%s593 + $0x38] sm:$0xff]
          %759 = vst [vmem:[#allocation2] sm:$0xff] %v751
          %760 = vst [vmem:[#allocation2 + $0x8] sm:$0xff] %v752
          %761 = vst [vmem:[#allocation2 + $0x10] sm:$0xff] %v753
          %762 = vst [vmem:[#allocation2 + $0x18] sm:$0xff] %v754
          %763 = vst [vmem:[#allocation2 + $0x20] sm:$0xff] %v755
          %764 = vst [vmem:[#allocation2 + $0x28] sm:$0xff] %v756
          %765 = vst [vmem:[#allocation2 + $0x30] sm:$0xff] %v757
          %766 = vst [vmem:[#allocation2 + $0x38] sm:$0xff] %v758
        $region96: #{tpu_custom_call.1} parent=71 // pred_fallthru
          _
        %v767 = vld [vmem:[#allocation2] sm:$0xff]
        %v768 = vld [vmem:[#allocation2 + $0x8] sm:$0xff]
        %v769 = vld [vmem:[#allocation2 + $0x10] sm:$0xff]
        %v770 = vld [vmem:[#allocation2 + $0x18] sm:$0xff]
        %v771 = vld [vmem:[#allocation2 + $0x20] sm:$0xff]
        %v772 = vld [vmem:[#allocation2 + $0x28] sm:$0xff]
        %v773 = vld [vmem:[#allocation2 + $0x30] sm:$0xff]
        %v774 = vld [vmem:[#allocation2 + $0x38] sm:$0xff]
        %v775 = vpack.c.bf16 %v768, %v767
        %v776 = vpack.c.bf16 %v770, %v769
        %v777 = vpack.c.bf16 %v772, %v771
        %v778 = vpack.c.bf16 %v774, %v773
        %v779 = vld [vmem:[%s602] sm:$0xff]
        %v780 = vld [vmem:[%s602 + $0x8] sm:$0xf]
        %v781 = vld [vmem:[%s602 + $0xc] sm:$0xff]
        %v782 = vld [vmem:[%s602 + $0x14] sm:$0xf]
        %v783 = vld [vmem:[%s602 + $0x18] sm:$0xff]
        %v784 = vld [vmem:[%s602 + $0x20] sm:$0xf]
        %v785 = vld [vmem:[%s602 + $0x24] sm:$0xff]
        %v786 = vld [vmem:[%s602 + $0x2c] sm:$0xf]
        %v787 = vld [vmem:[%s602 + $0x30] sm:$0xff]
        %v788 = vld [vmem:[%s602 + $0x38] sm:$0xf]
        %v789 = vld [vmem:[%s602 + $0x3c] sm:$0xff]
        %v790 = vld [vmem:[%s602 + $0x44] sm:$0xf]
        %v791 = vld [vmem:[%s602 + $0x48] sm:$0xff]
        %v792 = vld [vmem:[%s602 + $0x50] sm:$0xf]
        %v793 = vld [vmem:[%s602 + $0x54] sm:$0xff]
        %v794 = vld [vmem:[%s602 + $0x5c] sm:$0xf]
        %v795 = vld [vmem:[%s602 + $0x60] sm:$0xff]
        %v796 = vld [vmem:[%s602 + $0x68] sm:$0xf]
        %v797 = vld [vmem:[%s602 + $0x6c] sm:$0xff]
        %v798 = vld [vmem:[%s602 + $0x74] sm:$0xf]
        %v799 = vld [vmem:[%s602 + $0x78] sm:$0xff]
        %v800 = vld [vmem:[%s602 + $0x80] sm:$0xf]
        %v801 = vld [vmem:[%s602 + $0x84] sm:$0xff]
        %v802 = vld [vmem:[%s602 + $0x8c] sm:$0xf]
        %v803 = vld [vmem:[%s602 + $0x90] sm:$0xff]
        %v804 = vld [vmem:[%s602 + $0x98] sm:$0xf]
        %v805 = vld [vmem:[%s602 + $0x9c] sm:$0xff]
        %v806 = vld [vmem:[%s602 + $0xa4] sm:$0xf]
        %v807 = vld [vmem:[%s602 + $0xa8] sm:$0xff]
        %v808 = vld [vmem:[%s602 + $0xb0] sm:$0xf]
        %v809 = vld [vmem:[%s602 + $0xb4] sm:$0xff]
        %v810 = vld [vmem:[%s602 + $0xbc] sm:$0xf]
        %v811 = vld [vmem:[%s722] sm:$0x7]
        %v813 = vlaneseq
        %v814 = vshrl.u32 %v813, 7
        %v815 = vsub.s32 0, %v814
        %v816 = vrot.slane %v811, %v815
        %v817 = vlaneseq
        %v818 = vshrl.u32 %v817, 7
        %v819 = vsub.s32 1, %v818
        %v820 = vrot.slane %v811, %v819
        %v821 = vlaneseq
        %v822 = vshrl.u32 %v821, 7
        %v823 = vsub.s32 2, %v822
        %v824 = vrot.slane %v811, %v823
        %v860 = vunpack.c.l.b16 %v779
        %v861 = vunpack.c.h.b16 %v779
        %v862 = vunpack.c.l.b16 %v780
        %v863 = vunpack.c.l.b16 %v781
        %v864 = vunpack.c.h.b16 %v781
        %v865 = vunpack.c.l.b16 %v782
        %v866 = vunpack.c.l.b16 %v783
        %v867 = vunpack.c.h.b16 %v783
        %v868 = vunpack.c.l.b16 %v784
        %v869 = vunpack.c.l.b16 %v785
        %v870 = vunpack.c.h.b16 %v785
        %v871 = vunpack.c.l.b16 %v786
        %v872 = vunpack.c.l.b16 %v787
        %v873 = vunpack.c.h.b16 %v787
        %v874 = vunpack.c.l.b16 %v788
        %v875 = vunpack.c.l.b16 %v789
        %v876 = vunpack.c.h.b16 %v789
        %v877 = vunpack.c.l.b16 %v790
        %v878 = vunpack.c.l.b16 %v791
        %v879 = vunpack.c.h.b16 %v791
        %v880 = vunpack.c.l.b16 %v792
        %v881 = vunpack.c.l.b16 %v793
        %v882 = vunpack.c.h.b16 %v793
        %v883 = vunpack.c.l.b16 %v794
        %v884 = vunpack.c.l.b16 %v795
        %v885 = vunpack.c.h.b16 %v795
        %v886 = vunpack.c.l.b16 %v796
        %v887 = vunpack.c.l.b16 %v797
        %v888 = vunpack.c.h.b16 %v797
        %v889 = vunpack.c.l.b16 %v798
        %v890 = vunpack.c.l.b16 %v799
        %v891 = vunpack.c.h.b16 %v799
        %v892 = vunpack.c.l.b16 %v800
        %v893 = vunpack.c.l.b16 %v801
        %v894 = vunpack.c.h.b16 %v801
        %v895 = vunpack.c.l.b16 %v802
        %v896 = vunpack.c.l.b16 %v803
        %v897 = vunpack.c.h.b16 %v803
        %v898 = vunpack.c.l.b16 %v804
        %v899 = vunpack.c.l.b16 %v805
        %v900 = vunpack.c.h.b16 %v805
        %v901 = vunpack.c.l.b16 %v806
        %v902 = vunpack.c.l.b16 %v807
        %v903 = vunpack.c.h.b16 %v807
        %v904 = vunpack.c.l.b16 %v808
        %v905 = vunpack.c.l.b16 %v809
        %v906 = vunpack.c.h.b16 %v809
        %v907 = vunpack.c.l.b16 %v810
        %v908 = vpack.c.b16 %v863, %v860
        %v909 = vpack.c.b16 %v864, %v861
        %v910 = vpack.c.b16 %v865, %v862
        %v911 = vpack.c.b16 %v869, %v866
        %v912 = vpack.c.b16 %v870, %v867
        %v913 = vpack.c.b16 %v871, %v868
        %v914 = vpack.c.b16 %v875, %v872
        %v915 = vpack.c.b16 %v876, %v873
        %v916 = vpack.c.b16 %v877, %v874
        %v917 = vpack.c.b16 %v881, %v878
        %v918 = vpack.c.b16 %v882, %v879
        %v919 = vpack.c.b16 %v883, %v880
        %v920 = vpack.c.b16 %v887, %v884
        %v921 = vpack.c.b16 %v888, %v885
        %v922 = vpack.c.b16 %v889, %v886
        %v923 = vpack.c.b16 %v893, %v890
        %v924 = vpack.c.b16 %v894, %v891
        %v925 = vpack.c.b16 %v895, %v892
        %v926 = vpack.c.b16 %v899, %v896
        %v927 = vpack.c.b16 %v900, %v897
        %v928 = vpack.c.b16 %v901, %v898
        %v929 = vpack.c.b16 %v905, %v902
        %v930 = vpack.c.b16 %v906, %v903
        %v931 = vpack.c.b16 %v907, %v904
        %956 = vmatprep.subr.bf16.mxu0 %v909
        %957 = vmatpush1.bf16.msra.mxu0 %v908
        %958 = vmatprep.subr.bf16.mxu0 %v912
        %959 = vmatpush1.bf16.msra.mxu0 %v911
        %960 = vmatprep.subr.bf16.mxu0 %v915
        %961 = vmatpush1.bf16.msra.mxu0 %v914
        %962 = vmatprep.subr.bf16.mxu0 %v918
        %963 = vmatpush1.bf16.msra.mxu0 %v917
        %964 = vmatprep.subr.bf16.mxu0 %v921
        %965 = vmatpush1.bf16.msra.mxu0 %v920
        %966 = vmatprep.subr.bf16.mxu0 %v924
        %967 = vmatpush1.bf16.msra.mxu0 %v923
        %968 = vmatprep.subr.bf16.mxu0 %v927
        %969 = vmatpush1.bf16.msra.mxu0 %v926
        %970 = vmatprep.subr.bf16.mxu0 %v930
        %971 = vmatpush1.bf16.msra.mxu0 %v929
        %972 = vmatprep.subr.bf16.mxu0 0
        %973 = vmatpush1.bf16.msra.mxu0 0
        %974 = vmatprep.subr.bf16.mxu0 0
        %975 = vmatpush1.bf16.msra.mxu0 0
        %976 = vmatprep.subr.bf16.mxu0 0
        %977 = vmatpush1.bf16.msra.mxu0 0
        %978 = vmatprep.subr.bf16.mxu0 0
        %979 = vmatpush1.bf16.msra.mxu0 0
        %980 = vmatprep.subr.bf16.mxu0 0
        %981 = vmatpush1.bf16.msra.mxu0 0
        %982 = vmatprep.subr.bf16.mxu0 0
        %983 = vmatpush1.bf16.msra.mxu0 0
        %984 = vmatprep.subr.bf16.mxu0 0
        %985 = vmatpush1.bf16.msra.mxu0 0
        %986 = vmatprep.subr.bf16.mxu0 0
        %987 = vmatpush1.bf16.msra.mxu0 0
        %988 = vmatprep.mubr.bf16.mxu0 0
        %989 = vmatmul.mubr.bf16.gmra.mrb[0].mxu0 %v775
        %v990 = vpop.f32.mrb[0].mxu0
        %v991 = vadd.f32 %v816, %v990
        %v992 = vpop.f32.mrb[0].mxu0
        %v993 = vadd.f32 %v820, %v992
        %v994 = vpop.f32.mrb[0].mxu0
        %v995 = vadd.f32 %v816, %v994
        %v996 = vpop.f32.mrb[0].mxu0
        %v997 = vadd.f32 %v820, %v996
        %998 = vmatprep.mubr.bf16.mxu0 0
        %999 = vmatmul.mubr.bf16.gmra.mrb[0].mxu0 %v776
        %v1000 = vpop.f32.mrb[0].mxu0
        %v1001 = vadd.f32 %v816, %v1000
        %v1002 = vpop.f32.mrb[0].mxu0
        %v1003 = vadd.f32 %v820, %v1002
        %v1004 = vpop.f32.mrb[0].mxu0
        %v1005 = vadd.f32 %v816, %v1004
        %v1006 = vpop.f32.mrb[0].mxu0
        %v1007 = vadd.f32 %v820, %v1006
        %1008 = vmatprep.mubr.bf16.mxu0 0
        %1009 = vmatmul.mubr.bf16.gmra.mrb[0].mxu0 %v777
        %v1010 = vpop.f32.mrb[0].mxu0
        %v1011 = vadd.f32 %v816, %v1010
        %v1012 = vpop.f32.mrb[0].mxu0
        %v1013 = vadd.f32 %v820, %v1012
        %v1014 = vpop.f32.mrb[0].mxu0
        %v1015 = vadd.f32 %v816, %v1014
        %v1016 = vpop.f32.mrb[0].mxu0
        %v1017 = vadd.f32 %v820, %v1016
        %1018 = vmatprep.mubr.bf16.mxu0 0
        %1019 = vmatmul.mubr.bf16.gmra.mrb[0].mxu0 %v778
        %v1020 = vpop.f32.mrb[0].mxu0
        %v1021 = vadd.f32 %v816, %v1020
        %v1022 = vpop.f32.mrb[0].mxu0
        %v1023 = vadd.f32 %v820, %v1022
        %v1024 = vpop.f32.mrb[0].mxu0
        %v1025 = vadd.f32 %v816, %v1024
        %v1026 = vpop.f32.mrb[0].mxu0
        %v1027 = vadd.f32 %v820, %v1026
        %1028 = vdwg.mxu0
        %1029 = vmatprep.subr.bf16.mxu0 0
        %1030 = vmatpush1.bf16.msra.mxu0 %v910
        %1031 = vmatprep.subr.bf16.mxu0 0
        %1032 = vmatpush1.bf16.msra.mxu0 %v913
        %1033 = vmatprep.subr.bf16.mxu0 0
        %1034 = vmatpush1.bf16.msra.mxu0 %v916
        %1035 = vmatprep.subr.bf16.mxu0 0
        %1036 = vmatpush1.bf16.msra.mxu0 %v919
        %1037 = vmatprep.subr.bf16.mxu0 0
        %1038 = vmatpush1.bf16.msra.mxu0 %v922
        %1039 = vmatprep.subr.bf16.mxu0 0
        %1040 = vmatpush1.bf16.msra.mxu0 %v925
        %1041 = vmatprep.subr.bf16.mxu0 0
        %1042 = vmatpush1.bf16.msra.mxu0 %v928
        %1043 = vmatprep.subr.bf16.mxu0 0
        %1044 = vmatpush1.bf16.msra.mxu0 %v931
        %1045 = vmatprep.subr.bf16.mxu0 0
        %1046 = vmatpush1.bf16.msra.mxu0 0
        %1047 = vmatprep.subr.bf16.mxu0 0
        %1048 = vmatpush1.bf16.msra.mxu0 0
        %1049 = vmatprep.subr.bf16.mxu0 0
        %1050 = vmatpush1.bf16.msra.mxu0 0
        %1051 = vmatprep.subr.bf16.mxu0 0
        %1052 = vmatpush1.bf16.msra.mxu0 0
        %1053 = vmatprep.subr.bf16.mxu0 0
        %1054 = vmatpush1.bf16.msra.mxu0 0
        %1055 = vmatprep.subr.bf16.mxu0 0
        %1056 = vmatpush1.bf16.msra.mxu0 0
        %1057 = vmatprep.subr.bf16.mxu0 0
        %1058 = vmatpush1.bf16.msra.mxu0 0
        %1059 = vmatprep.subr.bf16.mxu0 0
        %1060 = vmatpush1.bf16.msra.mxu0 0
        %1061 = vmatprep.mubr.bf16.mxu0 0
        %1062 = vmatmul.mubr.bf16.gmra.mrb[0].mxu0 %v775
        %v1063 = vpop.f32.mrb[0].mxu0
        %v1064 = vadd.f32 %v824, %v1063
        %v1065 = vpop.f32.mrb[0].mxu0
        %v1066 = vpop.f32.mrb[0].mxu0
        %v1067 = vadd.f32 %v824, %v1066
        %v1068 = vpop.f32.mrb[0].mxu0
        %1069 = vmatprep.mubr.bf16.mxu0 0
        %1070 = vmatmul.mubr.bf16.gmra.mrb[0].mxu0 %v776
        %v1071 = vpop.f32.mrb[0].mxu0
        %v1072 = vadd.f32 %v824, %v1071
        %v1073 = vpop.f32.mrb[0].mxu0
        %v1074 = vpop.f32.mrb[0].mxu0
        %v1075 = vadd.f32 %v824, %v1074
        %v1076 = vpop.f32.mrb[0].mxu0
        %1077 = vmatprep.mubr.bf16.mxu0 0
        %1078 = vmatmul.mubr.bf16.gmra.mrb[0].mxu0 %v777
        %v1079 = vpop.f32.mrb[0].mxu0
        %v1080 = vadd.f32 %v824, %v1079
        %v1081 = vpop.f32.mrb[0].mxu0
        %v1082 = vpop.f32.mrb[0].mxu0
        %v1083 = vadd.f32 %v824, %v1082
        %v1084 = vpop.f32.mrb[0].mxu0
        %1085 = vmatprep.mubr.bf16.mxu0 0
        %1086 = vmatmul.mubr.bf16.gmra.mrb[0].mxu0 %v778
        %v1087 = vpop.f32.mrb[0].mxu0
        %v1088 = vadd.f32 %v824, %v1087
        %v1089 = vpop.f32.mrb[0].mxu0
        %v1090 = vpop.f32.mrb[0].mxu0
        %v1091 = vadd.f32 %v824, %v1090
        %v1092 = vpop.f32.mrb[0].mxu0
        %1093 = vdwg.mxu0
        %v1094 = vpack.c.bf16 %v995, %v991
        %v1095 = vpack.c.bf16 %v997, %v993
        %v1096 = vpack.c.bf16 %v1067, %v1064
        %v1097 = vpack.c.bf16 %v1005, %v1001
        %v1098 = vpack.c.bf16 %v1007, %v1003
        %v1099 = vpack.c.bf16 %v1075, %v1072
        %v1100 = vpack.c.bf16 %v1015, %v1011
        %v1101 = vpack.c.bf16 %v1017, %v1013
        %v1102 = vpack.c.bf16 %v1083, %v1080
        %v1103 = vpack.c.bf16 %v1025, %v1021
        %v1104 = vpack.c.bf16 %v1027, %v1023
        %v1105 = vpack.c.bf16 %v1091, %v1088
        %v1106 = vlaneseq
        %v1107 = vshrl.u32 %v1106, 7
        %v1108 = vadd.s32 %v1107, 8
        %v1109 = vadd.s32 %v1107, 16
        %v1110 = vadd.s32 %v1107, 24
        %v1111 = vlaneseq
        %v1112 = vand.u32 %v1111, 127
        %vm1113 = vcmp.le.s32.totalorder %v1112, %v1107
        %vm1114 = vcmp.le.s32.totalorder %v1112, %v1108
        %vm1115 = vcmp.le.s32.totalorder %v1112, %v1109
        %vm1116 = vcmp.le.s32.totalorder %v1112, %v1110
        %v1117 = vsel %vm1113, 0.0, -1e+30
        %v1118 = vsel %vm1114, 0.0, -1e+30
        %v1119 = vsel %vm1115, 0.0, -1e+30
        %v1120 = vsel %vm1116, 0.0, -1e+30
        %vm1121 = vcmask 261120
        %v1123 = vsel %vm1121, %v1094, 0
        %v1126 = vsel %vm1121, %v1097, 0
        %v1129 = vsel %vm1121, %v1095, 0
        %v1132 = vsel %vm1121, %v1098, 0
        %1134 = vmatprep.subr.bf16.mxu0 0
        %1135 = vmatpush1.bf16.xpose.msra.mxu0 %v1129
        %1136 = vmatprep.subr.bf16.mxu0 0
        %1137 = vmatpush1.bf16.xpose.msra.mxu0 %v1132
        %1138 = vmatprep.subr.bf16.mxu0 0
        %1139 = vmatpush1.bf16.xpose.msra.mxu0 0
        %1140 = vmatprep.subr.bf16.mxu0 0
        %1141 = vmatpush1.bf16.xpose.msra.mxu0 0
        %1142 = vmatprep.subr.bf16.mxu0 0
        %1143 = vmatpush1.bf16.xpose.msra.mxu0 0
        %1144 = vmatprep.subr.bf16.mxu0 0
        %1145 = vmatpush1.bf16.xpose.msra.mxu0 0
        %1146 = vmatprep.subr.bf16.mxu0 0
        %1147 = vmatpush1.bf16.xpose.msra.mxu0 0
        %1148 = vmatprep.subr.bf16.mxu0 0
        %1149 = vmatpush1.bf16.xpose.msra.mxu0 0
        %1150 = vmatprep.subr.bf16.mxu0 0
        %1151 = vmatpush1.bf16.xpose.msra.mxu0 0
        %1152 = vmatprep.subr.bf16.mxu0 0
        %1153 = vmatpush1.bf16.xpose.msra.mxu0 0
        %1154 = vmatprep.subr.bf16.mxu0 0
        %1155 = vmatpush1.bf16.xpose.msra.mxu0 0
        %1156 = vmatprep.subr.bf16.mxu0 0
        %1157 = vmatpush1.bf16.xpose.msra.mxu0 0
        %1158 = vmatprep.subr.bf16.mxu0 0
        %1159 = vmatpush1.bf16.xpose.msra.mxu0 0
        %1160 = vmatprep.subr.bf16.mxu0 0
        %1161 = vmatpush1.bf16.xpose.msra.mxu0 0
        %1162 = vmatprep.subr.bf16.mxu0 0
        %1163 = vmatpush1.bf16.xpose.msra.mxu0 0
        %1164 = vmatprep.subr.bf16.mxu0 0
        %1165 = vmatpush1.bf16.xpose.msra.mxu0 0
        %1166 = vmatprep.mubr.bf16.mxu0 0
        %1167 = vmatmul.mubr.bf16.gmra.mrb[0].mxu0 %v1123
        %v1168 = vpop.f32.mrb[0].mxu0
        %v1169 = vadd.f32 0.0, %v1168
        %v1170 = vpop.f32.mrb[0].mxu0
        %v1171 = vpop.f32.mrb[0].mxu0
        %v1172 = vadd.f32 0.0, %v1171
        %v1173 = vpop.f32.mrb[0].mxu0
        %1174 = vmatprep.mubr.bf16.mxu0 0
        %1175 = vmatmul.mubr.bf16.gmra.mrb[0].mxu0 %v1126
        %v1176 = vpop.f32.mrb[0].mxu0
        %v1177 = vadd.f32 0.0, %v1176
        %v1178 = vpop.f32.mrb[0].mxu0
        %v1179 = vpop.f32.mrb[0].mxu0
        %v1180 = vadd.f32 0.0, %v1179
        %v1181 = vpop.f32.mrb[0].mxu0
        %1182 = vdwg.mxu0
        %v1183 = vmul.f32 %v1169, 0.17677669
        %v1184 = vmul.f32 %v1172, 0.17677669
        %v1185 = vmul.f32 %v1177, 0.17677669
        %v1186 = vmul.f32 %v1180, 0.17677669
        %v1187 = vadd.f32 %v1183, %v1117
        %v1188 = vadd.f32 %v1184, %v1118
        %v1189 = vadd.f32 %v1185, %v1119
        %v1190 = vadd.f32 %v1186, %v1120
        %v1191 = vsel %vm1121, %v1187, -inf
        %1192 = vmax.xlane.f32.xlu0 %v1191
        %v1193 = vpop.xlane.xlu0 %1192
        %v1194 = vsel %vm1121, %v1188, -inf
        %1195 = vmax.xlane.f32.xlu0 %v1194
        %v1196 = vpop.xlane.xlu0 %1195
        %v1197 = vsel %vm1121, %v1189, -inf
        %1198 = vmax.xlane.f32.xlu0 %v1197
        %v1199 = vpop.xlane.xlu0 %1198
        %v1200 = vsel %vm1121, %v1190, -inf
        %1201 = vmax.xlane.f32.xlu0 %v1200
        %v1202 = vpop.xlane.xlu0 %1201
        %v1203 = vsub.f32 %v1187, %v1193
        %v1204 = vsub.f32 %v1188, %v1196
        %v1205 = vsub.f32 %v1189, %v1199
        %v1206 = vsub.f32 %v1190, %v1202
        %v1207 = vmul.f32 %v1203, 1.442695
        %v1208 = vpow.pop %v1207
        %v1209 = vmul.f32 %v1204, 1.442695
        %v1210 = vpow.pop %v1209
        %v1211 = vmul.f32 %v1205, 1.442695
        %v1212 = vpow.pop %v1211
        %v1213 = vmul.f32 %v1206, 1.442695
        %v1214 = vpow.pop %v1213
        %v1215 = vsel %vm1121, %v1208, 0.0
        %1216 = vadd.xlane.f32.xlu0 %v1215
        %v1217 = vpop.xlane.xlu0 %1216
        %v1218 = vsel %vm1121, %v1210, 0.0
        %1219 = vadd.xlane.f32.xlu0 %v1218
        %v1220 = vpop.xlane.xlu0 %1219
        %v1221 = vsel %vm1121, %v1212, 0.0
        %1222 = vadd.xlane.f32.xlu0 %v1221
        %v1223 = vpop.xlane.xlu0 %1222
        %v1224 = vsel %vm1121, %v1214, 0.0
        %1225 = vadd.xlane.f32.xlu0 %v1224
        %v1226 = vpop.xlane.xlu0 %1225
        %v1227 = vrcp.pop %v1217
        %v1228 = vrcp.pop %v1220
        %v1229 = vrcp.pop %v1223
        %v1230 = vrcp.pop %v1226
        %v1231 = vmul.f32 %v1208, %v1227
        %v1232 = vmul.f32 %v1210, %v1228
        %v1233 = vmul.f32 %v1212, %v1229
        %v1234 = vmul.f32 %v1214, %v1230
        %v1235 = vpack.c.bf16 %v1232, %v1231
        %v1236 = vpack.c.bf16 %v1234, %v1233
        %v1238 = vsel %vm1121, %v1235, 0
        %v1241 = vsel %vm1121, %v1236, 0
        %1243 = vmatprep.subr.bf16.mxu0 0
        %1244 = vmatpush1.bf16.msra.mxu0 %v1096
        %1245 = vmatprep.subr.bf16.mxu0 0
        %1246 = vmatpush1.bf16.msra.mxu0 %v1099
        %1247 = vmatprep.subr.bf16.mxu0 0
        %1248 = vmatpush1.bf16.msra.mxu0 0
        %1249 = vmatprep.subr.bf16.mxu0 0
        %1250 = vmatpush1.bf16.msra.mxu0 0
        %1251 = vmatprep.subr.bf16.mxu0 0
        %1252 = vmatpush1.bf16.msra.mxu0 0
        %1253 = vmatprep.subr.bf16.mxu0 0
        %1254 = vmatpush1.bf16.msra.mxu0 0
        %1255 = vmatprep.subr.bf16.mxu0 0
        %1256 = vmatpush1.bf16.msra.mxu0 0
        %1257 = vmatprep.subr.bf16.mxu0 0
        %1258 = vmatpush1.bf16.msra.mxu0 0
        %1259 = vmatprep.subr.bf16.mxu0 0
        %1260 = vmatpush1.bf16.msra.mxu0 0
        %1261 = vmatprep.subr.bf16.mxu0 0
        %1262 = vmatpush1.bf16.msra.mxu0 0
        %1263 = vmatprep.subr.bf16.mxu0 0
        %1264 = vmatpush1.bf16.msra.mxu0 0
        %1265 = vmatprep.subr.bf16.mxu0 0
        %1266 = vmatpush1.bf16.msra.mxu0 0
        %1267 = vmatprep.subr.bf16.mxu0 0
        %1268 = vmatpush1.bf16.msra.mxu0 0
        %1269 = vmatprep.subr.bf16.mxu0 0
        %1270 = vmatpush1.bf16.msra.mxu0 0
        %1271 = vmatprep.subr.bf16.mxu0 0
        %1272 = vmatpush1.bf16.msra.mxu0 0
        %1273 = vmatprep.subr.bf16.mxu0 0
        %1274 = vmatpush1.bf16.msra.mxu0 0
        %1275 = vmatprep.mubr.bf16.mxu0 0
        %1276 = vmatmul.mubr.bf16.gmra.mrb[0].mxu0 %v1238
        %v1277 = vpop.f32.mrb[0].mxu0
        %v1278 = vadd.f32 0.0, %v1277
        %v1279 = vpop.f32.mrb[0].mxu0
        %v1280 = vpop.f32.mrb[0].mxu0
        %v1281 = vadd.f32 0.0, %v1280
        %v1282 = vpop.f32.mrb[0].mxu0
        %1283 = vmatprep.mubr.bf16.mxu0 0
        %1284 = vmatmul.mubr.bf16.gmra.mrb[0].mxu0 %v1241
        %v1285 = vpop.f32.mrb[0].mxu0
        %v1286 = vadd.f32 0.0, %v1285
        %v1287 = vpop.f32.mrb[0].mxu0
        %v1288 = vpop.f32.mrb[0].mxu0
        %v1289 = vadd.f32 0.0, %v1288
        %v1290 = vpop.f32.mrb[0].mxu0
        %1291 = vdwg.mxu0
        %1294 = vrot.lane.b32.xlu0 %v1094, 96
        %v1295 = vpop.permute.xlu0 %1294
        %1296 = vrot.lane.b32.xlu0 %v1097, 96
        %v1297 = vpop.permute.xlu0 %1296
        %1300 = vrot.lane.b32.xlu0 %v1095, 96
        %v1301 = vpop.permute.xlu0 %1300
        %1302 = vrot.lane.b32.xlu0 %v1098, 96
        %v1303 = vpop.permute.xlu0 %1302
        %v1305 = vsel %vm1121, %v1295, 0
        %v1308 = vsel %vm1121, %v1297, 0
        %v1311 = vsel %vm1121, %v1301, 0
        %v1314 = vsel %vm1121, %v1303, 0
        %1316 = vmatprep.subr.bf16.mxu0 0
        %1317 = vmatpush1.bf16.xpose.msra.mxu0 %v1311
        %1318 = vmatprep.subr.bf16.mxu0 0
        %1319 = vmatpush1.bf16.xpose.msra.mxu0 %v1314
        %1320 = vmatprep.subr.bf16.mxu0 0
        %1321 = vmatpush1.bf16.xpose.msra.mxu0 0
        %1322 = vmatprep.subr.bf16.mxu0 0
        %1323 = vmatpush1.bf16.xpose.msra.mxu0 0
        %1324 = vmatprep.subr.bf16.mxu0 0
        %1325 = vmatpush1.bf16.xpose.msra.mxu0 0
        %1326 = vmatprep.subr.bf16.mxu0 0
        %1327 = vmatpush1.bf16.xpose.msra.mxu0 0
        %1328 = vmatprep.subr.bf16.mxu0 0
        %1329 = vmatpush1.bf16.xpose.msra.mxu0 0
        %1330 = vmatprep.subr.bf16.mxu0 0
        %1331 = vmatpush1.bf16.xpose.msra.mxu0 0
        %1332 = vmatprep.subr.bf16.mxu0 0
        %1333 = vmatpush1.bf16.xpose.msra.mxu0 0
        %1334 = vmatprep.subr.bf16.mxu0 0
        %1335 = vmatpush1.bf16.xpose.msra.mxu0 0
        %1336 = vmatprep.subr.bf16.mxu0 0
        %1337 = vmatpush1.bf16.xpose.msra.mxu0 0
        %1338 = vmatprep.subr.bf16.mxu0 0
        %1339 = vmatpush1.bf16.xpose.msra.mxu0 0
        %1340 = vmatprep.subr.bf16.mxu0 0
        %1341 = vmatpush1.bf16.xpose.msra.mxu0 0
        %1342 = vmatprep.subr.bf16.mxu0 0
        %1343 = vmatpush1.bf16.xpose.msra.mxu0 0
        %1344 = vmatprep.subr.bf16.mxu0 0
        %1345 = vmatpush1.bf16.xpose.msra.mxu0 0
        %1346 = vmatprep.subr.bf16.mxu0 0
        %1347 = vmatpush1.bf16.xpose.msra.mxu0 0
        %1348 = vmatprep.mubr.bf16.mxu0 0
        %1349 = vmatmul.mubr.bf16.gmra.mrb[0].mxu0 %v1305
        %v1350 = vpop.f32.mrb[0].mxu0
        %v1351 = vadd.f32 0.0, %v1350
        %v1352 = vpop.f32.mrb[0].mxu0
        %v1353 = vpop.f32.mrb[0].mxu0
        %v1354 = vadd.f32 0.0, %v1353
        %v1355 = vpop.f32.mrb[0].mxu0
        %1356 = vmatprep.mubr.bf16.mxu0 0
        %1357 = vmatmul.mubr.bf16.gmra.mrb[0].mxu0 %v1308
        %v1358 = vpop.f32.mrb[0].mxu0
        %v1359 = vadd.f32 0.0, %v1358
        %v1360 = vpop.f32.mrb[0].mxu0
        %v1361 = vpop.f32.mrb[0].mxu0
        %v1362 = vadd.f32 0.0, %v1361
        %v1363 = vpop.f32.mrb[0].mxu0
        %1364 = vdwg.mxu0
        %v1365 = vmul.f32 %v1351, 0.17677669
        %v1366 = vmul.f32 %v1354, 0.17677669
        %v1367 = vmul.f32 %v1359, 0.17677669
        %v1368 = vmul.f32 %v1362, 0.17677669
        %v1369 = vadd.f32 %v1365, %v1117
        %v1370 = vadd.f32 %v1366, %v1118
        %v1371 = vadd.f32 %v1367, %v1119
        %v1372 = vadd.f32 %v1368, %v1120
        %v1373 = vsel %vm1121, %v1369, -inf
        %1374 = vmax.xlane.f32.xlu0 %v1373
        %v1375 = vpop.xlane.xlu0 %1374
        %v1376 = vsel %vm1121, %v1370, -inf
        %1377 = vmax.xlane.f32.xlu0 %v1376
        %v1378 = vpop.xlane.xlu0 %1377
        %v1379 = vsel %vm1121, %v1371, -inf
        %1380 = vmax.xlane.f32.xlu0 %v1379
        %v1381 = vpop.xlane.xlu0 %1380
        %v1382 = vsel %vm1121, %v1372, -inf
        %1383 = vmax.xlane.f32.xlu0 %v1382
        %v1384 = vpop.xlane.xlu0 %1383
        %v1385 = vsub.f32 %v1369, %v1375
        %v1386 = vsub.f32 %v1370, %v1378
        %v1387 = vsub.f32 %v1371, %v1381
        %v1388 = vsub.f32 %v1372, %v1384
        %v1389 = vmul.f32 %v1385, 1.442695
        %v1390 = vpow.pop %v1389
        %v1391 = vmul.f32 %v1386, 1.442695
        %v1392 = vpow.pop %v1391
        %v1393 = vmul.f32 %v1387, 1.442695
        %v1394 = vpow.pop %v1393
        %v1395 = vmul.f32 %v1388, 1.442695
        %v1396 = vpow.pop %v1395
        %v1397 = vsel %vm1121, %v1390, 0.0
        %1398 = vadd.xlane.f32.xlu0 %v1397
        %v1399 = vpop.xlane.xlu0 %1398
        %v1400 = vsel %vm1121, %v1392, 0.0
        %1401 = vadd.xlane.f32.xlu0 %v1400
        %v1402 = vpop.xlane.xlu0 %1401
        %v1403 = vsel %vm1121, %v1394, 0.0
        %1404 = vadd.xlane.f32.xlu0 %v1403
        %v1405 = vpop.xlane.xlu0 %1404
        %v1406 = vsel %vm1121, %v1396, 0.0
        %1407 = vadd.xlane.f32.xlu0 %v1406
        %v1408 = vpop.xlane.xlu0 %1407
        %v1409 = vrcp.pop %v1399
        %v1410 = vrcp.pop %v1402
        %v1411 = vrcp.pop %v1405
        %v1412 = vrcp.pop %v1408
        %v1413 = vmul.f32 %v1390, %v1409
        %v1414 = vmul.f32 %v1392, %v1410
        %v1415 = vmul.f32 %v1394, %v1411
        %v1416 = vmul.f32 %v1396, %v1412
        %v1417 = vpack.c.bf16 %v1414, %v1413
        %v1418 = vpack.c.bf16 %v1416, %v1415
        %1421 = vrot.lane.b32.xlu0 %v1096, 96
        %v1422 = vpop.permute.xlu0 %1421
        %1423 = vrot.lane.b32.xlu0 %v1099, 96
        %v1424 = vpop.permute.xlu0 %1423
        %v1428 = vsel %vm1121, %v1417, 0
        %v1431 = vsel %vm1121, %v1418, 0
        %1433 = vmatprep.subr.bf16.mxu0 0
        %1434 = vmatpush1.bf16.msra.mxu0 %v1422
        %1435 = vmatprep.subr.bf16.mxu0 0
        %1436 = vmatpush1.bf16.msra.mxu0 %v1424
        %1437 = vmatprep.subr.bf16.mxu0 0
        %1438 = vmatpush1.bf16.msra.mxu0 0
        %1439 = vmatprep.subr.bf16.mxu0 0
        %1440 = vmatpush1.bf16.msra.mxu0 0
        %1441 = vmatprep.subr.bf16.mxu0 0
        %1442 = vmatpush1.bf16.msra.mxu0 0
        %1443 = vmatprep.subr.bf16.mxu0 0
        %1444 = vmatpush1.bf16.msra.mxu0 0
        %1445 = vmatprep.subr.bf16.mxu0 0
        %1446 = vmatpush1.bf16.msra.mxu0 0
        %1447 = vmatprep.subr.bf16.mxu0 0
        %1448 = vmatpush1.bf16.msra.mxu0 0
        %1449 = vmatprep.subr.bf16.mxu0 0
        %1450 = vmatpush1.bf16.msra.mxu0 0
        %1451 = vmatprep.subr.bf16.mxu0 0
        %1452 = vmatpush1.bf16.msra.mxu0 0
        %1453 = vmatprep.subr.bf16.mxu0 0
        %1454 = vmatpush1.bf16.msra.mxu0 0
        %1455 = vmatprep.subr.bf16.mxu0 0
        %1456 = vmatpush1.bf16.msra.mxu0 0
        %1457 = vmatprep.subr.bf16.mxu0 0
        %1458 = vmatpush1.bf16.msra.mxu0 0
        %1459 = vmatprep.subr.bf16.mxu0 0
        %1460 = vmatpush1.bf16.msra.mxu0 0
        %1461 = vmatprep.subr.bf16.mxu0 0
        %1462 = vmatpush1.bf16.msra.mxu0 0
        %1463 = vmatprep.subr.bf16.mxu0 0
        %1464 = vmatpush1.bf16.msra.mxu0 0
        %1465 = vmatprep.mubr.bf16.mxu0 0
        %1466 = vmatmul.mubr.bf16.gmra.mrb[0].mxu0 %v1428
        %v1467 = vpop.f32.mrb[0].mxu0
        %v1468 = vadd.f32 0.0, %v1467
        %v1469 = vpop.f32.mrb[0].mxu0
        %v1470 = vpop.f32.mrb[0].mxu0
        %v1471 = vadd.f32 0.0, %v1470
        %v1472 = vpop.f32.mrb[0].mxu0
        %1473 = vmatprep.mubr.bf16.mxu0 0
        %1474 = vmatmul.mubr.bf16.gmra.mrb[0].mxu0 %v1431
        %v1475 = vpop.f32.mrb[0].mxu0
        %v1476 = vadd.f32 0.0, %v1475
        %v1477 = vpop.f32.mrb[0].mxu0
        %v1478 = vpop.f32.mrb[0].mxu0
        %v1479 = vadd.f32 0.0, %v1478
        %v1480 = vpop.f32.mrb[0].mxu0
        %1481 = vdwg.mxu0
        %1482 = vrot.lane.b32.xlu0 %v1094, 64
        %v1483 = vpop.permute.xlu0 %1482
        %1484 = vrot.lane.b32.xlu0 %v1097, 64
        %v1485 = vpop.permute.xlu0 %1484
        %1486 = vrot.lane.b32.xlu0 %v1095, 64
        %v1487 = vpop.permute.xlu0 %1486
        %1488 = vrot.lane.b32.xlu0 %v1098, 64
        %v1489 = vpop.permute.xlu0 %1488
        %v1491 = vsel %vm1121, %v1483, 0
        %v1494 = vsel %vm1121, %v1485, 0
        %v1497 = vsel %vm1121, %v1487, 0
        %v1500 = vsel %vm1121, %v1489, 0
        %1502 = vmatprep.subr.bf16.mxu0 0
        %1503 = vmatpush1.bf16.xpose.msra.mxu0 %v1497
        %1504 = vmatprep.subr.bf16.mxu0 0
        %1505 = vmatpush1.bf16.xpose.msra.mxu0 %v1500
        %1506 = vmatprep.subr.bf16.mxu0 0
        %1507 = vmatpush1.bf16.xpose.msra.mxu0 0
        %1508 = vmatprep.subr.bf16.mxu0 0
        %1509 = vmatpush1.bf16.xpose.msra.mxu0 0
        %1510 = vmatprep.subr.bf16.mxu0 0
        %1511 = vmatpush1.bf16.xpose.msra.mxu0 0
        %1512 = vmatprep.subr.bf16.mxu0 0
        %1513 = vmatpush1.bf16.xpose.msra.mxu0 0
        %1514 = vmatprep.subr.bf16.mxu0 0
        %1515 = vmatpush1.bf16.xpose.msra.mxu0 0
        %1516 = vmatprep.subr.bf16.mxu0 0
        %1517 = vmatpush1.bf16.xpose.msra.mxu0 0
        %1518 = vmatprep.subr.bf16.mxu0 0
        %1519 = vmatpush1.bf16.xpose.msra.mxu0 0
        %1520 = vmatprep.subr.bf16.mxu0 0
        %1521 = vmatpush1.bf16.xpose.msra.mxu0 0
        %1522 = vmatprep.subr.bf16.mxu0 0
        %1523 = vmatpush1.bf16.xpose.msra.mxu0 0
        %1524 = vmatprep.subr.bf16.mxu0 0
        %1525 = vmatpush1.bf16.xpose.msra.mxu0 0
        %1526 = vmatprep.subr.bf16.mxu0 0
        %1527 = vmatpush1.bf16.xpose.msra.mxu0 0
        %1528 = vmatprep.subr.bf16.mxu0 0
        %1529 = vmatpush1.bf16.xpose.msra.mxu0 0
        %1530 = vmatprep.subr.bf16.mxu0 0
        %1531 = vmatpush1.bf16.xpose.msra.mxu0 0
        %1532 = vmatprep.subr.bf16.mxu0 0
        %1533 = vmatpush1.bf16.xpose.msra.mxu0 0
        %1534 = vmatprep.mubr.bf16.mxu0 0
        %1535 = vmatmul.mubr.bf16.gmra.mrb[0].mxu0 %v1491
        %v1536 = vpop.f32.mrb[0].mxu0
        %v1537 = vadd.f32 0.0, %v1536
        %v1538 = vpop.f32.mrb[0].mxu0
        %v1539 = vpop.f32.mrb[0].mxu0
        %v1540 = vadd.f32 0.0, %v1539
        %v1541 = vpop.f32.mrb[0].mxu0
        %1542 = vmatprep.mubr.bf16.mxu0 0
        %1543 = vmatmul.mubr.bf16.gmra.mrb[0].mxu0 %v1494
        %v1544 = vpop.f32.mrb[0].mxu0
        %v1545 = vadd.f32 0.0, %v1544
        %v1546 = vpop.f32.mrb[0].mxu0
        %v1547 = vpop.f32.mrb[0].mxu0
        %v1548 = vadd.f32 0.0, %v1547
        %v1549 = vpop.f32.mrb[0].mxu0
        %1550 = vdwg.mxu0
        %v1551 = vmul.f32 %v1537, 0.17677669
        %v1552 = vmul.f32 %v1540, 0.17677669
        %v1553 = vmul.f32 %v1545, 0.17677669
        %v1554 = vmul.f32 %v1548, 0.17677669
        %v1555 = vadd.f32 %v1551, %v1117
        %v1556 = vadd.f32 %v1552, %v1118
        %v1557 = vadd.f32 %v1553, %v1119
        %v1558 = vadd.f32 %v1554, %v1120
        %v1559 = vsel %vm1121, %v1555, -inf
        %1560 = vmax.xlane.f32.xlu0 %v1559
        %v1561 = vpop.xlane.xlu0 %1560
        %v1562 = vsel %vm1121, %v1556, -inf
        %1563 = vmax.xlane.f32.xlu0 %v1562
        %v1564 = vpop.xlane.xlu0 %1563
        %v1565 = vsel %vm1121, %v1557, -inf
        %1566 = vmax.xlane.f32.xlu0 %v1565
        %v1567 = vpop.xlane.xlu0 %1566
        %v1568 = vsel %vm1121, %v1558, -inf
        %1569 = vmax.xlane.f32.xlu0 %v1568
        %v1570 = vpop.xlane.xlu0 %1569
        %v1571 = vsub.f32 %v1555, %v1561
        %v1572 = vsub.f32 %v1556, %v1564
        %v1573 = vsub.f32 %v1557, %v1567
        %v1574 = vsub.f32 %v1558, %v1570
        %v1575 = vmul.f32 %v1571, 1.442695
        %v1576 = vpow.pop %v1575
        %v1577 = vmul.f32 %v1572, 1.442695
        %v1578 = vpow.pop %v1577
        %v1579 = vmul.f32 %v1573, 1.442695
        %v1580 = vpow.pop %v1579
        %v1581 = vmul.f32 %v1574, 1.442695
        %v1582 = vpow.pop %v1581
        %v1583 = vsel %vm1121, %v1576, 0.0
        %1584 = vadd.xlane.f32.xlu0 %v1583
        %v1585 = vpop.xlane.xlu0 %1584
        %v1586 = vsel %vm1121, %v1578, 0.0
        %1587 = vadd.xlane.f32.xlu0 %v1586
        %v1588 = vpop.xlane.xlu0 %1587
        %v1589 = vsel %vm1121, %v1580, 0.0
        %1590 = vadd.xlane.f32.xlu0 %v1589
        %v1591 = vpop.xlane.xlu0 %1590
        %v1592 = vsel %vm1121, %v1582, 0.0
        %1593 = vadd.xlane.f32.xlu0 %v1592
        %v1594 = vpop.xlane.xlu0 %1593
        %v1595 = vrcp.pop %v1585
        %v1596 = vrcp.pop %v1588
        %v1597 = vrcp.pop %v1591
        %v1598 = vrcp.pop %v1594
        %v1599 = vmul.f32 %v1576, %v1595
        %v1600 = vmul.f32 %v1578, %v1596
        %v1601 = vmul.f32 %v1580, %v1597
        %v1602 = vmul.f32 %v1582, %v1598
        %v1603 = vpack.c.bf16 %v1600, %v1599
        %v1604 = vpack.c.bf16 %v1602, %v1601
        %1605 = vrot.lane.b32.xlu0 %v1096, 64
        %v1606 = vpop.permute.xlu0 %1605
        %1607 = vrot.lane.b32.xlu0 %v1099, 64
        %v1608 = vpop.permute.xlu0 %1607
        %v1612 = vsel %vm1121, %v1603, 0
        %v1615 = vsel %vm1121, %v1604, 0
        %1617 = vmatprep.subr.bf16.mxu0 0
        %1618 = vmatpush1.bf16.msra.mxu0 %v1606
        %1619 = vmatprep.subr.bf16.mxu0 0
        %1620 = vmatpush1.bf16.msra.mxu0 %v1608
        %1621 = vmatprep.subr.bf16.mxu0 0
        %1622 = vmatpush1.bf16.msra.mxu0 0
        %1623 = vmatprep.subr.bf16.mxu0 0
        %1624 = vmatpush1.bf16.msra.mxu0 0
        %1625 = vmatprep.subr.bf16.mxu0 0
        %1626 = vmatpush1.bf16.msra.mxu0 0
        %1627 = vmatprep.subr.bf16.mxu0 0
        %1628 = vmatpush1.bf16.msra.mxu0 0
        %1629 = vmatprep.subr.bf16.mxu0 0
        %1630 = vmatpush1.bf16.msra.mxu0 0
        %1631 = vmatprep.subr.bf16.mxu0 0
        %1632 = vmatpush1.bf16.msra.mxu0 0
        %1633 = vmatprep.subr.bf16.mxu0 0
        %1634 = vmatpush1.bf16.msra.mxu0 0
        %1635 = vmatprep.subr.bf16.mxu0 0
        %1636 = vmatpush1.bf16.msra.mxu0 0
        %1637 = vmatprep.subr.bf16.mxu0 0
        %1638 = vmatpush1.bf16.msra.mxu0 0
        %1639 = vmatprep.subr.bf16.mxu0 0
        %1640 = vmatpush1.bf16.msra.mxu0 0
        %1641 = vmatprep.subr.bf16.mxu0 0
        %1642 = vmatpush1.bf16.msra.mxu0 0
        %1643 = vmatprep.subr.bf16.mxu0 0
        %1644 = vmatpush1.bf16.msra.mxu0 0
        %1645 = vmatprep.subr.bf16.mxu0 0
        %1646 = vmatpush1.bf16.msra.mxu0 0
        %1647 = vmatprep.subr.bf16.mxu0 0
        %1648 = vmatpush1.bf16.msra.mxu0 0
        %1649 = vmatprep.mubr.bf16.mxu0 0
        %1650 = vmatmul.mubr.bf16.gmra.mrb[0].mxu0 %v1612
        %v1651 = vpop.f32.mrb[0].mxu0
        %v1652 = vadd.f32 0.0, %v1651
        %v1653 = vpop.f32.mrb[0].mxu0
        %v1654 = vpop.f32.mrb[0].mxu0
        %v1655 = vadd.f32 0.0, %v1654
        %v1656 = vpop.f32.mrb[0].mxu0
        %1657 = vmatprep.mubr.bf16.mxu0 0
        %1658 = vmatmul.mubr.bf16.gmra.mrb[0].mxu0 %v1615
        %v1659 = vpop.f32.mrb[0].mxu0
        %v1660 = vadd.f32 0.0, %v1659
        %v1661 = vpop.f32.mrb[0].mxu0
        %v1662 = vpop.f32.mrb[0].mxu0
        %v1663 = vadd.f32 0.0, %v1662
        %v1664 = vpop.f32.mrb[0].mxu0
        %1665 = vdwg.mxu0
        %1666 = vrot.lane.b32.xlu0 %v1094, 32
        %v1667 = vpop.permute.xlu0 %1666
        %1668 = vrot.lane.b32.xlu0 %v1097, 32
        %v1669 = vpop.permute.xlu0 %1668
        %1670 = vrot.lane.b32.xlu0 %v1095, 32
        %v1671 = vpop.permute.xlu0 %1670
        %1672 = vrot.lane.b32.xlu0 %v1098, 32
        %v1673 = vpop.permute.xlu0 %1672
        %v1675 = vsel %vm1121, %v1667, 0
        %v1678 = vsel %vm1121, %v1669, 0
        %v1681 = vsel %vm1121, %v1671, 0
        %v1684 = vsel %vm1121, %v1673, 0
        %1686 = vmatprep.subr.bf16.mxu0 0
        %1687 = vmatpush1.bf16.xpose.msra.mxu0 %v1681
        %1688 = vmatprep.subr.bf16.mxu0 0
        %1689 = vmatpush1.bf16.xpose.msra.mxu0 %v1684
        %1690 = vmatprep.subr.bf16.mxu0 0
        %1691 = vmatpush1.bf16.xpose.msra.mxu0 0
        %1692 = vmatprep.subr.bf16.mxu0 0
        %1693 = vmatpush1.bf16.xpose.msra.mxu0 0
        %1694 = vmatprep.subr.bf16.mxu0 0
        %1695 = vmatpush1.bf16.xpose.msra.mxu0 0
        %1696 = vmatprep.subr.bf16.mxu0 0
        %1697 = vmatpush1.bf16.xpose.msra.mxu0 0
        %1698 = vmatprep.subr.bf16.mxu0 0
        %1699 = vmatpush1.bf16.xpose.msra.mxu0 0
        %1700 = vmatprep.subr.bf16.mxu0 0
        %1701 = vmatpush1.bf16.xpose.msra.mxu0 0
        %1702 = vmatprep.subr.bf16.mxu0 0
        %1703 = vmatpush1.bf16.xpose.msra.mxu0 0
        %1704 = vmatprep.subr.bf16.mxu0 0
        %1705 = vmatpush1.bf16.xpose.msra.mxu0 0
        %1706 = vmatprep.subr.bf16.mxu0 0
        %1707 = vmatpush1.bf16.xpose.msra.mxu0 0
        %1708 = vmatprep.subr.bf16.mxu0 0
        %1709 = vmatpush1.bf16.xpose.msra.mxu0 0
        %1710 = vmatprep.subr.bf16.mxu0 0
        %1711 = vmatpush1.bf16.xpose.msra.mxu0 0
        %1712 = vmatprep.subr.bf16.mxu0 0
        %1713 = vmatpush1.bf16.xpose.msra.mxu0 0
        %1714 = vmatprep.subr.bf16.mxu0 0
        %1715 = vmatpush1.bf16.xpose.msra.mxu0 0
        %1716 = vmatprep.subr.bf16.mxu0 0
        %1717 = vmatpush1.bf16.xpose.msra.mxu0 0
        %1718 = vmatprep.mubr.bf16.mxu0 0
        %1719 = vmatmul.mubr.bf16.gmra.mrb[0].mxu0 %v1675
        %v1720 = vpop.f32.mrb[0].mxu0
        %v1721 = vadd.f32 0.0, %v1720
        %v1722 = vpop.f32.mrb[0].mxu0
        %v1723 = vpop.f32.mrb[0].mxu0
        %v1724 = vadd.f32 0.0, %v1723
        %v1725 = vpop.f32.mrb[0].mxu0
        %1726 = vmatprep.mubr.bf16.mxu0 0
        %1727 = vmatmul.mubr.bf16.gmra.mrb[0].mxu0 %v1678
        %v1728 = vpop.f32.mrb[0].mxu0
        %v1729 = vadd.f32 0.0, %v1728
        %v1730 = vpop.f32.mrb[0].mxu0
        %v1731 = vpop.f32.mrb[0].mxu0
        %v1732 = vadd.f32 0.0, %v1731
        %v1733 = vpop.f32.mrb[0].mxu0
        %1734 = vdwg.mxu0
        %v1735 = vmul.f32 %v1721, 0.17677669
        %v1736 = vmul.f32 %v1724, 0.17677669
        %v1737 = vmul.f32 %v1729, 0.17677669
        %v1738 = vmul.f32 %v1732, 0.17677669
        %v1739 = vadd.f32 %v1735, %v1117
        %v1740 = vadd.f32 %v1736, %v1118
        %v1741 = vadd.f32 %v1737, %v1119
        %v1742 = vadd.f32 %v1738, %v1120
        %v1743 = vsel %vm1121, %v1739, -inf
        %1744 = vmax.xlane.f32.xlu0 %v1743
        %v1745 = vpop.xlane.xlu0 %1744
        %v1746 = vsel %vm1121, %v1740, -inf
        %1747 = vmax.xlane.f32.xlu0 %v1746
        %v1748 = vpop.xlane.xlu0 %1747
        %v1749 = vsel %vm1121, %v1741, -inf
        %1750 = vmax.xlane.f32.xlu0 %v1749
        %v1751 = vpop.xlane.xlu0 %1750
        %v1752 = vsel %vm1121, %v1742, -inf
        %1753 = vmax.xlane.f32.xlu0 %v1752
        %v1754 = vpop.xlane.xlu0 %1753
        %v1755 = vsub.f32 %v1739, %v1745
        %v1756 = vsub.f32 %v1740, %v1748
        %v1757 = vsub.f32 %v1741, %v1751
        %v1758 = vsub.f32 %v1742, %v1754
        %v1759 = vmul.f32 %v1755, 1.442695
        %v1760 = vpow.pop %v1759
        %v1761 = vmul.f32 %v1756, 1.442695
        %v1762 = vpow.pop %v1761
        %v1763 = vmul.f32 %v1757, 1.442695
        %v1764 = vpow.pop %v1763
        %v1765 = vmul.f32 %v1758, 1.442695
        %v1766 = vpow.pop %v1765
        %v1767 = vsel %vm1121, %v1760, 0.0
        %1768 = vadd.xlane.f32.xlu0 %v1767
        %v1769 = vpop.xlane.xlu0 %1768
        %v1770 = vsel %vm1121, %v1762, 0.0
        %1771 = vadd.xlane.f32.xlu0 %v1770
        %v1772 = vpop.xlane.xlu0 %1771
        %v1773 = vsel %vm1121, %v1764, 0.0
        %1774 = vadd.xlane.f32.xlu0 %v1773
        %v1775 = vpop.xlane.xlu0 %1774
        %v1776 = vsel %vm1121, %v1766, 0.0
        %1777 = vadd.xlane.f32.xlu0 %v1776
        %v1778 = vpop.xlane.xlu0 %1777
        %v1779 = vrcp.pop %v1769
        %v1780 = vrcp.pop %v1772
        %v1781 = vrcp.pop %v1775
        %v1782 = vrcp.pop %v1778
        %v1783 = vmul.f32 %v1760, %v1779
        %v1784 = vmul.f32 %v1762, %v1780
        %v1785 = vmul.f32 %v1764, %v1781
        %v1786 = vmul.f32 %v1766, %v1782
        %v1787 = vpack.c.bf16 %v1784, %v1783
        %v1788 = vpack.c.bf16 %v1786, %v1785
        %1789 = vrot.lane.b32.xlu0 %v1096, 32
        %v1790 = vpop.permute.xlu0 %1789
        %1791 = vrot.lane.b32.xlu0 %v1099, 32
        %v1792 = vpop.permute.xlu0 %1791
        %v1796 = vsel %vm1121, %v1787, 0
        %v1799 = vsel %vm1121, %v1788, 0
        %1801 = vmatprep.subr.bf16.mxu0 0
        %1802 = vmatpush1.bf16.msra.mxu0 %v1790
        %1803 = vmatprep.subr.bf16.mxu0 0
        %1804 = vmatpush1.bf16.msra.mxu0 %v1792
        %1805 = vmatprep.subr.bf16.mxu0 0
        %1806 = vmatpush1.bf16.msra.mxu0 0
        %1807 = vmatprep.subr.bf16.mxu0 0
        %1808 = vmatpush1.bf16.msra.mxu0 0
        %1809 = vmatprep.subr.bf16.mxu0 0
        %1810 = vmatpush1.bf16.msra.mxu0 0
        %1811 = vmatprep.subr.bf16.mxu0 0
        %1812 = vmatpush1.bf16.msra.mxu0 0
        %1813 = vmatprep.subr.bf16.mxu0 0
        %1814 = vmatpush1.bf16.msra.mxu0 0
        %1815 = vmatprep.subr.bf16.mxu0 0
        %1816 = vmatpush1.bf16.msra.mxu0 0
        %1817 = vmatprep.subr.bf16.mxu0 0
        %1818 = vmatpush1.bf16.msra.mxu0 0
        %1819 = vmatprep.subr.bf16.mxu0 0
        %1820 = vmatpush1.bf16.msra.mxu0 0
        %1821 = vmatprep.subr.bf16.mxu0 0
        %1822 = vmatpush1.bf16.msra.mxu0 0
        %1823 = vmatprep.subr.bf16.mxu0 0
        %1824 = vmatpush1.bf16.msra.mxu0 0
        %1825 = vmatprep.subr.bf16.mxu0 0
        %1826 = vmatpush1.bf16.msra.mxu0 0
        %1827 = vmatprep.subr.bf16.mxu0 0
        %1828 = vmatpush1.bf16.msra.mxu0 0
        %1829 = vmatprep.subr.bf16.mxu0 0
        %1830 = vmatpush1.bf16.msra.mxu0 0
        %1831 = vmatprep.subr.bf16.mxu0 0
        %1832 = vmatpush1.bf16.msra.mxu0 0
        %1833 = vmatprep.mubr.bf16.mxu0 0
        %1834 = vmatmul.mubr.bf16.gmra.mrb[0].mxu0 %v1796
        %v1835 = vpop.f32.mrb[0].mxu0
        %v1836 = vadd.f32 0.0, %v1835
        %v1837 = vpop.f32.mrb[0].mxu0
        %v1838 = vpop.f32.mrb[0].mxu0
        %v1839 = vadd.f32 0.0, %v1838
        %v1840 = vpop.f32.mrb[0].mxu0
        %1841 = vmatprep.mubr.bf16.mxu0 0
        %1842 = vmatmul.mubr.bf16.gmra.mrb[0].mxu0 %v1799
        %v1843 = vpop.f32.mrb[0].mxu0
        %v1844 = vadd.f32 0.0, %v1843
        %v1845 = vpop.f32.mrb[0].mxu0
        %v1846 = vpop.f32.mrb[0].mxu0
        %v1847 = vadd.f32 0.0, %v1846
        %v1848 = vpop.f32.mrb[0].mxu0
        %1849 = vdwg.mxu0
        %1854 = vrot.lane.b32.xlu0 %v1468, 32
        %v1855 = vpop.permute.xlu0 %1854
        %1856 = vrot.lane.b32.xlu0 %v1471, 32
        %v1857 = vpop.permute.xlu0 %1856
        %1858 = vrot.lane.b32.xlu0 %v1476, 32
        %v1859 = vpop.permute.xlu0 %1858
        %1860 = vrot.lane.b32.xlu0 %v1479, 32
        %v1861 = vpop.permute.xlu0 %1860
        %1870 = vrot.lane.b32.xlu0 %v1652, 64
        %v1871 = vpop.permute.xlu0 %1870
        %1872 = vrot.lane.b32.xlu0 %v1655, 64
        %v1873 = vpop.permute.xlu0 %1872
        %1874 = vrot.lane.b32.xlu0 %v1660, 64
        %v1875 = vpop.permute.xlu0 %1874
        %1876 = vrot.lane.b32.xlu0 %v1663, 64
        %v1877 = vpop.permute.xlu0 %1876
        %1886 = vrot.lane.b32.xlu0 %v1836, 96
        %v1887 = vpop.permute.xlu0 %1886
        %1888 = vrot.lane.b32.xlu0 %v1839, 96
        %v1889 = vpop.permute.xlu0 %1888
        %1890 = vrot.lane.b32.xlu0 %v1844, 96
        %v1891 = vpop.permute.xlu0 %1890
        %1892 = vrot.lane.b32.xlu0 %v1847, 96
        %v1893 = vpop.permute.xlu0 %1892
        %v1898 = vsel %vm1121, %v1278, %v1855
        %v1899 = vsel %vm1121, %v1281, %v1857
        %v1900 = vsel %vm1121, %v1286, %v1859
        %v1901 = vsel %vm1121, %v1289, %v1861
        %vm1902 = vcmask 523264
        %v1903 = vsel %vm1902, %v1898, %v1871
        %v1904 = vsel %vm1902, %v1899, %v1873
        %v1905 = vsel %vm1902, %v1900, %v1875
        %v1906 = vsel %vm1902, %v1901, %v1877
        %vm1907 = vcmask 785408
        %v1908 = vsel %vm1907, %v1903, %v1887
        %v1909 = vsel %vm1907, %v1904, %v1889
        %v1910 = vsel %vm1907, %v1905, %v1891
        %v1911 = vsel %vm1907, %v1906, %v1893
        %v1913 = vsel %vm1121, %v1100, 0
        %v1916 = vsel %vm1121, %v1103, 0
        %v1919 = vsel %vm1121, %v1101, 0
        %v1922 = vsel %vm1121, %v1104, 0
        %1924 = vmatprep.subr.bf16.mxu0 0
        %1925 = vmatpush1.bf16.xpose.msra.mxu0 %v1919
        %1926 = vmatprep.subr.bf16.mxu0 0
        %1927 = vmatpush1.bf16.xpose.msra.mxu0 %v1922
        %1928 = vmatprep.subr.bf16.mxu0 0
        %1929 = vmatpush1.bf16.xpose.msra.mxu0 0
        %1930 = vmatprep.subr.bf16.mxu0 0
        %1931 = vmatpush1.bf16.xpose.msra.mxu0 0
        %1932 = vmatprep.subr.bf16.mxu0 0
        %1933 = vmatpush1.bf16.xpose.msra.mxu0 0
        %1934 = vmatprep.subr.bf16.mxu0 0
        %1935 = vmatpush1.bf16.xpose.msra.mxu0 0
        %1936 = vmatprep.subr.bf16.mxu0 0
        %1937 = vmatpush1.bf16.xpose.msra.mxu0 0
        %1938 = vmatprep.subr.bf16.mxu0 0
        %1939 = vmatpush1.bf16.xpose.msra.mxu0 0
        %1940 = vmatprep.subr.bf16.mxu0 0
        %1941 = vmatpush1.bf16.xpose.msra.mxu0 0
        %1942 = vmatprep.subr.bf16.mxu0 0
        %1943 = vmatpush1.bf16.xpose.msra.mxu0 0
        %1944 = vmatprep.subr.bf16.mxu0 0
        %1945 = vmatpush1.bf16.xpose.msra.mxu0 0
        %1946 = vmatprep.subr.bf16.mxu0 0
        %1947 = vmatpush1.bf16.xpose.msra.mxu0 0
        %1948 = vmatprep.subr.bf16.mxu0 0
        %1949 = vmatpush1.bf16.xpose.msra.mxu0 0
        %1950 = vmatprep.subr.bf16.mxu0 0
        %1951 = vmatpush1.bf16.xpose.msra.mxu0 0
        %1952 = vmatprep.subr.bf16.mxu0 0
        %1953 = vmatpush1.bf16.xpose.msra.mxu0 0
        %1954 = vmatprep.subr.bf16.mxu0 0
        %1955 = vmatpush1.bf16.xpose.msra.mxu0 0
        %1956 = vmatprep.mubr.bf16.mxu0 0
        %1957 = vmatmul.mubr.bf16.gmra.mrb[0].mxu0 %v1913
        %v1958 = vpop.f32.mrb[0].mxu0
        %v1959 = vadd.f32 0.0, %v1958
        %v1960 = vpop.f32.mrb[0].mxu0
        %v1961 = vpop.f32.mrb[0].mxu0
        %v1962 = vadd.f32 0.0, %v1961
        %v1963 = vpop.f32.mrb[0].mxu0
        %1964 = vmatprep.mubr.bf16.mxu0 0
        %1965 = vmatmul.mubr.bf16.gmra.mrb[0].mxu0 %v1916
        %v1966 = vpop.f32.mrb[0].mxu0
        %v1967 = vadd.f32 0.0, %v1966
        %v1968 = vpop.f32.mrb[0].mxu0
        %v1969 = vpop.f32.mrb[0].mxu0
        %v1970 = vadd.f32 0.0, %v1969
        %v1971 = vpop.f32.mrb[0].mxu0
        %1972 = vdwg.mxu0
        %v1973 = vmul.f32 %v1959, 0.17677669
        %v1974 = vmul.f32 %v1962, 0.17677669
        %v1975 = vmul.f32 %v1967, 0.17677669
        %v1976 = vmul.f32 %v1970, 0.17677669
        %v1977 = vadd.f32 %v1973, %v1117
        %v1978 = vadd.f32 %v1974, %v1118
        %v1979 = vadd.f32 %v1975, %v1119
        %v1980 = vadd.f32 %v1976, %v1120
        %v1981 = vsel %vm1121, %v1977, -inf
        %1982 = vmax.xlane.f32.xlu0 %v1981
        %v1983 = vpop.xlane.xlu0 %1982
        %v1984 = vsel %vm1121, %v1978, -inf
        %1985 = vmax.xlane.f32.xlu0 %v1984
        %v1986 = vpop.xlane.xlu0 %1985
        %v1987 = vsel %vm1121, %v1979, -inf
        %1988 = vmax.xlane.f32.xlu0 %v1987
        %v1989 = vpop.xlane.xlu0 %1988
        %v1990 = vsel %vm1121, %v1980, -inf
        %1991 = vmax.xlane.f32.xlu0 %v1990
        %v1992 = vpop.xlane.xlu0 %1991
        %v1993 = vsub.f32 %v1977, %v1983
        %v1994 = vsub.f32 %v1978, %v1986
        %v1995 = vsub.f32 %v1979, %v1989
        %v1996 = vsub.f32 %v1980, %v1992
        %v1997 = vmul.f32 %v1993, 1.442695
        %v1998 = vpow.pop %v1997
        %v1999 = vmul.f32 %v1994, 1.442695
        %v2000 = vpow.pop %v1999
        %v2001 = vmul.f32 %v1995, 1.442695
        %v2002 = vpow.pop %v2001
        %v2003 = vmul.f32 %v1996, 1.442695
        %v2004 = vpow.pop %v2003
        %v2005 = vsel %vm1121, %v1998, 0.0
        %2006 = vadd.xlane.f32.xlu0 %v2005
        %v2007 = vpop.xlane.xlu0 %2006
        %v2008 = vsel %vm1121, %v2000, 0.0
        %2009 = vadd.xlane.f32.xlu0 %v2008
        %v2010 = vpop.xlane.xlu0 %2009
        %v2011 = vsel %vm1121, %v2002, 0.0
        %2012 = vadd.xlane.f32.xlu0 %v2011
        %v2013 = vpop.xlane.xlu0 %2012
        %v2014 = vsel %vm1121, %v2004, 0.0
        %2015 = vadd.xlane.f32.xlu0 %v2014
        %v2016 = vpop.xlane.xlu0 %2015
        %v2017 = vrcp.pop %v2007
        %v2018 = vrcp.pop %v2010
        %v2019 = vrcp.pop %v2013
        %v2020 = vrcp.pop %v2016
        %v2021 = vmul.f32 %v1998, %v2017
        %v2022 = vmul.f32 %v2000, %v2018
        %v2023 = vmul.f32 %v2002, %v2019
        %v2024 = vmul.f32 %v2004, %v2020
        %v2025 = vpack.c.bf16 %v2022, %v2021
        %v2026 = vpack.c.bf16 %v2024, %v2023
        %v2028 = vsel %vm1121, %v2025, 0
        %v2031 = vsel %vm1121, %v2026, 0
        %2033 = vmatprep.subr.bf16.mxu0 0
        %2034 = vmatpush1.bf16.msra.mxu0 %v1102
        %2035 = vmatprep.subr.bf16.mxu0 0
        %2036 = vmatpush1.bf16.msra.mxu0 %v1105
        %2037 = vmatprep.subr.bf16.mxu0 0
        %2038 = vmatpush1.bf16.msra.mxu0 0
        %2039 = vmatprep.subr.bf16.mxu0 0
        %2040 = vmatpush1.bf16.msra.mxu0 0
        %2041 = vmatprep.subr.bf16.mxu0 0
        %2042 = vmatpush1.bf16.msra.mxu0 0
        %2043 = vmatprep.subr.bf16.mxu0 0
        %2044 = vmatpush1.bf16.msra.mxu0 0
        %2045 = vmatprep.subr.bf16.mxu0 0
        %2046 = vmatpush1.bf16.msra.mxu0 0
        %2047 = vmatprep.subr.bf16.mxu0 0
        %2048 = vmatpush1.bf16.msra.mxu0 0
        %2049 = vmatprep.subr.bf16.mxu0 0
        %2050 = vmatpush1.bf16.msra.mxu0 0
        %2051 = vmatprep.subr.bf16.mxu0 0
        %2052 = vmatpush1.bf16.msra.mxu0 0
        %2053 = vmatprep.subr.bf16.mxu0 0
        %2054 = vmatpush1.bf16.msra.mxu0 0
        %2055 = vmatprep.subr.bf16.mxu0 0
        %2056 = vmatpush1.bf16.msra.mxu0 0
        %2057 = vmatprep.subr.bf16.mxu0 0
        %2058 = vmatpush1.bf16.msra.mxu0 0
        %2059 = vmatprep.subr.bf16.mxu0 0
        %2060 = vmatpush1.bf16.msra.mxu0 0
        %2061 = vmatprep.subr.bf16.mxu0 0
        %2062 = vmatpush1.bf16.msra.mxu0 0
        %2063 = vmatprep.subr.bf16.mxu0 0
        %2064 = vmatpush1.bf16.msra.mxu0 0
        %2065 = vmatprep.mubr.bf16.mxu0 0
        %2066 = vmatmul.mubr.bf16.gmra.mrb[0].mxu0 %v2028
        %v2067 = vpop.f32.mrb[0].mxu0
        %v2068 = vadd.f32 0.0, %v2067
        %v2069 = vpop.f32.mrb[0].mxu0
        %v2070 = vpop.f32.mrb[0].mxu0
        %v2071 = vadd.f32 0.0, %v2070
        %v2072 = vpop.f32.mrb[0].mxu0
        %2073 = vmatprep.mubr.bf16.mxu0 0
        %2074 = vmatmul.mubr.bf16.gmra.mrb[0].mxu0 %v2031
        %v2075 = vpop.f32.mrb[0].mxu0
        %v2076 = vadd.f32 0.0, %v2075
        %v2077 = vpop.f32.mrb[0].mxu0
        %v2078 = vpop.f32.mrb[0].mxu0
        %v2079 = vadd.f32 0.0, %v2078
        %v2080 = vpop.f32.mrb[0].mxu0
        %2081 = vdwg.mxu0
        %2084 = vrot.lane.b32.xlu0 %v1100, 96
        %v2085 = vpop.permute.xlu0 %2084
        %2086 = vrot.lane.b32.xlu0 %v1103, 96
        %v2087 = vpop.permute.xlu0 %2086
        %2090 = vrot.lane.b32.xlu0 %v1101, 96
        %v2091 = vpop.permute.xlu0 %2090
        %2092 = vrot.lane.b32.xlu0 %v1104, 96
        %v2093 = vpop.permute.xlu0 %2092
        %v2095 = vsel %vm1121, %v2085, 0
        %v2098 = vsel %vm1121, %v2087, 0
        %v2101 = vsel %vm1121, %v2091, 0
        %v2104 = vsel %vm1121, %v2093, 0
        %2106 = vmatprep.subr.bf16.mxu0 0
        %2107 = vmatpush1.bf16.xpose.msra.mxu0 %v2101
        %2108 = vmatprep.subr.bf16.mxu0 0
        %2109 = vmatpush1.bf16.xpose.msra.mxu0 %v2104
        %2110 = vmatprep.subr.bf16.mxu0 0
        %2111 = vmatpush1.bf16.xpose.msra.mxu0 0
        %2112 = vmatprep.subr.bf16.mxu0 0
        %2113 = vmatpush1.bf16.xpose.msra.mxu0 0
        %2114 = vmatprep.subr.bf16.mxu0 0
        %2115 = vmatpush1.bf16.xpose.msra.mxu0 0
        %2116 = vmatprep.subr.bf16.mxu0 0
        %2117 = vmatpush1.bf16.xpose.msra.mxu0 0
        %2118 = vmatprep.subr.bf16.mxu0 0
        %2119 = vmatpush1.bf16.xpose.msra.mxu0 0
        %2120 = vmatprep.subr.bf16.mxu0 0
        %2121 = vmatpush1.bf16.xpose.msra.mxu0 0
        %2122 = vmatprep.subr.bf16.mxu0 0
        %2123 = vmatpush1.bf16.xpose.msra.mxu0 0
        %2124 = vmatprep.subr.bf16.mxu0 0
        %2125 = vmatpush1.bf16.xpose.msra.mxu0 0
        %2126 = vmatprep.subr.bf16.mxu0 0
        %2127 = vmatpush1.bf16.xpose.msra.mxu0 0
        %2128 = vmatprep.subr.bf16.mxu0 0
        %2129 = vmatpush1.bf16.xpose.msra.mxu0 0
        %2130 = vmatprep.subr.bf16.mxu0 0
        %2131 = vmatpush1.bf16.xpose.msra.mxu0 0
        %2132 = vmatprep.subr.bf16.mxu0 0
        %2133 = vmatpush1.bf16.xpose.msra.mxu0 0
        %2134 = vmatprep.subr.bf16.mxu0 0
        %2135 = vmatpush1.bf16.xpose.msra.mxu0 0
        %2136 = vmatprep.subr.bf16.mxu0 0
        %2137 = vmatpush1.bf16.xpose.msra.mxu0 0
        %2138 = vmatprep.mubr.bf16.mxu0 0
        %2139 = vmatmul.mubr.bf16.gmra.mrb[0].mxu0 %v2095
        %v2140 = vpop.f32.mrb[0].mxu0
        %v2141 = vadd.f32 0.0, %v2140
        %v2142 = vpop.f32.mrb[0].mxu0
        %v2143 = vpop.f32.mrb[0].mxu0
        %v2144 = vadd.f32 0.0, %v2143
        %v2145 = vpop.f32.mrb[0].mxu0
        %2146 = vmatprep.mubr.bf16.mxu0 0
        %2147 = vmatmul.mubr.bf16.gmra.mrb[0].mxu0 %v2098
        %v2148 = vpop.f32.mrb[0].mxu0
        %v2149 = vadd.f32 0.0, %v2148
        %v2150 = vpop.f32.mrb[0].mxu0
        %v2151 = vpop.f32.mrb[0].mxu0
        %v2152 = vadd.f32 0.0, %v2151
        %v2153 = vpop.f32.mrb[0].mxu0
        %2154 = vdwg.mxu0
        %v2155 = vmul.f32 %v2141, 0.17677669
        %v2156 = vmul.f32 %v2144, 0.17677669
        %v2157 = vmul.f32 %v2149, 0.17677669
        %v2158 = vmul.f32 %v2152, 0.17677669
        %v2159 = vadd.f32 %v2155, %v1117
        %v2160 = vadd.f32 %v2156, %v1118
        %v2161 = vadd.f32 %v2157, %v1119
        %v2162 = vadd.f32 %v2158, %v1120
        %v2163 = vsel %vm1121, %v2159, -inf
        %2164 = vmax.xlane.f32.xlu0 %v2163
        %v2165 = vpop.xlane.xlu0 %2164
        %v2166 = vsel %vm1121, %v2160, -inf
        %2167 = vmax.xlane.f32.xlu0 %v2166
        %v2168 = vpop.xlane.xlu0 %2167
        %v2169 = vsel %vm1121, %v2161, -inf
        %2170 = vmax.xlane.f32.xlu0 %v2169
        %v2171 = vpop.xlane.xlu0 %2170
        %v2172 = vsel %vm1121, %v2162, -inf
        %2173 = vmax.xlane.f32.xlu0 %v2172
        %v2174 = vpop.xlane.xlu0 %2173
        %v2175 = vsub.f32 %v2159, %v2165
        %v2176 = vsub.f32 %v2160, %v2168
        %v2177 = vsub.f32 %v2161, %v2171
        %v2178 = vsub.f32 %v2162, %v2174
        %v2179 = vmul.f32 %v2175, 1.442695
        %v2180 = vpow.pop %v2179
        %v2181 = vmul.f32 %v2176, 1.442695
        %v2182 = vpow.pop %v2181
        %v2183 = vmul.f32 %v2177, 1.442695
        %v2184 = vpow.pop %v2183
        %v2185 = vmul.f32 %v2178, 1.442695
        %v2186 = vpow.pop %v2185
        %v2187 = vsel %vm1121, %v2180, 0.0
        %2188 = vadd.xlane.f32.xlu0 %v2187
        %v2189 = vpop.xlane.xlu0 %2188
        %v2190 = vsel %vm1121, %v2182, 0.0
        %2191 = vadd.xlane.f32.xlu0 %v2190
        %v2192 = vpop.xlane.xlu0 %2191
        %v2193 = vsel %vm1121, %v2184, 0.0
        %2194 = vadd.xlane.f32.xlu0 %v2193
        %v2195 = vpop.xlane.xlu0 %2194
        %v2196 = vsel %vm1121, %v2186, 0.0
        %2197 = vadd.xlane.f32.xlu0 %v2196
        %v2198 = vpop.xlane.xlu0 %2197
        %v2199 = vrcp.pop %v2189
        %v2200 = vrcp.pop %v2192
        %v2201 = vrcp.pop %v2195
        %v2202 = vrcp.pop %v2198
        %v2203 = vmul.f32 %v2180, %v2199
        %v2204 = vmul.f32 %v2182, %v2200
        %v2205 = vmul.f32 %v2184, %v2201
        %v2206 = vmul.f32 %v2186, %v2202
        %v2207 = vpack.c.bf16 %v2204, %v2203
        %v2208 = vpack.c.bf16 %v2206, %v2205
        %2211 = vrot.lane.b32.xlu0 %v1102, 96
        %v2212 = vpop.permute.xlu0 %2211
        %2213 = vrot.lane.b32.xlu0 %v1105, 96
        %v2214 = vpop.permute.xlu0 %2213
        %v2218 = vsel %vm1121, %v2207, 0
        %v2221 = vsel %vm1121, %v2208, 0
        %2223 = vmatprep.subr.bf16.mxu0 0
        %2224 = vmatpush1.bf16.msra.mxu0 %v2212
        %2225 = vmatprep.subr.bf16.mxu0 0
        %2226 = vmatpush1.bf16.msra.mxu0 %v2214
        %2227 = vmatprep.subr.bf16.mxu0 0
        %2228 = vmatpush1.bf16.msra.mxu0 0
        %2229 = vmatprep.subr.bf16.mxu0 0
        %2230 = vmatpush1.bf16.msra.mxu0 0
        %2231 = vmatprep.subr.bf16.mxu0 0
        %2232 = vmatpush1.bf16.msra.mxu0 0
        %2233 = vmatprep.subr.bf16.mxu0 0
        %2234 = vmatpush1.bf16.msra.mxu0 0
        %2235 = vmatprep.subr.bf16.mxu0 0
        %2236 = vmatpush1.bf16.msra.mxu0 0
        %2237 = vmatprep.subr.bf16.mxu0 0
        %2238 = vmatpush1.bf16.msra.mxu0 0
        %2239 = vmatprep.subr.bf16.mxu0 0
        %2240 = vmatpush1.bf16.msra.mxu0 0
        %2241 = vmatprep.subr.bf16.mxu0 0
        %2242 = vmatpush1.bf16.msra.mxu0 0
        %2243 = vmatprep.subr.bf16.mxu0 0
        %2244 = vmatpush1.bf16.msra.mxu0 0
        %2245 = vmatprep.subr.bf16.mxu0 0
        %2246 = vmatpush1.bf16.msra.mxu0 0
        %2247 = vmatprep.subr.bf16.mxu0 0
        %2248 = vmatpush1.bf16.msra.mxu0 0
        %2249 = vmatprep.subr.bf16.mxu0 0
        %2250 = vmatpush1.bf16.msra.mxu0 0
        %2251 = vmatprep.subr.bf16.mxu0 0
        %2252 = vmatpush1.bf16.msra.mxu0 0
        %2253 = vmatprep.subr.bf16.mxu0 0
        %2254 = vmatpush1.bf16.msra.mxu0 0
        %2255 = vmatprep.mubr.bf16.mxu0 0
        %2256 = vmatmul.mubr.bf16.gmra.mrb[0].mxu0 %v2218
        %v2257 = vpop.f32.mrb[0].mxu0
        %v2258 = vadd.f32 0.0, %v2257
        %v2259 = vpop.f32.mrb[0].mxu0
        %v2260 = vpop.f32.mrb[0].mxu0
        %v2261 = vadd.f32 0.0, %v2260
        %v2262 = vpop.f32.mrb[0].mxu0
        %2263 = vmatprep.mubr.bf16.mxu0 0
        %2264 = vmatmul.mubr.bf16.gmra.mrb[0].mxu0 %v2221
        %v2265 = vpop.f32.mrb[0].mxu0
        %v2266 = vadd.f32 0.0, %v2265
        %v2267 = vpop.f32.mrb[0].mxu0
        %v2268 = vpop.f32.mrb[0].mxu0
        %v2269 = vadd.f32 0.0, %v2268
        %v2270 = vpop.f32.mrb[0].mxu0
        %2271 = vdwg.mxu0
        %2272 = vrot.lane.b32.xlu0 %v1100, 64
        %v2273 = vpop.permute.xlu0 %2272
        %2274 = vrot.lane.b32.xlu0 %v1103, 64
        %v2275 = vpop.permute.xlu0 %2274
        %2276 = vrot.lane.b32.xlu0 %v1101, 64
        %v2277 = vpop.permute.xlu0 %2276
        %2278 = vrot.lane.b32.xlu0 %v1104, 64
        %v2279 = vpop.permute.xlu0 %2278
        %v2281 = vsel %vm1121, %v2273, 0
        %v2284 = vsel %vm1121, %v2275, 0
        %v2287 = vsel %vm1121, %v2277, 0
        %v2290 = vsel %vm1121, %v2279, 0
        %2292 = vmatprep.subr.bf16.mxu0 0
        %2293 = vmatpush1.bf16.xpose.msra.mxu0 %v2287
        %2294 = vmatprep.subr.bf16.mxu0 0
        %2295 = vmatpush1.bf16.xpose.msra.mxu0 %v2290
        %2296 = vmatprep.subr.bf16.mxu0 0
        %2297 = vmatpush1.bf16.xpose.msra.mxu0 0
        %2298 = vmatprep.subr.bf16.mxu0 0
        %2299 = vmatpush1.bf16.xpose.msra.mxu0 0
        %2300 = vmatprep.subr.bf16.mxu0 0
        %2301 = vmatpush1.bf16.xpose.msra.mxu0 0
        %2302 = vmatprep.subr.bf16.mxu0 0
        %2303 = vmatpush1.bf16.xpose.msra.mxu0 0
        %2304 = vmatprep.subr.bf16.mxu0 0
        %2305 = vmatpush1.bf16.xpose.msra.mxu0 0
        %2306 = vmatprep.subr.bf16.mxu0 0
        %2307 = vmatpush1.bf16.xpose.msra.mxu0 0
        %2308 = vmatprep.subr.bf16.mxu0 0
        %2309 = vmatpush1.bf16.xpose.msra.mxu0 0
        %2310 = vmatprep.subr.bf16.mxu0 0
        %2311 = vmatpush1.bf16.xpose.msra.mxu0 0
        %2312 = vmatprep.subr.bf16.mxu0 0
        %2313 = vmatpush1.bf16.xpose.msra.mxu0 0
        %2314 = vmatprep.subr.bf16.mxu0 0
        %2315 = vmatpush1.bf16.xpose.msra.mxu0 0
        %2316 = vmatprep.subr.bf16.mxu0 0
        %2317 = vmatpush1.bf16.xpose.msra.mxu0 0
        %2318 = vmatprep.subr.bf16.mxu0 0
        %2319 = vmatpush1.bf16.xpose.msra.mxu0 0
        %2320 = vmatprep.subr.bf16.mxu0 0
        %2321 = vmatpush1.bf16.xpose.msra.mxu0 0
        %2322 = vmatprep.subr.bf16.mxu0 0
        %2323 = vmatpush1.bf16.xpose.msra.mxu0 0
        %2324 = vmatprep.mubr.bf16.mxu0 0
        %2325 = vmatmul.mubr.bf16.gmra.mrb[0].mxu0 %v2281
        %v2326 = vpop.f32.mrb[0].mxu0
        %v2327 = vadd.f32 0.0, %v2326
        %v2328 = vpop.f32.mrb[0].mxu0
        %v2329 = vpop.f32.mrb[0].mxu0
        %v2330 = vadd.f32 0.0, %v2329
        %v2331 = vpop.f32.mrb[0].mxu0
        %2332 = vmatprep.mubr.bf16.mxu0 0
        %2333 = vmatmul.mubr.bf16.gmra.mrb[0].mxu0 %v2284
        %v2334 = vpop.f32.mrb[0].mxu0
        %v2335 = vadd.f32 0.0, %v2334
        %v2336 = vpop.f32.mrb[0].mxu0
        %v2337 = vpop.f32.mrb[0].mxu0
        %v2338 = vadd.f32 0.0, %v2337
        %v2339 = vpop.f32.mrb[0].mxu0
        %2340 = vdwg.mxu0
        %v2341 = vmul.f32 %v2327, 0.17677669
        %v2342 = vmul.f32 %v2330, 0.17677669
        %v2343 = vmul.f32 %v2335, 0.17677669
        %v2344 = vmul.f32 %v2338, 0.17677669
        %v2345 = vadd.f32 %v2341, %v1117
        %v2346 = vadd.f32 %v2342, %v1118
        %v2347 = vadd.f32 %v2343, %v1119
        %v2348 = vadd.f32 %v2344, %v1120
        %v2349 = vsel %vm1121, %v2345, -inf
        %2350 = vmax.xlane.f32.xlu0 %v2349
        %v2351 = vpop.xlane.xlu0 %2350
        %v2352 = vsel %vm1121, %v2346, -inf
        %2353 = vmax.xlane.f32.xlu0 %v2352
        %v2354 = vpop.xlane.xlu0 %2353
        %v2355 = vsel %vm1121, %v2347, -inf
        %2356 = vmax.xlane.f32.xlu0 %v2355
        %v2357 = vpop.xlane.xlu0 %2356
        %v2358 = vsel %vm1121, %v2348, -inf
        %2359 = vmax.xlane.f32.xlu0 %v2358
        %v2360 = vpop.xlane.xlu0 %2359
        %v2361 = vsub.f32 %v2345, %v2351
        %v2362 = vsub.f32 %v2346, %v2354
        %v2363 = vsub.f32 %v2347, %v2357
        %v2364 = vsub.f32 %v2348, %v2360
        %v2365 = vmul.f32 %v2361, 1.442695
        %v2366 = vpow.pop %v2365
        %v2367 = vmul.f32 %v2362, 1.442695
        %v2368 = vpow.pop %v2367
        %v2369 = vmul.f32 %v2363, 1.442695
        %v2370 = vpow.pop %v2369
        %v2371 = vmul.f32 %v2364, 1.442695
        %v2372 = vpow.pop %v2371
        %v2373 = vsel %vm1121, %v2366, 0.0
        %2374 = vadd.xlane.f32.xlu0 %v2373
        %v2375 = vpop.xlane.xlu0 %2374
        %v2376 = vsel %vm1121, %v2368, 0.0
        %2377 = vadd.xlane.f32.xlu0 %v2376
        %v2378 = vpop.xlane.xlu0 %2377
        %v2379 = vsel %vm1121, %v2370, 0.0
        %2380 = vadd.xlane.f32.xlu0 %v2379
        %v2381 = vpop.xlane.xlu0 %2380
        %v2382 = vsel %vm1121, %v2372, 0.0
        %2383 = vadd.xlane.f32.xlu0 %v2382
        %v2384 = vpop.xlane.xlu0 %2383
        %v2385 = vrcp.pop %v2375
        %v2386 = vrcp.pop %v2378
        %v2387 = vrcp.pop %v2381
        %v2388 = vrcp.pop %v2384
        %v2389 = vmul.f32 %v2366, %v2385
        %v2390 = vmul.f32 %v2368, %v2386
        %v2391 = vmul.f32 %v2370, %v2387
        %v2392 = vmul.f32 %v2372, %v2388
        %v2393 = vpack.c.bf16 %v2390, %v2389
        %v2394 = vpack.c.bf16 %v2392, %v2391
        %2395 = vrot.lane.b32.xlu0 %v1102, 64
        %v2396 = vpop.permute.xlu0 %2395
        %2397 = vrot.lane.b32.xlu0 %v1105, 64
        %v2398 = vpop.permute.xlu0 %2397
        %v2402 = vsel %vm1121, %v2393, 0
        %v2405 = vsel %vm1121, %v2394, 0
        %2407 = vmatprep.subr.bf16.mxu0 0
        %2408 = vmatpush1.bf16.msra.mxu0 %v2396
        %2409 = vmatprep.subr.bf16.mxu0 0
        %2410 = vmatpush1.bf16.msra.mxu0 %v2398
        %2411 = vmatprep.subr.bf16.mxu0 0
        %2412 = vmatpush1.bf16.msra.mxu0 0
        %2413 = vmatprep.subr.bf16.mxu0 0
        %2414 = vmatpush1.bf16.msra.mxu0 0
        %2415 = vmatprep.subr.bf16.mxu0 0
        %2416 = vmatpush1.bf16.msra.mxu0 0
        %2417 = vmatprep.subr.bf16.mxu0 0
        %2418 = vmatpush1.bf16.msra.mxu0 0
        %2419 = vmatprep.subr.bf16.mxu0 0
        %2420 = vmatpush1.bf16.msra.mxu0 0
        %2421 = vmatprep.subr.bf16.mxu0 0
        %2422 = vmatpush1.bf16.msra.mxu0 0
        %2423 = vmatprep.subr.bf16.mxu0 0
        %2424 = vmatpush1.bf16.msra.mxu0 0
        %2425 = vmatprep.subr.bf16.mxu0 0
        %2426 = vmatpush1.bf16.msra.mxu0 0
        %2427 = vmatprep.subr.bf16.mxu0 0
        %2428 = vmatpush1.bf16.msra.mxu0 0
        %2429 = vmatprep.subr.bf16.mxu0 0
        %2430 = vmatpush1.bf16.msra.mxu0 0
        %2431 = vmatprep.subr.bf16.mxu0 0
        %2432 = vmatpush1.bf16.msra.mxu0 0
        %2433 = vmatprep.subr.bf16.mxu0 0
        %2434 = vmatpush1.bf16.msra.mxu0 0
        %2435 = vmatprep.subr.bf16.mxu0 0
        %2436 = vmatpush1.bf16.msra.mxu0 0
        %2437 = vmatprep.subr.bf16.mxu0 0
        %2438 = vmatpush1.bf16.msra.mxu0 0
        %2439 = vmatprep.mubr.bf16.mxu0 0
        %2440 = vmatmul.mubr.bf16.gmra.mrb[0].mxu0 %v2402
        %v2441 = vpop.f32.mrb[0].mxu0
        %v2442 = vadd.f32 0.0, %v2441
        %v2443 = vpop.f32.mrb[0].mxu0
        %v2444 = vpop.f32.mrb[0].mxu0
        %v2445 = vadd.f32 0.0, %v2444
        %v2446 = vpop.f32.mrb[0].mxu0
        %2447 = vmatprep.mubr.bf16.mxu0 0
        %2448 = vmatmul.mubr.bf16.gmra.mrb[0].mxu0 %v2405
        %v2449 = vpop.f32.mrb[0].mxu0
        %v2450 = vadd.f32 0.0, %v2449
        %v2451 = vpop.f32.mrb[0].mxu0
        %v2452 = vpop.f32.mrb[0].mxu0
        %v2453 = vadd.f32 0.0, %v2452
        %v2454 = vpop.f32.mrb[0].mxu0
        %2455 = vdwg.mxu0
        %2456 = vrot.lane.b32.xlu0 %v1100, 32
        %v2457 = vpop.permute.xlu0 %2456
        %2458 = vrot.lane.b32.xlu0 %v1103, 32
        %v2459 = vpop.permute.xlu0 %2458
        %2460 = vrot.lane.b32.xlu0 %v1101, 32
        %v2461 = vpop.permute.xlu0 %2460
        %2462 = vrot.lane.b32.xlu0 %v1104, 32
        %v2463 = vpop.permute.xlu0 %2462
        %v2465 = vsel %vm1121, %v2457, 0
        %v2468 = vsel %vm1121, %v2459, 0
        %v2471 = vsel %vm1121, %v2461, 0
        %v2474 = vsel %vm1121, %v2463, 0
        %2476 = vmatprep.subr.bf16.mxu0 0
        %2477 = vmatpush1.bf16.xpose.msra.mxu0 %v2471
        %2478 = vmatprep.subr.bf16.mxu0 0
        %2479 = vmatpush1.bf16.xpose.msra.mxu0 %v2474
        %2480 = vmatprep.subr.bf16.mxu0 0
        %2481 = vmatpush1.bf16.xpose.msra.mxu0 0
        %2482 = vmatprep.subr.bf16.mxu0 0
        %2483 = vmatpush1.bf16.xpose.msra.mxu0 0
        %2484 = vmatprep.subr.bf16.mxu0 0
        %2485 = vmatpush1.bf16.xpose.msra.mxu0 0
        %2486 = vmatprep.subr.bf16.mxu0 0
        %2487 = vmatpush1.bf16.xpose.msra.mxu0 0
        %2488 = vmatprep.subr.bf16.mxu0 0
        %2489 = vmatpush1.bf16.xpose.msra.mxu0 0
        %2490 = vmatprep.subr.bf16.mxu0 0
        %2491 = vmatpush1.bf16.xpose.msra.mxu0 0
        %2492 = vmatprep.subr.bf16.mxu0 0
        %2493 = vmatpush1.bf16.xpose.msra.mxu0 0
        %2494 = vmatprep.subr.bf16.mxu0 0
        %2495 = vmatpush1.bf16.xpose.msra.mxu0 0
        %2496 = vmatprep.subr.bf16.mxu0 0
        %2497 = vmatpush1.bf16.xpose.msra.mxu0 0
        %2498 = vmatprep.subr.bf16.mxu0 0
        %2499 = vmatpush1.bf16.xpose.msra.mxu0 0
        %2500 = vmatprep.subr.bf16.mxu0 0
        %2501 = vmatpush1.bf16.xpose.msra.mxu0 0
        %2502 = vmatprep.subr.bf16.mxu0 0
        %2503 = vmatpush1.bf16.xpose.msra.mxu0 0
        %2504 = vmatprep.subr.bf16.mxu0 0
        %2505 = vmatpush1.bf16.xpose.msra.mxu0 0
        %2506 = vmatprep.subr.bf16.mxu0 0
        %2507 = vmatpush1.bf16.xpose.msra.mxu0 0
        %2508 = vmatprep.mubr.bf16.mxu0 0
        %2509 = vmatmul.mubr.bf16.gmra.mrb[0].mxu0 %v2465
        %v2510 = vpop.f32.mrb[0].mxu0
        %v2511 = vadd.f32 0.0, %v2510
        %v2512 = vpop.f32.mrb[0].mxu0
        %v2513 = vpop.f32.mrb[0].mxu0
        %v2514 = vadd.f32 0.0, %v2513
        %v2515 = vpop.f32.mrb[0].mxu0
        %2516 = vmatprep.mubr.bf16.mxu0 0
        %2517 = vmatmul.mubr.bf16.gmra.mrb[0].mxu0 %v2468
        %v2518 = vpop.f32.mrb[0].mxu0
        %v2519 = vadd.f32 0.0, %v2518
        %v2520 = vpop.f32.mrb[0].mxu0
        %v2521 = vpop.f32.mrb[0].mxu0
        %v2522 = vadd.f32 0.0, %v2521
        %v2523 = vpop.f32.mrb[0].mxu0
        %2524 = vdwg.mxu0
        %v2525 = vmul.f32 %v2511, 0.17677669
        %v2526 = vmul.f32 %v2514, 0.17677669
        %v2527 = vmul.f32 %v2519, 0.17677669
        %v2528 = vmul.f32 %v2522, 0.17677669
        %v2529 = vadd.f32 %v2525, %v1117
        %v2530 = vadd.f32 %v2526, %v1118
        %v2531 = vadd.f32 %v2527, %v1119
        %v2532 = vadd.f32 %v2528, %v1120
        %v2533 = vsel %vm1121, %v2529, -inf
        %2534 = vmax.xlane.f32.xlu0 %v2533
        %v2535 = vpop.xlane.xlu0 %2534
        %v2536 = vsel %vm1121, %v2530, -inf
        %2537 = vmax.xlane.f32.xlu0 %v2536
        %v2538 = vpop.xlane.xlu0 %2537
        %v2539 = vsel %vm1121, %v2531, -inf
        %2540 = vmax.xlane.f32.xlu0 %v2539
        %v2541 = vpop.xlane.xlu0 %2540
        %v2542 = vsel %vm1121, %v2532, -inf
        %2543 = vmax.xlane.f32.xlu0 %v2542
        %v2544 = vpop.xlane.xlu0 %2543
        %v2545 = vsub.f32 %v2529, %v2535
        %v2546 = vsub.f32 %v2530, %v2538
        %v2547 = vsub.f32 %v2531, %v2541
        %v2548 = vsub.f32 %v2532, %v2544
        %v2549 = vmul.f32 %v2545, 1.442695
        %v2550 = vpow.pop %v2549
        %v2551 = vmul.f32 %v2546, 1.442695
        %v2552 = vpow.pop %v2551
        %v2553 = vmul.f32 %v2547, 1.442695
        %v2554 = vpow.pop %v2553
        %v2555 = vmul.f32 %v2548, 1.442695
        %v2556 = vpow.pop %v2555
        %v2557 = vsel %vm1121, %v2550, 0.0
        %2558 = vadd.xlane.f32.xlu0 %v2557
        %v2559 = vpop.xlane.xlu0 %2558
        %v2560 = vsel %vm1121, %v2552, 0.0
        %2561 = vadd.xlane.f32.xlu0 %v2560
        %v2562 = vpop.xlane.xlu0 %2561
        %v2563 = vsel %vm1121, %v2554, 0.0
        %2564 = vadd.xlane.f32.xlu0 %v2563
        %v2565 = vpop.xlane.xlu0 %2564
        %v2566 = vsel %vm1121, %v2556, 0.0
        %2567 = vadd.xlane.f32.xlu0 %v2566
        %v2568 = vpop.xlane.xlu0 %2567
        %v2569 = vrcp.pop %v2559
        %v2570 = vrcp.pop %v2562
        %v2571 = vrcp.pop %v2565
        %v2572 = vrcp.pop %v2568
        %v2573 = vmul.f32 %v2550, %v2569
        %v2574 = vmul.f32 %v2552, %v2570
        %v2575 = vmul.f32 %v2554, %v2571
        %v2576 = vmul.f32 %v2556, %v2572
        %v2577 = vpack.c.bf16 %v2574, %v2573
        %v2578 = vpack.c.bf16 %v2576, %v2575
        %2579 = vrot.lane.b32.xlu0 %v1102, 32
        %v2580 = vpop.permute.xlu0 %2579
        %2581 = vrot.lane.b32.xlu0 %v1105, 32
        %v2582 = vpop.permute.xlu0 %2581
        %v2586 = vsel %vm1121, %v2577, 0
        %v2589 = vsel %vm1121, %v2578, 0
        %2591 = vmatprep.subr.bf16.mxu0 0
        %2592 = vmatpush1.bf16.msra.mxu0 %v2580
        %2593 = vmatprep.subr.bf16.mxu0 0
        %2594 = vmatpush1.bf16.msra.mxu0 %v2582
        %2595 = vmatprep.subr.bf16.mxu0 0
        %2596 = vmatpush1.bf16.msra.mxu0 0
        %2597 = vmatprep.subr.bf16.mxu0 0
        %2598 = vmatpush1.bf16.msra.mxu0 0
        %2599 = vmatprep.subr.bf16.mxu0 0
        %2600 = vmatpush1.bf16.msra.mxu0 0
        %2601 = vmatprep.subr.bf16.mxu0 0
        %2602 = vmatpush1.bf16.msra.mxu0 0
        %2603 = vmatprep.subr.bf16.mxu0 0
        %2604 = vmatpush1.bf16.msra.mxu0 0
        %2605 = vmatprep.subr.bf16.mxu0 0
        %2606 = vmatpush1.bf16.msra.mxu0 0
        %2607 = vmatprep.subr.bf16.mxu0 0
        %2608 = vmatpush1.bf16.msra.mxu0 0
        %2609 = vmatprep.subr.bf16.mxu0 0
        %2610 = vmatpush1.bf16.msra.mxu0 0
        %2611 = vmatprep.subr.bf16.mxu0 0
        %2612 = vmatpush1.bf16.msra.mxu0 0
        %2613 = vmatprep.subr.bf16.mxu0 0
        %2614 = vmatpush1.bf16.msra.mxu0 0
        %2615 = vmatprep.subr.bf16.mxu0 0
        %2616 = vmatpush1.bf16.msra.mxu0 0
        %2617 = vmatprep.subr.bf16.mxu0 0
        %2618 = vmatpush1.bf16.msra.mxu0 0
        %2619 = vmatprep.subr.bf16.mxu0 0
        %2620 = vmatpush1.bf16.msra.mxu0 0
        %2621 = vmatprep.subr.bf16.mxu0 0
        %2622 = vmatpush1.bf16.msra.mxu0 0
        %2623 = vmatprep.mubr.bf16.mxu0 0
        %2624 = vmatmul.mubr.bf16.gmra.mrb[0].mxu0 %v2586
        %v2625 = vpop.f32.mrb[0].mxu0
        %v2626 = vadd.f32 0.0, %v2625
        %v2627 = vpop.f32.mrb[0].mxu0
        %v2628 = vpop.f32.mrb[0].mxu0
        %v2629 = vadd.f32 0.0, %v2628
        %v2630 = vpop.f32.mrb[0].mxu0
        %2631 = vmatprep.mubr.bf16.mxu0 0
        %2632 = vmatmul.mubr.bf16.gmra.mrb[0].mxu0 %v2589
        %v2633 = vpop.f32.mrb[0].mxu0
        %v2634 = vadd.f32 0.0, %v2633
        %v2635 = vpop.f32.mrb[0].mxu0
        %v2636 = vpop.f32.mrb[0].mxu0
        %v2637 = vadd.f32 0.0, %v2636
        %v2638 = vpop.f32.mrb[0].mxu0
        %2639 = vdwg.mxu0
        %2644 = vrot.lane.b32.xlu0 %v2258, 32
        %v2645 = vpop.permute.xlu0 %2644
        %2646 = vrot.lane.b32.xlu0 %v2261, 32
        %v2647 = vpop.permute.xlu0 %2646
        %2648 = vrot.lane.b32.xlu0 %v2266, 32
        %v2649 = vpop.permute.xlu0 %2648
        %2650 = vrot.lane.b32.xlu0 %v2269, 32
        %v2651 = vpop.permute.xlu0 %2650
        %2660 = vrot.lane.b32.xlu0 %v2442, 64
        %v2661 = vpop.permute.xlu0 %2660
        %2662 = vrot.lane.b32.xlu0 %v2445, 64
        %v2663 = vpop.permute.xlu0 %2662
        %2664 = vrot.lane.b32.xlu0 %v2450, 64
        %v2665 = vpop.permute.xlu0 %2664
        %2666 = vrot.lane.b32.xlu0 %v2453, 64
        %v2667 = vpop.permute.xlu0 %2666
        %2676 = vrot.lane.b32.xlu0 %v2626, 96
        %v2677 = vpop.permute.xlu0 %2676
        %2678 = vrot.lane.b32.xlu0 %v2629, 96
        %v2679 = vpop.permute.xlu0 %2678
        %2680 = vrot.lane.b32.xlu0 %v2634, 96
        %v2681 = vpop.permute.xlu0 %2680
        %2682 = vrot.lane.b32.xlu0 %v2637, 96
        %v2683 = vpop.permute.xlu0 %2682
        %v2688 = vsel %vm1121, %v2068, %v2645
        %v2689 = vsel %vm1121, %v2071, %v2647
        %v2690 = vsel %vm1121, %v2076, %v2649
        %v2691 = vsel %vm1121, %v2079, %v2651
        %v2692 = vsel %vm1902, %v2688, %v2661
        %v2693 = vsel %vm1902, %v2689, %v2663
        %v2694 = vsel %vm1902, %v2690, %v2665
        %v2695 = vsel %vm1902, %v2691, %v2667
        %v2696 = vsel %vm1907, %v2692, %v2677
        %v2697 = vsel %vm1907, %v2693, %v2679
        %v2698 = vsel %vm1907, %v2694, %v2681
        %v2699 = vsel %vm1907, %v2695, %v2683
        %v2700 = vpack.c.bf16 %v1909, %v1908
        %v2701 = vpack.c.bf16 %v1911, %v1910
        %v2702 = vpack.c.bf16 %v2697, %v2696
        %v2703 = vpack.c.bf16 %v2699, %v2698
        %v2704 = vld [vmem:[%s611] sm:$0xf]
        %v2705 = vld [vmem:[%s611 + $0x4] sm:$0xf]
        %v2706 = vld [vmem:[%s611 + $0x8] sm:$0xf]
        %v2707 = vld [vmem:[%s611 + $0xc] sm:$0xf]
        %v2708 = vld [vmem:[%s611 + $0x10] sm:$0xf]
        %v2709 = vld [vmem:[%s611 + $0x14] sm:$0xf]
        %v2710 = vld [vmem:[%s611 + $0x18] sm:$0xf]
        %v2711 = vld [vmem:[%s611 + $0x1c] sm:$0xf]
        %v2712 = vld [vmem:[%s611 + $0x20] sm:$0xf]
        %v2713 = vld [vmem:[%s611 + $0x24] sm:$0xf]
        %v2714 = vld [vmem:[%s611 + $0x28] sm:$0xf]
        %v2715 = vld [vmem:[%s611 + $0x2c] sm:$0xf]
        %v2716 = vld [vmem:[%s611 + $0x30] sm:$0xf]
        %v2717 = vld [vmem:[%s611 + $0x34] sm:$0xf]
        %v2718 = vld [vmem:[%s611 + $0x38] sm:$0xf]
        %v2719 = vld [vmem:[%s611 + $0x3c] sm:$0xf]
        %v2720 = vld [vmem:[%s725] sm:$0x1]
        %v2722 = vlaneseq
        %v2723 = vshrl.u32 %v2722, 7
        %v2724 = vsub.s32 0, %v2723
        %v2725 = vrot.slane %v2720, %v2724
        %v2743 = vunpack.c.l.b16 %v2704
        %v2744 = vunpack.c.l.b16 %v2705
        %v2745 = vunpack.c.l.b16 %v2706
        %v2746 = vunpack.c.l.b16 %v2707
        %v2747 = vunpack.c.l.b16 %v2708
        %v2748 = vunpack.c.l.b16 %v2709
        %v2749 = vunpack.c.l.b16 %v2710
        %v2750 = vunpack.c.l.b16 %v2711
        %v2751 = vunpack.c.l.b16 %v2712
        %v2752 = vunpack.c.l.b16 %v2713
        %v2753 = vunpack.c.l.b16 %v2714
        %v2754 = vunpack.c.l.b16 %v2715
        %v2755 = vunpack.c.l.b16 %v2716
        %v2756 = vunpack.c.l.b16 %v2717
        %v2757 = vunpack.c.l.b16 %v2718
        %v2758 = vunpack.c.l.b16 %v2719
        %v2759 = vpack.c.b16 %v2744, %v2743
        %v2760 = vpack.c.b16 %v2746, %v2745
        %v2761 = vpack.c.b16 %v2748, %v2747
        %v2762 = vpack.c.b16 %v2750, %v2749
        %v2763 = vpack.c.b16 %v2752, %v2751
        %v2764 = vpack.c.b16 %v2754, %v2753
        %v2765 = vpack.c.b16 %v2756, %v2755
        %v2766 = vpack.c.b16 %v2758, %v2757
        %2775 = vmatprep.subr.bf16.mxu0 0
        %2776 = vmatpush1.bf16.msra.mxu0 %v2759
        %2777 = vmatprep.subr.bf16.mxu0 0
        %2778 = vmatpush1.bf16.msra.mxu0 %v2760
        %2779 = vmatprep.subr.bf16.mxu0 0
        %2780 = vmatpush1.bf16.msra.mxu0 %v2761
        %2781 = vmatprep.subr.bf16.mxu0 0
        %2782 = vmatpush1.bf16.msra.mxu0 %v2762
        %2783 = vmatprep.subr.bf16.mxu0 0
        %2784 = vmatpush1.bf16.msra.mxu0 %v2763
        %2785 = vmatprep.subr.bf16.mxu0 0
        %2786 = vmatpush1.bf16.msra.mxu0 %v2764
        %2787 = vmatprep.subr.bf16.mxu0 0
        %2788 = vmatpush1.bf16.msra.mxu0 %v2765
        %2789 = vmatprep.subr.bf16.mxu0 0
        %2790 = vmatpush1.bf16.msra.mxu0 %v2766
        %2791 = vmatprep.subr.bf16.mxu0 0
        %2792 = vmatpush1.bf16.msra.mxu0 0
        %2793 = vmatprep.subr.bf16.mxu0 0
        %2794 = vmatpush1.bf16.msra.mxu0 0
        %2795 = vmatprep.subr.bf16.mxu0 0
        %2796 = vmatpush1.bf16.msra.mxu0 0
        %2797 = vmatprep.subr.bf16.mxu0 0
        %2798 = vmatpush1.bf16.msra.mxu0 0
        %2799 = vmatprep.subr.bf16.mxu0 0
        %2800 = vmatpush1.bf16.msra.mxu0 0
        %2801 = vmatprep.subr.bf16.mxu0 0
        %2802 = vmatpush1.bf16.msra.mxu0 0
        %2803 = vmatprep.subr.bf16.mxu0 0
        %2804 = vmatpush1.bf16.msra.mxu0 0
        %2805 = vmatprep.subr.bf16.mxu0 0
        %2806 = vmatpush1.bf16.msra.mxu0 0
        %2807 = vmatprep.mubr.bf16.mxu0 0
        %2808 = vmatmul.mubr.bf16.gmra.mrb[0].mxu0 %v2700
        %v2809 = vpop.f32.mrb[0].mxu0
        %v2810 = vadd.f32 %v2725, %v2809
        %v2811 = vpop.f32.mrb[0].mxu0
        %v2812 = vpop.f32.mrb[0].mxu0
        %v2813 = vadd.f32 %v2725, %v2812
        %v2814 = vpop.f32.mrb[0].mxu0
        %2815 = vmatprep.mubr.bf16.mxu0 0
        %2816 = vmatmul.mubr.bf16.gmra.mrb[0].mxu0 %v2701
        %v2817 = vpop.f32.mrb[0].mxu0
        %v2818 = vadd.f32 %v2725, %v2817
        %v2819 = vpop.f32.mrb[0].mxu0
        %v2820 = vpop.f32.mrb[0].mxu0
        %v2821 = vadd.f32 %v2725, %v2820
        %v2822 = vpop.f32.mrb[0].mxu0
        %2823 = vmatprep.mubr.bf16.mxu0 0
        %2824 = vmatmul.mubr.bf16.gmra.mrb[0].mxu0 %v2702
        %v2825 = vpop.f32.mrb[0].mxu0
        %v2826 = vadd.f32 %v2725, %v2825
        %v2827 = vpop.f32.mrb[0].mxu0
        %v2828 = vpop.f32.mrb[0].mxu0
        %v2829 = vadd.f32 %v2725, %v2828
        %v2830 = vpop.f32.mrb[0].mxu0
        %2831 = vmatprep.mubr.bf16.mxu0 0
        %2832 = vmatmul.mubr.bf16.gmra.mrb[0].mxu0 %v2703
        %v2833 = vpop.f32.mrb[0].mxu0
        %v2834 = vadd.f32 %v2725, %v2833
        %v2835 = vpop.f32.mrb[0].mxu0
        %v2836 = vpop.f32.mrb[0].mxu0
        %v2837 = vadd.f32 %v2725, %v2836
        %v2838 = vpop.f32.mrb[0].mxu0
        %2839 = vdwg.mxu0
        %v2840 = vadd.f32 %v767, %v2810
        %v2841 = vadd.f32 %v768, %v2813
        %v2842 = vadd.f32 %v769, %v2818
        %v2843 = vadd.f32 %v770, %v2821
        %v2844 = vadd.f32 %v771, %v2826
        %v2845 = vadd.f32 %v772, %v2829
        %v2846 = vadd.f32 %v773, %v2834
        %v2847 = vadd.f32 %v774, %v2837
        %v2848 = vld [vmem:[%s728] sm:$0x1]
        %v2849 = vld [vmem:[%s731] sm:$0x1]
        %2850 = vadd.xlane.f32.xlu0 %v2840
        %v2851 = vpop.xlane.xlu0 %2850
        %2852 = vadd.xlane.f32.xlu0 %v2841
        %v2853 = vpop.xlane.xlu0 %2852
        %2854 = vadd.xlane.f32.xlu0 %v2842
        %v2855 = vpop.xlane.xlu0 %2854
        %2856 = vadd.xlane.f32.xlu0 %v2843
        %v2857 = vpop.xlane.xlu0 %2856
        %2858 = vadd.xlane.f32.xlu0 %v2844
        %v2859 = vpop.xlane.xlu0 %2858
        %2860 = vadd.xlane.f32.xlu0 %v2845
        %v2861 = vpop.xlane.xlu0 %2860
        %2862 = vadd.xlane.f32.xlu0 %v2846
        %v2863 = vpop.xlane.xlu0 %2862
        %2864 = vadd.xlane.f32.xlu0 %v2847
        %v2865 = vpop.xlane.xlu0 %2864
        %v2866 = vrcp.pop 128.0
        %v2867 = vmul.f32 %v2851, %v2866
        %v2868 = vmul.f32 %v2853, %v2866
        %v2869 = vmul.f32 %v2855, %v2866
        %v2870 = vmul.f32 %v2857, %v2866
        %v2871 = vmul.f32 %v2859, %v2866
        %v2872 = vmul.f32 %v2861, %v2866
        %v2873 = vmul.f32 %v2863, %v2866
        %v2874 = vmul.f32 %v2865, %v2866
        %v2875 = vsub.f32 %v2840, %v2867
        %v2876 = vsub.f32 %v2841, %v2868
        %v2877 = vsub.f32 %v2842, %v2869
        %v2878 = vsub.f32 %v2843, %v2870
        %v2879 = vsub.f32 %v2844, %v2871
        %v2880 = vsub.f32 %v2845, %v2872
        %v2881 = vsub.f32 %v2846, %v2873
        %v2882 = vsub.f32 %v2847, %v2874
        %v2883 = vmul.f32 %v2875, %v2875
        %v2884 = vmul.f32 %v2876, %v2876
        %v2885 = vmul.f32 %v2877, %v2877
        %v2886 = vmul.f32 %v2878, %v2878
        %v2887 = vmul.f32 %v2879, %v2879
        %v2888 = vmul.f32 %v2880, %v2880
        %v2889 = vmul.f32 %v2881, %v2881
        %v2890 = vmul.f32 %v2882, %v2882
        %2891 = vadd.xlane.f32.xlu0 %v2883
        %v2892 = vpop.xlane.xlu0 %2891
        %2893 = vadd.xlane.f32.xlu0 %v2884
        %v2894 = vpop.xlane.xlu0 %2893
        %2895 = vadd.xlane.f32.xlu0 %v2885
        %v2896 = vpop.xlane.xlu0 %2895
        %2897 = vadd.xlane.f32.xlu0 %v2886
        %v2898 = vpop.xlane.xlu0 %2897
        %2899 = vadd.xlane.f32.xlu0 %v2887
        %v2900 = vpop.xlane.xlu0 %2899
        %2901 = vadd.xlane.f32.xlu0 %v2888
        %v2902 = vpop.xlane.xlu0 %2901
        %2903 = vadd.xlane.f32.xlu0 %v2889
        %v2904 = vpop.xlane.xlu0 %2903
        %2905 = vadd.xlane.f32.xlu0 %v2890
        %v2906 = vpop.xlane.xlu0 %2905
        %v2907 = vmul.f32 %v2892, %v2866
        %v2908 = vmul.f32 %v2894, %v2866
        %v2909 = vmul.f32 %v2896, %v2866
        %v2910 = vmul.f32 %v2898, %v2866
        %v2911 = vmul.f32 %v2900, %v2866
        %v2912 = vmul.f32 %v2902, %v2866
        %v2913 = vmul.f32 %v2904, %v2866
        %v2914 = vmul.f32 %v2906, %v2866
        %v2915 = vadd.f32 %v2907, 1e-05
        %v2916 = vadd.f32 %v2908, 1e-05
        %v2917 = vadd.f32 %v2909, 1e-05
        %v2918 = vadd.f32 %v2910, 1e-05
        %v2919 = vadd.f32 %v2911, 1e-05
        %v2920 = vadd.f32 %v2912, 1e-05
        %v2921 = vadd.f32 %v2913, 1e-05
        %v2922 = vadd.f32 %v2914, 1e-05
        %v2923 = vrsqrt.pop %v2915
        %v2924 = vrsqrt.pop %v2916
        %v2925 = vrsqrt.pop %v2917
        %v2926 = vrsqrt.pop %v2918
        %v2927 = vrsqrt.pop %v2919
        %v2928 = vrsqrt.pop %v2920
        %v2929 = vrsqrt.pop %v2921
        %v2930 = vrsqrt.pop %v2922
        %v2931 = vmul.f32 %v2875, %v2923
        %v2932 = vmul.f32 %v2876, %v2924
        %v2933 = vmul.f32 %v2877, %v2925
        %v2934 = vmul.f32 %v2878, %v2926
        %v2935 = vmul.f32 %v2879, %v2927
        %v2936 = vmul.f32 %v2880, %v2928
        %v2937 = vmul.f32 %v2881, %v2929
        %v2938 = vmul.f32 %v2882, %v2930
        %v2940 = vlaneseq
        %v2941 = vshrl.u32 %v2940, 7
        %v2942 = vsub.s32 0, %v2941
        %v2943 = vrot.slane %v2848, %v2942
        %v2945 = vmul.f32 %v2931, %v2943
        %v2946 = vmul.f32 %v2932, %v2943
        %v2947 = vmul.f32 %v2933, %v2943
        %v2948 = vmul.f32 %v2934, %v2943
        %v2949 = vmul.f32 %v2935, %v2943
        %v2950 = vmul.f32 %v2936, %v2943
        %v2951 = vmul.f32 %v2937, %v2943
        %v2952 = vmul.f32 %v2938, %v2943
        %v2954 = vlaneseq
        %v2955 = vshrl.u32 %v2954, 7
        %v2956 = vsub.s32 0, %v2955
        %v2957 = vrot.slane %v2849, %v2956
        %v2959 = vadd.f32 %v2945, %v2957
        %v2960 = vadd.f32 %v2946, %v2957
        %v2961 = vadd.f32 %v2947, %v2957
        %v2962 = vadd.f32 %v2948, %v2957
        %v2963 = vadd.f32 %v2949, %v2957
        %v2964 = vadd.f32 %v2950, %v2957
        %v2965 = vadd.f32 %v2951, %v2957
        %v2966 = vadd.f32 %v2952, %v2957
        %v2967 = vpack.c.bf16 %v2960, %v2959
        %v2968 = vpack.c.bf16 %v2962, %v2961
        %v2969 = vpack.c.bf16 %v2964, %v2963
        %v2970 = vpack.c.bf16 %v2966, %v2965
        %v2971 = vld [vmem:[%s620] sm:$0xff]
        %v2972 = vld [vmem:[%s620 + $0x8] sm:$0xff]
        %v2973 = vld [vmem:[%s620 + $0x10] sm:$0xff]
        %v2974 = vld [vmem:[%s620 + $0x18] sm:$0xff]
        %v2975 = vld [vmem:[%s620 + $0x20] sm:$0xff]
        %v2976 = vld [vmem:[%s620 + $0x28] sm:$0xff]
        %v2977 = vld [vmem:[%s620 + $0x30] sm:$0xff]
        %v2978 = vld [vmem:[%s620 + $0x38] sm:$0xff]
        %v2979 = vld [vmem:[%s620 + $0x40] sm:$0xff]
        %v2980 = vld [vmem:[%s620 + $0x48] sm:$0xff]
        %v2981 = vld [vmem:[%s620 + $0x50] sm:$0xff]
        %v2982 = vld [vmem:[%s620 + $0x58] sm:$0xff]
        %v2983 = vld [vmem:[%s620 + $0x60] sm:$0xff]
        %v2984 = vld [vmem:[%s620 + $0x68] sm:$0xff]
        %v2985 = vld [vmem:[%s620 + $0x70] sm:$0xff]
        %v2986 = vld [vmem:[%s620 + $0x78] sm:$0xff]
        %v2987 = vld [vmem:[%s735] sm:$0x3]
        %v2989 = vlaneseq
        %v2990 = vshrl.u32 %v2989, 7
        %v2991 = vsub.s32 0, %v2990
        %v2992 = vrot.slane %v2987, %v2991
        %v2993 = vlaneseq
        %v2994 = vshrl.u32 %v2993, 7
        %v2995 = vsub.s32 1, %v2994
        %v2996 = vrot.slane %v2987, %v2995
        %v3015 = vunpack.c.l.b16 %v2971
        %v3016 = vunpack.c.h.b16 %v2971
        %v3017 = vunpack.c.l.b16 %v2972
        %v3018 = vunpack.c.h.b16 %v2972
        %v3019 = vunpack.c.l.b16 %v2973
        %v3020 = vunpack.c.h.b16 %v2973
        %v3021 = vunpack.c.l.b16 %v2974
        %v3022 = vunpack.c.h.b16 %v2974
        %v3023 = vunpack.c.l.b16 %v2975
        %v3024 = vunpack.c.h.b16 %v2975
        %v3025 = vunpack.c.l.b16 %v2976
        %v3026 = vunpack.c.h.b16 %v2976
        %v3027 = vunpack.c.l.b16 %v2977
        %v3028 = vunpack.c.h.b16 %v2977
        %v3029 = vunpack.c.l.b16 %v2978
        %v3030 = vunpack.c.h.b16 %v2978
        %v3031 = vunpack.c.l.b16 %v2979
        %v3032 = vunpack.c.h.b16 %v2979
        %v3033 = vunpack.c.l.b16 %v2980
        %v3034 = vunpack.c.h.b16 %v2980
        %v3035 = vunpack.c.l.b16 %v2981
        %v3036 = vunpack.c.h.b16 %v2981
        %v3037 = vunpack.c.l.b16 %v2982
        %v3038 = vunpack.c.h.b16 %v2982
        %v3039 = vunpack.c.l.b16 %v2983
        %v3040 = vunpack.c.h.b16 %v2983
        %v3041 = vunpack.c.l.b16 %v2984
        %v3042 = vunpack.c.h.b16 %v2984
        %v3043 = vunpack.c.l.b16 %v2985
        %v3044 = vunpack.c.h.b16 %v2985
        %v3045 = vunpack.c.l.b16 %v2986
        %v3046 = vunpack.c.h.b16 %v2986
        %v3047 = vpack.c.b16 %v3017, %v3015
        %v3048 = vpack.c.b16 %v3018, %v3016
        %v3049 = vpack.c.b16 %v3021, %v3019
        %v3050 = vpack.c.b16 %v3022, %v3020
        %v3051 = vpack.c.b16 %v3025, %v3023
        %v3052 = vpack.c.b16 %v3026, %v3024
        %v3053 = vpack.c.b16 %v3029, %v3027
        %v3054 = vpack.c.b16 %v3030, %v3028
        %v3055 = vpack.c.b16 %v3033, %v3031
        %v3056 = vpack.c.b16 %v3034, %v3032
        %v3057 = vpack.c.b16 %v3037, %v3035
        %v3058 = vpack.c.b16 %v3038, %v3036
        %v3059 = vpack.c.b16 %v3041, %v3039
        %v3060 = vpack.c.b16 %v3042, %v3040
        %v3061 = vpack.c.b16 %v3045, %v3043
        %v3062 = vpack.c.b16 %v3046, %v3044
        %3079 = vmatprep.subr.bf16.mxu0 %v3048
        %3080 = vmatpush1.bf16.msra.mxu0 %v3047
        %3081 = vmatprep.subr.bf16.mxu0 %v3050
        %3082 = vmatpush1.bf16.msra.mxu0 %v3049
        %3083 = vmatprep.subr.bf16.mxu0 %v3052
        %3084 = vmatpush1.bf16.msra.mxu0 %v3051
        %3085 = vmatprep.subr.bf16.mxu0 %v3054
        %3086 = vmatpush1.bf16.msra.mxu0 %v3053
        %3087 = vmatprep.subr.bf16.mxu0 %v3056
        %3088 = vmatpush1.bf16.msra.mxu0 %v3055
        %3089 = vmatprep.subr.bf16.mxu0 %v3058
        %3090 = vmatpush1.bf16.msra.mxu0 %v3057
        %3091 = vmatprep.subr.bf16.mxu0 %v3060
        %3092 = vmatpush1.bf16.msra.mxu0 %v3059
        %3093 = vmatprep.subr.bf16.mxu0 %v3062
        %3094 = vmatpush1.bf16.msra.mxu0 %v3061
        %3095 = vmatprep.subr.bf16.mxu0 0
        %3096 = vmatpush1.bf16.msra.mxu0 0
        %3097 = vmatprep.subr.bf16.mxu0 0
        %3098 = vmatpush1.bf16.msra.mxu0 0
        %3099 = vmatprep.subr.bf16.mxu0 0
        %3100 = vmatpush1.bf16.msra.mxu0 0
        %3101 = vmatprep.subr.bf16.mxu0 0
        %3102 = vmatpush1.bf16.msra.mxu0 0
        %3103 = vmatprep.subr.bf16.mxu0 0
        %3104 = vmatpush1.bf16.msra.mxu0 0
        %3105 = vmatprep.subr.bf16.mxu0 0
        %3106 = vmatpush1.bf16.msra.mxu0 0
        %3107 = vmatprep.subr.bf16.mxu0 0
        %3108 = vmatpush1.bf16.msra.mxu0 0
        %3109 = vmatprep.subr.bf16.mxu0 0
        %3110 = vmatpush1.bf16.msra.mxu0 0
        %3111 = vmatprep.mubr.bf16.mxu0 0
        %3112 = vmatmul.mubr.bf16.gmra.mrb[0].mxu0 %v2967
        %v3113 = vpop.f32.mrb[0].mxu0
        %v3114 = vadd.f32 %v2992, %v3113
        %v3115 = vpop.f32.mrb[0].mxu0
        %v3116 = vadd.f32 %v2996, %v3115
        %v3117 = vpop.f32.mrb[0].mxu0
        %v3118 = vadd.f32 %v2992, %v3117
        %v3119 = vpop.f32.mrb[0].mxu0
        %v3120 = vadd.f32 %v2996, %v3119
        %3121 = vmatprep.mubr.bf16.mxu0 0
        %3122 = vmatmul.mubr.bf16.gmra.mrb[0].mxu0 %v2968
        %v3123 = vpop.f32.mrb[0].mxu0
        %v3124 = vadd.f32 %v2992, %v3123
        %v3125 = vpop.f32.mrb[0].mxu0
        %v3126 = vadd.f32 %v2996, %v3125
        %v3127 = vpop.f32.mrb[0].mxu0
        %v3128 = vadd.f32 %v2992, %v3127
        %v3129 = vpop.f32.mrb[0].mxu0
        %v3130 = vadd.f32 %v2996, %v3129
        %3131 = vmatprep.mubr.bf16.mxu0 0
        %3132 = vmatmul.mubr.bf16.gmra.mrb[0].mxu0 %v2969
        %v3133 = vpop.f32.mrb[0].mxu0
        %v3134 = vadd.f32 %v2992, %v3133
        %v3135 = vpop.f32.mrb[0].mxu0
        %v3136 = vadd.f32 %v2996, %v3135
        %v3137 = vpop.f32.mrb[0].mxu0
        %v3138 = vadd.f32 %v2992, %v3137
        %v3139 = vpop.f32.mrb[0].mxu0
        %v3140 = vadd.f32 %v2996, %v3139
        %3141 = vmatprep.mubr.bf16.mxu0 0
        %3142 = vmatmul.mubr.bf16.gmra.mrb[0].mxu0 %v2970
        %v3143 = vpop.f32.mrb[0].mxu0
        %v3144 = vadd.f32 %v2992, %v3143
        %v3145 = vpop.f32.mrb[0].mxu0
        %v3146 = vadd.f32 %v2996, %v3145
        %v3147 = vpop.f32.mrb[0].mxu0
        %v3148 = vadd.f32 %v2992, %v3147
        %v3149 = vpop.f32.mrb[0].mxu0
        %v3150 = vadd.f32 %v2996, %v3149
        %3151 = vdwg.mxu0
        %v3152 = vmul.f32 %v3114, %v3114
        %v3153 = vmul.f32 %v3116, %v3116
        %v3154 = vmul.f32 %v3118, %v3118
        %v3155 = vmul.f32 %v3120, %v3120
        %v3156 = vmul.f32 %v3124, %v3124
        %v3157 = vmul.f32 %v3126, %v3126
        %v3158 = vmul.f32 %v3128, %v3128
        %v3159 = vmul.f32 %v3130, %v3130
        %v3160 = vmul.f32 %v3134, %v3134
        %v3161 = vmul.f32 %v3136, %v3136
        %v3162 = vmul.f32 %v3138, %v3138
        %v3163 = vmul.f32 %v3140, %v3140
        %v3164 = vmul.f32 %v3144, %v3144
        %v3165 = vmul.f32 %v3146, %v3146
        %v3166 = vmul.f32 %v3148, %v3148
        %v3167 = vmul.f32 %v3150, %v3150
        %v3168 = vmul.f32 %v3114, %v3152
        %v3169 = vmul.f32 %v3116, %v3153
        %v3170 = vmul.f32 %v3118, %v3154
        %v3171 = vmul.f32 %v3120, %v3155
        %v3172 = vmul.f32 %v3124, %v3156
        %v3173 = vmul.f32 %v3126, %v3157
        %v3174 = vmul.f32 %v3128, %v3158
        %v3175 = vmul.f32 %v3130, %v3159
        %v3176 = vmul.f32 %v3134, %v3160
        %v3177 = vmul.f32 %v3136, %v3161
        %v3178 = vmul.f32 %v3138, %v3162
        %v3179 = vmul.f32 %v3140, %v3163
        %v3180 = vmul.f32 %v3144, %v3164
        %v3181 = vmul.f32 %v3146, %v3165
        %v3182 = vmul.f32 %v3148, %v3166
        %v3183 = vmul.f32 %v3150, %v3167
        %v3184 = vmul.f32 %v3168, 0.044715
        %v3185 = vmul.f32 %v3169, 0.044715
        %v3186 = vmul.f32 %v3170, 0.044715
        %v3187 = vmul.f32 %v3171, 0.044715
        %v3188 = vmul.f32 %v3172, 0.044715
        %v3189 = vmul.f32 %v3173, 0.044715
        %v3190 = vmul.f32 %v3174, 0.044715
        %v3191 = vmul.f32 %v3175, 0.044715
        %v3192 = vmul.f32 %v3176, 0.044715
        %v3193 = vmul.f32 %v3177, 0.044715
        %v3194 = vmul.f32 %v3178, 0.044715
        %v3195 = vmul.f32 %v3179, 0.044715
        %v3196 = vmul.f32 %v3180, 0.044715
        %v3197 = vmul.f32 %v3181, 0.044715
        %v3198 = vmul.f32 %v3182, 0.044715
        %v3199 = vmul.f32 %v3183, 0.044715
        %v3200 = vadd.f32 %v3114, %v3184
        %v3201 = vadd.f32 %v3116, %v3185
        %v3202 = vadd.f32 %v3118, %v3186
        %v3203 = vadd.f32 %v3120, %v3187
        %v3204 = vadd.f32 %v3124, %v3188
        %v3205 = vadd.f32 %v3126, %v3189
        %v3206 = vadd.f32 %v3128, %v3190
        %v3207 = vadd.f32 %v3130, %v3191
        %v3208 = vadd.f32 %v3134, %v3192
        %v3209 = vadd.f32 %v3136, %v3193
        %v3210 = vadd.f32 %v3138, %v3194
        %v3211 = vadd.f32 %v3140, %v3195
        %v3212 = vadd.f32 %v3144, %v3196
        %v3213 = vadd.f32 %v3146, %v3197
        %v3214 = vadd.f32 %v3148, %v3198
        %v3215 = vadd.f32 %v3150, %v3199
        %v3216 = vmul.f32 %v3200, 0.7978846
        %v3217 = vmul.f32 %v3201, 0.7978846
        %v3218 = vmul.f32 %v3202, 0.7978846
        %v3219 = vmul.f32 %v3203, 0.7978846
        %v3220 = vmul.f32 %v3204, 0.7978846
        %v3221 = vmul.f32 %v3205, 0.7978846
        %v3222 = vmul.f32 %v3206, 0.7978846
        %v3223 = vmul.f32 %v3207, 0.7978846
        %v3224 = vmul.f32 %v3208, 0.7978846
        %v3225 = vmul.f32 %v3209, 0.7978846
        %v3226 = vmul.f32 %v3210, 0.7978846
        %v3227 = vmul.f32 %v3211, 0.7978846
        %v3228 = vmul.f32 %v3212, 0.7978846
        %v3229 = vmul.f32 %v3213, 0.7978846
        %v3230 = vmul.f32 %v3214, 0.7978846
        %v3231 = vmul.f32 %v3215, 0.7978846
        %v3232 = vtanh.pop %v3216
        %v3233 = vtanh.pop %v3217
        %v3234 = vtanh.pop %v3218
        %v3235 = vtanh.pop %v3219
        %v3236 = vtanh.pop %v3220
        %v3237 = vtanh.pop %v3221
        %v3238 = vtanh.pop %v3222
        %v3239 = vtanh.pop %v3223
        %v3240 = vtanh.pop %v3224
        %v3241 = vtanh.pop %v3225
        %v3242 = vtanh.pop %v3226
        %v3243 = vtanh.pop %v3227
        %v3244 = vtanh.pop %v3228
        %v3245 = vtanh.pop %v3229
        %v3246 = vtanh.pop %v3230
        %v3247 = vtanh.pop %v3231
        %v3248 = vadd.f32 %v3232, 1.0
        %v3249 = vadd.f32 %v3233, 1.0
        %v3250 = vadd.f32 %v3234, 1.0
        %v3251 = vadd.f32 %v3235, 1.0
        %v3252 = vadd.f32 %v3236, 1.0
        %v3253 = vadd.f32 %v3237, 1.0
        %v3254 = vadd.f32 %v3238, 1.0
        %v3255 = vadd.f32 %v3239, 1.0
        %v3256 = vadd.f32 %v3240, 1.0
        %v3257 = vadd.f32 %v3241, 1.0
        %v3258 = vadd.f32 %v3242, 1.0
        %v3259 = vadd.f32 %v3243, 1.0
        %v3260 = vadd.f32 %v3244, 1.0
        %v3261 = vadd.f32 %v3245, 1.0
        %v3262 = vadd.f32 %v3246, 1.0
        %v3263 = vadd.f32 %v3247, 1.0
        %v3264 = vmul.f32 %v3248, 0.5
        %v3265 = vmul.f32 %v3249, 0.5
        %v3266 = vmul.f32 %v3250, 0.5
        %v3267 = vmul.f32 %v3251, 0.5
        %v3268 = vmul.f32 %v3252, 0.5
        %v3269 = vmul.f32 %v3253, 0.5
        %v3270 = vmul.f32 %v3254, 0.5
        %v3271 = vmul.f32 %v3255, 0.5
        %v3272 = vmul.f32 %v3256, 0.5
        %v3273 = vmul.f32 %v3257, 0.5
        %v3274 = vmul.f32 %v3258, 0.5
        %v3275 = vmul.f32 %v3259, 0.5
        %v3276 = vmul.f32 %v3260, 0.5
        %v3277 = vmul.f32 %v3261, 0.5
        %v3278 = vmul.f32 %v3262, 0.5
        %v3279 = vmul.f32 %v3263, 0.5
        %v3280 = vmul.f32 %v3114, %v3264
        %v3281 = vmul.f32 %v3116, %v3265
        %v3282 = vmul.f32 %v3118, %v3266
        %v3283 = vmul.f32 %v3120, %v3267
        %v3284 = vmul.f32 %v3124, %v3268
        %v3285 = vmul.f32 %v3126, %v3269
        %v3286 = vmul.f32 %v3128, %v3270
        %v3287 = vmul.f32 %v3130, %v3271
        %v3288 = vmul.f32 %v3134, %v3272
        %v3289 = vmul.f32 %v3136, %v3273
        %v3290 = vmul.f32 %v3138, %v3274
        %v3291 = vmul.f32 %v3140, %v3275
        %v3292 = vmul.f32 %v3144, %v3276
        %v3293 = vmul.f32 %v3146, %v3277
        %v3294 = vmul.f32 %v3148, %v3278
        %v3295 = vmul.f32 %v3150, %v3279
        %v3296 = vpack.c.bf16 %v3282, %v3280
        %v3297 = vpack.c.bf16 %v3283, %v3281
        %v3298 = vpack.c.bf16 %v3286, %v3284
        %v3299 = vpack.c.bf16 %v3287, %v3285
        %v3300 = vpack.c.bf16 %v3290, %v3288
        %v3301 = vpack.c.bf16 %v3291, %v3289
        %v3302 = vpack.c.bf16 %v3294, %v3292
        %v3303 = vpack.c.bf16 %v3295, %v3293
        %v3304 = vld [vmem:[%s629] sm:$0xf]
        %v3305 = vld [vmem:[%s629 + $0x4] sm:$0xf]
        %v3306 = vld [vmem:[%s629 + $0x8] sm:$0xf]
        %v3307 = vld [vmem:[%s629 + $0xc] sm:$0xf]
        %v3308 = vld [vmem:[%s629 + $0x10] sm:$0xf]
        %v3309 = vld [vmem:[%s629 + $0x14] sm:$0xf]
        %v3310 = vld [vmem:[%s629 + $0x18] sm:$0xf]
        %v3311 = vld [vmem:[%s629 + $0x1c] sm:$0xf]
        %v3312 = vld [vmem:[%s629 + $0x20] sm:$0xf]
        %v3313 = vld [vmem:[%s629 + $0x24] sm:$0xf]
        %v3314 = vld [vmem:[%s629 + $0x28] sm:$0xf]
        %v3315 = vld [vmem:[%s629 + $0x2c] sm:$0xf]
        %v3316 = vld [vmem:[%s629 + $0x30] sm:$0xf]
        %v3317 = vld [vmem:[%s629 + $0x34] sm:$0xf]
        %v3318 = vld [vmem:[%s629 + $0x38] sm:$0xf]
        %v3319 = vld [vmem:[%s629 + $0x3c] sm:$0xf]
        %v3320 = vld [vmem:[%s629 + $0x40] sm:$0xf]
        %v3321 = vld [vmem:[%s629 + $0x44] sm:$0xf]
        %v3322 = vld [vmem:[%s629 + $0x48] sm:$0xf]
        %v3323 = vld [vmem:[%s629 + $0x4c] sm:$0xf]
        %v3324 = vld [vmem:[%s629 + $0x50] sm:$0xf]
        %v3325 = vld [vmem:[%s629 + $0x54] sm:$0xf]
        %v3326 = vld [vmem:[%s629 + $0x58] sm:$0xf]
        %v3327 = vld [vmem:[%s629 + $0x5c] sm:$0xf]
        %v3328 = vld [vmem:[%s629 + $0x60] sm:$0xf]
        %v3329 = vld [vmem:[%s629 + $0x64] sm:$0xf]
        %v3330 = vld [vmem:[%s629 + $0x68] sm:$0xf]
        %v3331 = vld [vmem:[%s629 + $0x6c] sm:$0xf]
        %v3332 = vld [vmem:[%s629 + $0x70] sm:$0xf]
        %v3333 = vld [vmem:[%s629 + $0x74] sm:$0xf]
        %v3334 = vld [vmem:[%s629 + $0x78] sm:$0xf]
        %v3335 = vld [vmem:[%s629 + $0x7c] sm:$0xf]
        %v3336 = vld [vmem:[%s738] sm:$0x1]
        %v3338 = vlaneseq
        %v3339 = vshrl.u32 %v3338, 7
        %v3340 = vsub.s32 0, %v3339
        %v3341 = vrot.slane %v3336, %v3340
        %v3375 = vunpack.c.l.b16 %v3304
        %v3376 = vunpack.c.l.b16 %v3305
        %v3377 = vunpack.c.l.b16 %v3306
        %v3378 = vunpack.c.l.b16 %v3307
        %v3379 = vunpack.c.l.b16 %v3308
        %v3380 = vunpack.c.l.b16 %v3309
        %v3381 = vunpack.c.l.b16 %v3310
        %v3382 = vunpack.c.l.b16 %v3311
        %v3383 = vunpack.c.l.b16 %v3312
        %v3384 = vunpack.c.l.b16 %v3313
        %v3385 = vunpack.c.l.b16 %v3314
        %v3386 = vunpack.c.l.b16 %v3315
        %v3387 = vunpack.c.l.b16 %v3316
        %v3388 = vunpack.c.l.b16 %v3317
        %v3389 = vunpack.c.l.b16 %v3318
        %v3390 = vunpack.c.l.b16 %v3319
        %v3391 = vunpack.c.l.b16 %v3320
        %v3392 = vunpack.c.l.b16 %v3321
        %v3393 = vunpack.c.l.b16 %v3322
        %v3394 = vunpack.c.l.b16 %v3323
        %v3395 = vunpack.c.l.b16 %v3324
        %v3396 = vunpack.c.l.b16 %v3325
        %v3397 = vunpack.c.l.b16 %v3326
        %v3398 = vunpack.c.l.b16 %v3327
        %v3399 = vunpack.c.l.b16 %v3328
        %v3400 = vunpack.c.l.b16 %v3329
        %v3401 = vunpack.c.l.b16 %v3330
        %v3402 = vunpack.c.l.b16 %v3331
        %v3403 = vunpack.c.l.b16 %v3332
        %v3404 = vunpack.c.l.b16 %v3333
        %v3405 = vunpack.c.l.b16 %v3334
        %v3406 = vunpack.c.l.b16 %v3335
        %v3407 = vpack.c.b16 %v3376, %v3375
        %v3408 = vpack.c.b16 %v3378, %v3377
        %v3409 = vpack.c.b16 %v3380, %v3379
        %v3410 = vpack.c.b16 %v3382, %v3381
        %v3411 = vpack.c.b16 %v3384, %v3383
        %v3412 = vpack.c.b16 %v3386, %v3385
        %v3413 = vpack.c.b16 %v3388, %v3387
        %v3414 = vpack.c.b16 %v3390, %v3389
        %v3415 = vpack.c.b16 %v3392, %v3391
        %v3416 = vpack.c.b16 %v3394, %v3393
        %v3417 = vpack.c.b16 %v3396, %v3395
        %v3418 = vpack.c.b16 %v3398, %v3397
        %v3419 = vpack.c.b16 %v3400, %v3399
        %v3420 = vpack.c.b16 %v3402, %v3401
        %v3421 = vpack.c.b16 %v3404, %v3403
        %v3422 = vpack.c.b16 %v3406, %v3405
        %3439 = vmatprep.subr.bf16.mxu0 0
        %3440 = vmatpush1.bf16.msra.mxu0 %v3407
        %3441 = vmatprep.subr.bf16.mxu0 0
        %3442 = vmatpush1.bf16.msra.mxu0 %v3408
        %3443 = vmatprep.subr.bf16.mxu0 0
        %3444 = vmatpush1.bf16.msra.mxu0 %v3409
        %3445 = vmatprep.subr.bf16.mxu0 0
        %3446 = vmatpush1.bf16.msra.mxu0 %v3410
        %3447 = vmatprep.subr.bf16.mxu0 0
        %3448 = vmatpush1.bf16.msra.mxu0 %v3411
        %3449 = vmatprep.subr.bf16.mxu0 0
        %3450 = vmatpush1.bf16.msra.mxu0 %v3412
        %3451 = vmatprep.subr.bf16.mxu0 0
        %3452 = vmatpush1.bf16.msra.mxu0 %v3413
        %3453 = vmatprep.subr.bf16.mxu0 0
        %3454 = vmatpush1.bf16.msra.mxu0 %v3414
        %3455 = vmatprep.subr.bf16.mxu0 0
        %3456 = vmatpush1.bf16.msra.mxu0 %v3415
        %3457 = vmatprep.subr.bf16.mxu0 0
        %3458 = vmatpush1.bf16.msra.mxu0 %v3416
        %3459 = vmatprep.subr.bf16.mxu0 0
        %3460 = vmatpush1.bf16.msra.mxu0 %v3417
        %3461 = vmatprep.subr.bf16.mxu0 0
        %3462 = vmatpush1.bf16.msra.mxu0 %v3418
        %3463 = vmatprep.subr.bf16.mxu0 0
        %3464 = vmatpush1.bf16.msra.mxu0 %v3419
        %3465 = vmatprep.subr.bf16.mxu0 0
        %3466 = vmatpush1.bf16.msra.mxu0 %v3420
        %3467 = vmatprep.subr.bf16.mxu0 0
        %3468 = vmatpush1.bf16.msra.mxu0 %v3421
        %3469 = vmatprep.subr.bf16.mxu0 0
        %3470 = vmatpush1.bf16.msra.mxu0 %v3422
        %3471 = vmatprep.mubr.bf16.mxu0 %v3297
        %3472 = vmatmul.mubr.bf16.gmra.mrb[0].mxu0 %v3296
        %v3473 = vpop.f32.mrb[0].mxu0
        %v3474 = vadd.f32 %v3341, %v3473
        %v3475 = vpop.f32.mrb[0].mxu0
        %v3476 = vpop.f32.mrb[0].mxu0
        %v3477 = vadd.f32 %v3341, %v3476
        %v3478 = vpop.f32.mrb[0].mxu0
        %3479 = vmatprep.mubr.bf16.mxu0 %v3299
        %3480 = vmatmul.mubr.bf16.gmra.mrb[0].mxu0 %v3298
        %v3481 = vpop.f32.mrb[0].mxu0
        %v3482 = vadd.f32 %v3341, %v3481
        %v3483 = vpop.f32.mrb[0].mxu0
        %v3484 = vpop.f32.mrb[0].mxu0
        %v3485 = vadd.f32 %v3341, %v3484
        %v3486 = vpop.f32.mrb[0].mxu0
        %3487 = vmatprep.mubr.bf16.mxu0 %v3301
        %3488 = vmatmul.mubr.bf16.gmra.mrb[0].mxu0 %v3300
        %v3489 = vpop.f32.mrb[0].mxu0
        %v3490 = vadd.f32 %v3341, %v3489
        %v3491 = vpop.f32.mrb[0].mxu0
        %v3492 = vpop.f32.mrb[0].mxu0
        %v3493 = vadd.f32 %v3341, %v3492
        %v3494 = vpop.f32.mrb[0].mxu0
        %3495 = vmatprep.mubr.bf16.mxu0 %v3303
        %3496 = vmatmul.mubr.bf16.gmra.mrb[0].mxu0 %v3302
        %v3497 = vpop.f32.mrb[0].mxu0
        %v3498 = vadd.f32 %v3341, %v3497
        %v3499 = vpop.f32.mrb[0].mxu0
        %v3500 = vpop.f32.mrb[0].mxu0
        %v3501 = vadd.f32 %v3341, %v3500
        %v3502 = vpop.f32.mrb[0].mxu0
        %3503 = vdwg.mxu0
        %v3504 = vadd.f32 %v2959, %v3474
        %v3505 = vadd.f32 %v2960, %v3477
        %v3506 = vadd.f32 %v2961, %v3482
        %v3507 = vadd.f32 %v2962, %v3485
        %v3508 = vadd.f32 %v2963, %v3490
        %v3509 = vadd.f32 %v2964, %v3493
        %v3510 = vadd.f32 %v2965, %v3498
        %v3511 = vadd.f32 %v2966, %v3501
        %v3512 = vld [vmem:[%s741] sm:$0x1]
        %v3513 = vld [vmem:[%s744] sm:$0x1]
        %3514 = vadd.xlane.f32.xlu0 %v3504
        %v3515 = vpop.xlane.xlu0 %3514
        %3516 = vadd.xlane.f32.xlu0 %v3505
        %v3517 = vpop.xlane.xlu0 %3516
        %3518 = vadd.xlane.f32.xlu0 %v3506
        %v3519 = vpop.xlane.xlu0 %3518
        %3520 = vadd.xlane.f32.xlu0 %v3507
        %v3521 = vpop.xlane.xlu0 %3520
        %3522 = vadd.xlane.f32.xlu0 %v3508
        %v3523 = vpop.xlane.xlu0 %3522
        %3524 = vadd.xlane.f32.xlu0 %v3509
        %v3525 = vpop.xlane.xlu0 %3524
        %3526 = vadd.xlane.f32.xlu0 %v3510
        %v3527 = vpop.xlane.xlu0 %3526
        %3528 = vadd.xlane.f32.xlu0 %v3511
        %v3529 = vpop.xlane.xlu0 %3528
        %v3530 = vmul.f32 %v3515, %v2866
        %v3531 = vmul.f32 %v3517, %v2866
        %v3532 = vmul.f32 %v3519, %v2866
        %v3533 = vmul.f32 %v3521, %v2866
        %v3534 = vmul.f32 %v3523, %v2866
        %v3535 = vmul.f32 %v3525, %v2866
        %v3536 = vmul.f32 %v3527, %v2866
        %v3537 = vmul.f32 %v3529, %v2866
        %v3538 = vsub.f32 %v3504, %v3530
        %v3539 = vsub.f32 %v3505, %v3531
        %v3540 = vsub.f32 %v3506, %v3532
        %v3541 = vsub.f32 %v3507, %v3533
        %v3542 = vsub.f32 %v3508, %v3534
        %v3543 = vsub.f32 %v3509, %v3535
        %v3544 = vsub.f32 %v3510, %v3536
        %v3545 = vsub.f32 %v3511, %v3537
        %v3546 = vmul.f32 %v3538, %v3538
        %v3547 = vmul.f32 %v3539, %v3539
        %v3548 = vmul.f32 %v3540, %v3540
        %v3549 = vmul.f32 %v3541, %v3541
        %v3550 = vmul.f32 %v3542, %v3542
        %v3551 = vmul.f32 %v3543, %v3543
        %v3552 = vmul.f32 %v3544, %v3544
        %v3553 = vmul.f32 %v3545, %v3545
        %3554 = vadd.xlane.f32.xlu0 %v3546
        %v3555 = vpop.xlane.xlu0 %3554
        %3556 = vadd.xlane.f32.xlu0 %v3547
        %v3557 = vpop.xlane.xlu0 %3556
        %3558 = vadd.xlane.f32.xlu0 %v3548
        %v3559 = vpop.xlane.xlu0 %3558
        %3560 = vadd.xlane.f32.xlu0 %v3549
        %v3561 = vpop.xlane.xlu0 %3560
        %3562 = vadd.xlane.f32.xlu0 %v3550
        %v3563 = vpop.xlane.xlu0 %3562
        %3564 = vadd.xlane.f32.xlu0 %v3551
        %v3565 = vpop.xlane.xlu0 %3564
        %3566 = vadd.xlane.f32.xlu0 %v3552
        %v3567 = vpop.xlane.xlu0 %3566
        %3568 = vadd.xlane.f32.xlu0 %v3553
        %v3569 = vpop.xlane.xlu0 %3568
        %v3570 = vmul.f32 %v3555, %v2866
        %v3571 = vmul.f32 %v3557, %v2866
        %v3572 = vmul.f32 %v3559, %v2866
        %v3573 = vmul.f32 %v3561, %v2866
        %v3574 = vmul.f32 %v3563, %v2866
        %v3575 = vmul.f32 %v3565, %v2866
        %v3576 = vmul.f32 %v3567, %v2866
        %v3577 = vmul.f32 %v3569, %v2866
        %v3578 = vadd.f32 %v3570, 1e-05
        %v3579 = vadd.f32 %v3571, 1e-05
        %v3580 = vadd.f32 %v3572, 1e-05
        %v3581 = vadd.f32 %v3573, 1e-05
        %v3582 = vadd.f32 %v3574, 1e-05
        %v3583 = vadd.f32 %v3575, 1e-05
        %v3584 = vadd.f32 %v3576, 1e-05
        %v3585 = vadd.f32 %v3577, 1e-05
        %v3586 = vrsqrt.pop %v3578
        %v3587 = vrsqrt.pop %v3579
        %v3588 = vrsqrt.pop %v3580
        %v3589 = vrsqrt.pop %v3581
        %v3590 = vrsqrt.pop %v3582
        %v3591 = vrsqrt.pop %v3583
        %v3592 = vrsqrt.pop %v3584
        %v3593 = vrsqrt.pop %v3585
        %v3594 = vmul.f32 %v3538, %v3586
        %v3595 = vmul.f32 %v3539, %v3587
        %v3596 = vmul.f32 %v3540, %v3588
        %v3597 = vmul.f32 %v3541, %v3589
        %v3598 = vmul.f32 %v3542, %v3590
        %v3599 = vmul.f32 %v3543, %v3591
        %v3600 = vmul.f32 %v3544, %v3592
        %v3601 = vmul.f32 %v3545, %v3593
        %v3603 = vlaneseq
        %v3604 = vshrl.u32 %v3603, 7
        %v3605 = vsub.s32 0, %v3604
        %v3606 = vrot.slane %v3512, %v3605
        %v3608 = vmul.f32 %v3594, %v3606
        %v3609 = vmul.f32 %v3595, %v3606
        %v3610 = vmul.f32 %v3596, %v3606
        %v3611 = vmul.f32 %v3597, %v3606
        %v3612 = vmul.f32 %v3598, %v3606
        %v3613 = vmul.f32 %v3599, %v3606
        %v3614 = vmul.f32 %v3600, %v3606
        %v3615 = vmul.f32 %v3601, %v3606
        %v3617 = vlaneseq
        %v3618 = vshrl.u32 %v3617, 7
        %v3619 = vsub.s32 0, %v3618
        %v3620 = vrot.slane %v3513, %v3619
        %v3622 = vadd.f32 %v3608, %v3620
        %v3623 = vadd.f32 %v3609, %v3620
        %v3624 = vadd.f32 %v3610, %v3620
        %v3625 = vadd.f32 %v3611, %v3620
        %v3626 = vadd.f32 %v3612, %v3620
        %v3627 = vadd.f32 %v3613, %v3620
        %v3628 = vadd.f32 %v3614, %v3620
        %v3629 = vadd.f32 %v3615, %v3620
        %3630 = vst [vmem:[#allocation2] sm:$0xff] %v3622
        %3631 = vst [vmem:[#allocation2 + $0x8] sm:$0xff] %v3623
        %3632 = vst [vmem:[#allocation2 + $0x10] sm:$0xff] %v3624
        %3633 = vst [vmem:[#allocation2 + $0x18] sm:$0xff] %v3625
        %3634 = vst [vmem:[#allocation2 + $0x20] sm:$0xff] %v3626
        %3635 = vst [vmem:[#allocation2 + $0x28] sm:$0xff] %v3627
        %3636 = vst [vmem:[#allocation2 + $0x30] sm:$0xff] %v3628
        %3637 = vst [vmem:[#allocation2 + $0x38] sm:$0xff] %v3629
        %p3638 = scmp.eq.s32.totalorder %s41, 1
        // Predicated region
        $region97: #{tpu_custom_call.1} parent=71 // pred_check
          %p3639 = pneg %p3638
        $region98: #{tpu_custom_call.1} parent=71 // pred_check_branch
          %3641 = sbr.rel (%p3639) target = $region100
        $region99: #{tpu_custom_call.1} parent=71 // pred_region
          %v3642 = vpack.c.bf16 %v3623, %v3622
          %v3643 = vpack.c.bf16 %v3625, %v3624
          %v3644 = vpack.c.bf16 %v3627, %v3626
          %v3645 = vpack.c.bf16 %v3629, %v3628
          %v3650 = vunpack.c.l.b16 %v3642
          %v3651 = vunpack.c.h.b16 %v3642
          %v3652 = vunpack.c.l.b16 %v3643
          %v3653 = vunpack.c.h.b16 %v3643
          %v3654 = vunpack.c.l.b16 %v3644
          %v3655 = vunpack.c.h.b16 %v3644
          %v3656 = vunpack.c.l.b16 %v3645
          %v3657 = vunpack.c.h.b16 %v3645
          %v3658 = vpack.c.b16 %v3650, %v3650
          %v3659 = vpack.c.b16 %v3651, %v3651
          %v3660 = vpack.c.b16 %v3652, %v3652
          %v3661 = vpack.c.b16 %v3653, %v3653
          %v3662 = vpack.c.b16 %v3654, %v3654
          %v3663 = vpack.c.b16 %v3655, %v3655
          %v3664 = vpack.c.b16 %v3656, %v3656
          %v3665 = vpack.c.b16 %v3657, %v3657
          %3674 = vst [vmem:[%s717] sm:$0xf] %v3658
          %3675 = vst [vmem:[%s717 + $0x4] sm:$0xf] %v3659
          %3676 = vst [vmem:[%s717 + $0x8] sm:$0xf] %v3660
          %3677 = vst [vmem:[%s717 + $0xc] sm:$0xf] %v3661
          %3678 = vst [vmem:[%s717 + $0x10] sm:$0xf] %v3662
          %3679 = vst [vmem:[%s717 + $0x14] sm:$0xf] %v3663
          %3680 = vst [vmem:[%s717 + $0x18] sm:$0xf] %v3664
          %3681 = vst [vmem:[%s717 + $0x1c] sm:$0xf] %v3665
        $region100: #{tpu_custom_call.1} parent=71 // pred_fallthru
          _
        %s3682 = sand.u32 %s394, 1
        %s3683 = scalar_lea.sflag [#allocation5], %s3682
        %s3684 = sand.u32 %s394, 1
        %s3685 = smul.addr %s3684, 32
        %s3686 = scalar_lea.vmem [#allocation12], %s3685
        // Predicated region
        $region101: #{tpu_custom_call.1} parent=71 // pred_check
          %p3687 = pneg %p404
        $region102: #{tpu_custom_call.1} parent=71 // pred_check_branch
          %3689 = sbr.rel (%p3687) target = $region104
        $region103: #{tpu_custom_call.1} parent=71 // pred_region
          %s3690 = smul.u32 2, %s40
          %s3692 = ssub.s32 512, 512
          %3693 = vsyncadd %s3683, %s3692
          %s3694 = smul.addr %s3690, 4
          %s3695 = smul.addr %s3694, 64
          %s3696 = scalar_lea.hbm %s13, %s3695
          %s3697 = sshll.u32 %s3686, 4
          %s3698 = int_to_ptr.vmem [resolvable:$true] %s3697
          %3703 = dma.vmem_to_hbm [thread:$0]  %s3698, 512, %s3696, %s3683, 64, 64, 4
        $region104: #{tpu_custom_call.1} parent=71 // pred_fallthru
          _
      $region72: #{tpu_custom_call.1} parent=5 // pred_fallthru
        _
      %p3704 = scmp.le.s32.totalorder 2, %s31
      // Predicated region
      $region105: #{tpu_custom_call.1} parent=5 // pred_check
        %p3705 = pneg %p3704
      $region106: #{tpu_custom_call.1} parent=5 // pred_check_branch
        %3707 = sbr.rel (%p3705) target = $region108
      $region107: #{tpu_custom_call.1} parent=5 // pred_region
        %s3708 = ssub.s32 %s31, 2
        // Predicated region
        $region109: #{tpu_custom_call.1} parent=107 // pred_check
          %p3709 = pneg %p410
        $region110: #{tpu_custom_call.1} parent=107 // pred_check_branch
          %3711 = sbr.rel (%p3709) target = $region112
        $region111: #{tpu_custom_call.1} parent=107 // pred_region
          %s3712 = sand.u32 %s395, 1
          %s3713 = scalar_lea.sflag [#allocation5], %s3712
          %s3714 = sand.u32 %s395, 1
          %s3715 = smul.addr %s3714, 32
          %s3716 = scalar_lea.vmem [#allocation12], %s3715
          %3717 = dma.done %s3713, 512
        $region112: #{tpu_custom_call.1} parent=107 // pred_fallthru
          _
      $region108: #{tpu_custom_call.1} parent=5 // pred_fallthru
        _
    $region6: #{tpu_custom_call.1} parent=1 // loop_footer
      %s35 = sadd.s32 1, %s31
    $region7: #{tpu_custom_call.1} parent=1 // loop_footer_branch
      %30 = sbr.rel target = $region3
    $region8: #{tpu_custom_call.1} parent=1 // loop_exit
      _
    %3718 = vsyncpa [#allocation4], 1
    %s3719 = scalar_lea.sflag [#allocation4], 1
    %3720 = vsyncpa %s3719, 1
    %3721 = vsyncpa [#allocation7], 1
    %s3722 = scalar_lea.sflag [#allocation7], 1
    %3723 = vsyncpa %s3722, 1
    %3724 = vsyncpa [#allocation10], 1
    %s3725 = scalar_lea.sflag [#allocation10], 1
    %3726 = vsyncpa %s3725, 1
    %3727 = vsyncpa [#allocation5], 1
    %s3728 = scalar_lea.sflag [#allocation5], 1
    %3729 = vsyncpa %s3728, 1

</llo_original>
